<compile_context>
chip_gen: v7x
topology: tpu7x:2x2x1
jax: 0.10.0
libtpu: 0.0.40
codegen_flags: <defaults>
</compile_context>

<pallas_src>
import functools

import jax
import jax.numpy as jnp
from jax.experimental import pallas as pl
from jax.experimental.pallas import tpu as pltpu

C_IN = 96
C_OUT = 24
BN_EPS = 1e-5


def _round_up(x, m):
    return ((x + m - 1) // m) * m


def _choose_lane_tile(p):
    """Lane tile: multiple of 128; one tile when small, two lane-dense tiles otherwise."""
    p128 = _round_up(p, 128)
    if p128 <= 2048:
        return p128                                   # single tile covers everything
    if p128 <= 4096:
        return _round_up((p128 + 1) // 2, 128)        # two tiles, minimal lane padding
    return 2048                                       # many tiles for very large spatial


def _fused_kernel(p_valid, tp, nt, n_batch,
                  gate_ref, w_ref, gamma_ref, beta_ref, x_ref, res_ref,
                  o_ref,
                  y_scr, sum_scr, sq_scr, a_scr, b_scr):
    phase = pl.program_id(0)
    n = pl.program_id(1)
    t = pl.program_id(2)
    slab = n * nt + t
    inv_count = 1.0 / float(n_batch * p_valid)

    # -------- phase 0: gated 1x1 conv (MXU) + batch-stat accumulation --------
    @pl.when(phase == 0)
    def _():
        @pl.when(jnp.logical_and(n == 0, t == 0))
        def _():
            sum_scr[...] = jnp.zeros_like(sum_scr)
            sq_scr[...] = jnp.zeros_like(sq_scr)

        # Fold the per-sample sigmoid gate into the weight: W @ (g*x) == (W*g) @ x,
        # so the gated (96, TP) activation is never materialized.
        gate = 1.0 / (1.0 + jnp.exp(-gate_ref[0]))                    # (1, C_IN)
        w_eff = w_ref[...] * gate                                     # (C_OUT, C_IN)
        y = jnp.dot(w_eff, x_ref[0], preferred_element_type=jnp.float32)  # (C_OUT, TP)
        y_scr[slab] = y

        def _accumulate(vals):
            sum_scr[...] += jnp.sum(vals, axis=1, keepdims=True)
            sq_scr[...] += jnp.sum(vals * vals, axis=1, keepdims=True)

        if p_valid % tp != 0:
            # Only the final tile has lanes past the true spatial extent; full
            # tiles skip the iota/compare/where entirely.
            @pl.when(t == nt - 1)
            def _():
                col = t * tp + jax.lax.broadcasted_iota(jnp.int32, y.shape, 1)
                _accumulate(jnp.where(col < p_valid, y, 0.0))

            @pl.when(t != nt - 1)
            def _():
                _accumulate(y)
        else:
            _accumulate(y)

    # -------- phase 1: BN affine (from batch stats) + residual add -----------
    @pl.when(phase == 1)
    def _():
        @pl.when(jnp.logical_and(n == 0, t == 0))
        def _():
            mean = sum_scr[...] * inv_count
            var = jnp.maximum(sq_scr[...] * inv_count - mean * mean, 0.0)  # biased (training BN)
            a = gamma_ref[...] * jax.lax.rsqrt(var + BN_EPS)
            a_scr[...] = a
            b_scr[...] = beta_ref[...] - a * mean

        o_ref[0] = res_ref[0] + a_scr[...] * y_scr[slab] + b_scr[...]


def fused_forward(x24, x20, x43, conv_w, gamma, beta):
    """x24: (N,96,1,1), x20: (N,96,H,W), x43: (N,24,H,W) -> (N,24,H,W)."""
    N, c_in, H, W = x20.shape
    assert c_in == C_IN
    P = H * W
    TP = _choose_lane_tile(P)
    nt = pl.cdiv(P, TP)

    # Contiguous NCHW -> (N, C, H*W): pure reshape, channels on sublanes,
    # flattened spatial on lanes (lane-dense stores in phase 1).
    x_2d = x20.reshape(N, C_IN, P).astype(jnp.float32)
    res_2d = x43.reshape(N, C_OUT, P).astype(jnp.float32)
    gate_logits = x24.reshape(N, 1, C_IN).astype(jnp.float32)
    w_2d = conv_w.reshape(C_OUT, C_IN).astype(jnp.float32)
    gamma_2d = gamma.reshape(C_OUT, 1).astype(jnp.float32)
    beta_2d = beta.reshape(C_OUT, 1).astype(jnp.float32)

    n_last = N - 1
    t_last = nt - 1

    # Phase-aware index maps: freeze blocks that a phase does not need to the
    # previous/next useful block so Pallas skips the DMA entirely.
    def x_map(p, n, t):      # needed in phase 0 only; frozen (no re-fetch) in phase 1
        return (jnp.where(p == 0, n, n_last), 0, jnp.where(p == 0, t, t_last))

    def res_map(p, n, t):    # needed in phase 1; phase 0 prefetches the first block
        return (jnp.where(p == 0, 0, n), 0, jnp.where(p == 0, 0, t))

    def gate_map(p, n, t):
        return (jnp.where(p == 0, n, n_last), 0, 0)

    # VMEM budget: double-buffered x/res/out blocks + whole-batch y scratch slab.
    # TODO(synk): for very large N*H*W (y slab > a few MiB) fall back to a
    # two-call structure that streams y through HBM instead of VMEM scratch.
    vmem_bytes = 4 * (2 * C_IN * TP + 4 * C_OUT * TP + N * nt * C_OUT * TP
                      + 2 * C_OUT * C_IN + 8 * C_OUT + 2 * C_IN)
    vmem_limit = int(min(max(vmem_bytes + (2 << 20), 4 << 20), 32 << 20))

    out_2d = pl.pallas_call(
        functools.partial(_fused_kernel, P, TP, nt, N),
        out_shape=jax.ShapeDtypeStruct((N, C_OUT, P), jnp.float32),
        grid=(2, N, nt),                       # (phase, sample, lane-tile)
        in_specs=[
            pl.BlockSpec((1, 1, C_IN), gate_map),
            pl.BlockSpec((C_OUT, C_IN), lambda p, n, t: (0, 0)),
            pl.BlockSpec((C_OUT, 1), lambda p, n, t: (0, 0)),
            pl.BlockSpec((C_OUT, 1), lambda p, n, t: (0, 0)),
            pl.BlockSpec((1, C_IN, TP), x_map),
            pl.BlockSpec((1, C_OUT, TP), res_map),
        ],
        out_specs=pl.BlockSpec((1, C_OUT, TP), res_map),
        scratch_shapes=[
            pltpu.VMEM((N * nt, C_OUT, TP), jnp.float32),   # y slab (conv output)
            pltpu.VMEM((C_OUT, 1), jnp.float32),            # per-channel sum
            pltpu.VMEM((C_OUT, 1), jnp.float32),            # per-channel sum of squares
            pltpu.VMEM((C_OUT, 1), jnp.float32),            # BN scale a
            pltpu.VMEM((C_OUT, 1), jnp.float32),            # BN shift b
        ],
        compiler_params=pltpu.CompilerParams(
            # Shared stat/y scratch across phases -> sequential grid (single core).
            dimension_semantics=("arbitrary", "arbitrary", "arbitrary"),
            vmem_limit_bytes=vmem_limit,
        ),
    )(gate_logits, w_2d, gamma_2d, beta_2d, x_2d, res_2d)

    # TODO(synk): BatchNorm running_mean/running_var momentum update is a
    # training-time side effect and is not materialized here (forward output
    # does not depend on it).
    return out_2d.reshape(N, C_OUT, H, W)


def _reference(x24, x20, x43, conv_w, gamma, beta):
    gate = jax.nn.sigmoid(x24)                                # (N,96,1,1)
    gated = gate * x20                                        # (N,96,H,W)
    y = jnp.einsum("oc,nchw->nohw", conv_w.reshape(C_OUT, C_IN), gated)
    mean = jnp.mean(y, axis=(0, 2, 3), keepdims=True)
    var = jnp.mean((y - mean) ** 2, axis=(0, 2, 3), keepdims=True)
    y_norm = gamma.reshape(1, C_OUT, 1, 1) * (y - mean) / jnp.sqrt(var + BN_EPS) \
        + beta.reshape(1, C_OUT, 1, 1)
    return x43 + y_norm


if __name__ == "__main__":
    key = jax.random.PRNGKey(0)
    k1, k2, k3, k4 = jax.random.split(key, 4)

    # Shapes from the module spec (channel counts fixed by the module: 96 -> 24).
    N, H, W = 1, 56, 56
    x24 = jax.random.normal(k1, (N, C_IN, 1, 1), dtype=jnp.float32)
    x20 = jax.random.normal(k2, (N, C_IN, H, W), dtype=jnp.float32)
    x43 = jax.random.normal(k3, (N, C_OUT, H, W), dtype=jnp.float32)

    # Deterministic parameter init (Conv2d weight, BN affine defaults gamma=1, beta=0)
    conv_w = jax.random.normal(k4, (C_OUT, C_IN, 1, 1), dtype=jnp.float32) * 0.05
    gamma = jnp.ones((C_OUT,), dtype=jnp.float32)
    beta = jnp.zeros((C_OUT,), dtype=jnp.float32)

    fwd = jax.jit(fused_forward)
    out = jax.block_until_ready(fwd(x24, x20, x43, conv_w, gamma, beta))

    ref = _reference(x24, x20, x43, conv_w, gamma, beta)
    assert out.shape == (N, C_OUT, H, W)
    assert jnp.allclose(out, ref, atol=1e-4, rtol=1e-4), "mismatch vs reference"

    print("KERNEL_OK")
</pallas_src>

<mosaic_0001>
module attributes {stable_mosaic.version = 11 : i64} {
  func.func @_fused_kernel(%arg0: i32, %arg1: i32, %arg2: i32, %arg3: memref<1x1x96xf32, #tpu.memory_space<vmem>>, %arg4: memref<24x96xf32, #tpu.memory_space<vmem>>, %arg5: memref<24x1xf32, #tpu.memory_space<vmem>>, %arg6: memref<24x1xf32, #tpu.memory_space<vmem>>, %arg7: memref<1x96x1664xf32, #tpu.memory_space<vmem>>, %arg8: memref<1x24x1664xf32, #tpu.memory_space<vmem>>, %arg9: memref<1x24x1664xf32, #tpu.memory_space<vmem>>, %arg10: memref<2x24x1664xf32, #tpu.memory_space<vmem>>, %arg11: memref<24x1xf32, #tpu.memory_space<vmem>>, %arg12: memref<24x1xf32, #tpu.memory_space<vmem>>, %arg13: memref<24x1xf32, #tpu.memory_space<vmem>>, %arg14: memref<24x1xf32, #tpu.memory_space<vmem>>) attributes {dimension_semantics = [#tpu.dimension_semantics<arbitrary>, #tpu.dimension_semantics<arbitrary>, #tpu.dimension_semantics<arbitrary>], iteration_bounds = array<i64: 2, 1, 2>, scalar_prefetch = 0 : i64, scratch_operands = 5 : i64, tpu.core_type = #tpu.core_type<tc>, window_params = [{transform_indices = @transform_0, window_bounds = array<i64: 1, 1, 96>}, {pipeline_mode = #tpu.pipeline_mode<synchronous>, transform_indices = @transform_1, window_bounds = array<i64: 24, 96>}, {pipeline_mode = #tpu.pipeline_mode<synchronous>, transform_indices = @transform_2, window_bounds = array<i64: 24, 1>}, {pipeline_mode = #tpu.pipeline_mode<synchronous>, transform_indices = @transform_3, window_bounds = array<i64: 24, 1>}, {transform_indices = @transform_4, window_bounds = array<i64: 1, 96, 1664>}, {transform_indices = @transform_5, window_bounds = array<i64: 1, 24, 1664>}, {transform_indices = @transform_6, window_bounds = array<i64: 1, 24, 1664>}]} {
    %c2_i32 = arith.constant 2 : i32
    %0 = arith.muli %arg1, %c2_i32 : i32
    %1 = arith.addi %0, %arg2 : i32
    %c0_i32 = arith.constant 0 : i32
    %2 = arith.cmpi eq, %arg0, %c0_i32 : i32
    %3 = arith.extui %2 : i1 to i32
    %c0_i32_0 = arith.constant 0 : i32
    %4 = arith.cmpi ne, %3, %c0_i32_0 : i32
    scf.if %4 {
      %c0_i32_2 = arith.constant 0 : i32
      %8 = arith.cmpi eq, %arg1, %c0_i32_2 : i32
      %c0_i32_3 = arith.constant 0 : i32
      %9 = arith.cmpi eq, %arg2, %c0_i32_3 : i32
      %10 = arith.andi %8, %9 : i1
      %11 = arith.extui %10 : i1 to i32
      %c0_i32_4 = arith.constant 0 : i32
      %12 = arith.cmpi ne, %11, %c0_i32_4 : i32
      scf.if %12 {
        %cst_21 = arith.constant 0.000000e+00 : f32
        %38 = vector.broadcast %cst_21 : f32 to vector<24x1xf32>
        %c0_22 = arith.constant 0 : index
        %c0_23 = arith.constant 0 : index
        %39 = vector.load %arg11[%c0_22, %c0_23] : memref<24x1xf32, #tpu.memory_space<vmem>>, vector<24x1xf32>
        tpu.vector_store %arg11[%c0_22, %c0_23], %38 {strides = array<i32>} : memref<24x1xf32, #tpu.memory_space<vmem>>, vector<24x1xf32>,
        %cst_24 = arith.constant 0.000000e+00 : f32
        %40 = vector.broadcast %cst_24 : f32 to vector<24x1xf32>
        %c0_25 = arith.constant 0 : index
        %c0_26 = arith.constant 0 : index
        %41 = vector.load %arg12[%c0_25, %c0_26] : memref<24x1xf32, #tpu.memory_space<vmem>>, vector<24x1xf32>
        tpu.vector_store %arg12[%c0_25, %c0_26], %40 {strides = array<i32>} : memref<24x1xf32, #tpu.memory_space<vmem>>, vector<24x1xf32>,
      } else {
      }
      %c0 = arith.constant 0 : index
      %c0_5 = arith.constant 0 : index
      %c0_6 = arith.constant 0 : index
      %13 = vector.load %arg3[%c0, %c0_5, %c0_6] : memref<1x1x96xf32, #tpu.memory_space<vmem>>, vector<1x1x96xf32>
      %14 = vector.shape_cast %13 : vector<1x1x96xf32> to vector<1x96xf32>
      %cst = arith.constant 0.000000e+00 : f32
      %15 = vector.broadcast %cst : f32 to vector<1x96xf32>
      %16 = arith.subf %15, %14 : vector<1x96xf32>
      %17 = math.exp %16 : vector<1x96xf32>
      %cst_7 = arith.constant 1.000000e+00 : f32
      %18 = vector.broadcast %cst_7 : f32 to vector<1x96xf32>
      %19 = arith.addf %18, %17 : vector<1x96xf32>
      %cst_8 = arith.constant 1.000000e+00 : f32
      %20 = vector.broadcast %cst_8 : f32 to vector<1x96xf32>
      %21 = arith.divf %20, %19 : vector<1x96xf32>
      %c0_9 = arith.constant 0 : index
      %c0_10 = arith.constant 0 : index
      %22 = vector.load %arg4[%c0_9, %c0_10] : memref<24x96xf32, #tpu.memory_space<vmem>>, vector<24x96xf32>
      %23 = vector.broadcast %21 : vector<1x96xf32> to vector<24x96xf32>
      %24 = arith.mulf %22, %23 : vector<24x96xf32>
      %c0_11 = arith.constant 0 : index
      %c0_12 = arith.constant 0 : index
      %c0_13 = arith.constant 0 : index
      %25 = vector.load %arg7[%c0_11, %c0_12, %c0_13] : memref<1x96x1664xf32, #tpu.memory_space<vmem>>, vector<1x96x1664xf32>
      %26 = vector.shape_cast %25 : vector<1x96x1664xf32> to vector<96x1664xf32>
      %cst_14 = arith.constant dense<0.000000e+00> : vector<24x1664xf32>
      %27 = tpu.matmul %24, %26, %cst_14 {dimension_numbers = #tpu.dot_dimension_numbers<[1], [0], [0], [1], [0, 0, 1, 1], [], []>} : vector<24x96xf32>, vector<96x1664xf32>, vector<24x1664xf32> -> vector<24x1664xf32>
      %28 = arith.index_cast %1 : i32 to index
      %c0_15 = arith.constant 0 : index
      %c0_16 = arith.constant 0 : index
      %29 = vector.load %arg10[%28, %c0_15, %c0_16] : memref<2x24x1664xf32, #tpu.memory_space<vmem>>, vector<1x24x1664xf32>
      %30 = vector.shape_cast %29 : vector<1x24x1664xf32> to vector<24x1664xf32>
      %31 = vector.shape_cast %27 : vector<24x1664xf32> to vector<1x24x1664xf32>
      tpu.vector_store %arg10[%28, %c0_15, %c0_16], %31 {strides = array<i32>} : memref<2x24x1664xf32, #tpu.memory_space<vmem>>, vector<1x24x1664xf32>,
      %c1_i32_17 = arith.constant 1 : i32
      %32 = arith.cmpi eq, %arg2, %c1_i32_17 : i32
      %33 = arith.extui %32 : i1 to i32
      %c0_i32_18 = arith.constant 0 : i32
      %34 = arith.cmpi ne, %33, %c0_i32_18 : i32
      scf.if %34 {
        %c1664_i32 = arith.constant 1664 : i32
        %38 = arith.muli %arg2, %c1664_i32 : i32
        %39 = tpu.iota {dimensions = array<i32: 1>} : vector<24x1664xi32>
        %40 = vector.broadcast %38 : i32 to vector<24x1664xi32>
        %41 = arith.addi %40, %39 : vector<24x1664xi32>
        %c3136_i32 = arith.constant 3136 : i32
        %42 = vector.broadcast %c3136_i32 : i32 to vector<24x1664xi32>
        %43 = arith.cmpi slt, %41, %42 : vector<24x1664xi32>
        %cst_21 = arith.constant 0.000000e+00 : f32
        %44 = vector.broadcast %cst_21 : f32 to vector<24x1664xf32>
        %45 = arith.select %43, %27, %44 : vector<24x1664xi1>, vector<24x1664xf32>
        %c0_22 = arith.constant 0 : index
        %c0_23 = arith.constant 0 : index
        %46 = vector.load %arg11[%c0_22, %c0_23] : memref<24x1xf32, #tpu.memory_space<vmem>>, vector<24x1xf32>
        %cst_24 = arith.constant dense<0.000000e+00> : vector<24xf32>
        %47 = vector.multi_reduction <add>, %45, %cst_24 [1] : vector<24x1664xf32> to vector<24xf32>
        %48 = vector.shape_cast %47 : vector<24xf32> to vector<24x1xf32>
        %49 = arith.addf %46, %48 : vector<24x1xf32>
        %c0_25 = arith.constant 0 : index
        %c0_26 = arith.constant 0 : index
        %50 = vector.load %arg11[%c0_25, %c0_26] : memref<24x1xf32, #tpu.memory_space<vmem>>, vector<24x1xf32>
        tpu.vector_store %arg11[%c0_25, %c0_26], %49 {strides = array<i32>} : memref<24x1xf32, #tpu.memory_space<vmem>>, vector<24x1xf32>,
        %c0_27 = arith.constant 0 : index
        %c0_28 = arith.constant 0 : index
        %51 = vector.load %arg12[%c0_27, %c0_28] : memref<24x1xf32, #tpu.memory_space<vmem>>, vector<24x1xf32>
        %52 = arith.mulf %45, %45 : vector<24x1664xf32>
        %cst_29 = arith.constant dense<0.000000e+00> : vector<24xf32>
        %53 = vector.multi_reduction <add>, %52, %cst_29 [1] : vector<24x1664xf32> to vector<24xf32>
        %54 = vector.shape_cast %53 : vector<24xf32> to vector<24x1xf32>
        %55 = arith.addf %51, %54 : vector<24x1xf32>
        %c0_30 = arith.constant 0 : index
        %c0_31 = arith.constant 0 : index
        %56 = vector.load %arg12[%c0_30, %c0_31] : memref<24x1xf32, #tpu.memory_space<vmem>>, vector<24x1xf32>
        tpu.vector_store %arg12[%c0_30, %c0_31], %55 {strides = array<i32>} : memref<24x1xf32, #tpu.memory_space<vmem>>, vector<24x1xf32>,
      } else {
      }
      %c1_i32_19 = arith.constant 1 : i32
      %35 = arith.cmpi ne, %arg2, %c1_i32_19 : i32
      %36 = arith.extui %35 : i1 to i32
      %c0_i32_20 = arith.constant 0 : i32
      %37 = arith.cmpi ne, %36, %c0_i32_20 : i32
      scf.if %37 {
        %c0_21 = arith.constant 0 : index
        %c0_22 = arith.constant 0 : index
        %38 = vector.load %arg11[%c0_21, %c0_22] : memref<24x1xf32, #tpu.memory_space<vmem>>, vector<24x1xf32>
        %cst_23 = arith.constant dense<0.000000e+00> : vector<24xf32>
        %39 = vector.multi_reduction <add>, %27, %cst_23 [1] : vector<24x1664xf32> to vector<24xf32>
        %40 = vector.shape_cast %39 : vector<24xf32> to vector<24x1xf32>
        %41 = arith.addf %38, %40 : vector<24x1xf32>
        %c0_24 = arith.constant 0 : index
        %c0_25 = arith.constant 0 : index
        %42 = vector.load %arg11[%c0_24, %c0_25] : memref<24x1xf32, #tpu.memory_space<vmem>>, vector<24x1xf32>
        tpu.vector_store %arg11[%c0_24, %c0_25], %41 {strides = array<i32>} : memref<24x1xf32, #tpu.memory_space<vmem>>, vector<24x1xf32>,
        %c0_26 = arith.constant 0 : index
        %c0_27 = arith.constant 0 : index
        %43 = vector.load %arg12[%c0_26, %c0_27] : memref<24x1xf32, #tpu.memory_space<vmem>>, vector<24x1xf32>
        %44 = arith.mulf %27, %27 : vector<24x1664xf32>
        %cst_28 = arith.constant dense<0.000000e+00> : vector<24xf32>
        %45 = vector.multi_reduction <add>, %44, %cst_28 [1] : vector<24x1664xf32> to vector<24xf32>
        %46 = vector.shape_cast %45 : vector<24xf32> to vector<24x1xf32>
        %47 = arith.addf %43, %46 : vector<24x1xf32>
        %c0_29 = arith.constant 0 : index
        %c0_30 = arith.constant 0 : index
        %48 = vector.load %arg12[%c0_29, %c0_30] : memref<24x1xf32, #tpu.memory_space<vmem>>, vector<24x1xf32>
        tpu.vector_store %arg12[%c0_29, %c0_30], %47 {strides = array<i32>} : memref<24x1xf32, #tpu.memory_space<vmem>>, vector<24x1xf32>,
      } else {
      }
    } else {
    }
    %c1_i32 = arith.constant 1 : i32
    %5 = arith.cmpi eq, %arg0, %c1_i32 : i32
    %6 = arith.extui %5 : i1 to i32
    %c0_i32_1 = arith.constant 0 : i32
    %7 = arith.cmpi ne, %6, %c0_i32_1 : i32
    scf.if %7 {
      %c0_i32_2 = arith.constant 0 : i32
      %8 = arith.cmpi eq, %arg1, %c0_i32_2 : i32
      %c0_i32_3 = arith.constant 0 : i32
      %9 = arith.cmpi eq, %arg2, %c0_i32_3 : i32
      %10 = arith.andi %8, %9 : i1
      %11 = arith.extui %10 : i1 to i32
      %c0_i32_4 = arith.constant 0 : i32
      %12 = arith.cmpi ne, %11, %c0_i32_4 : i32
      scf.if %12 {
        %c0_16 = arith.constant 0 : index
        %c0_17 = arith.constant 0 : index
        %28 = vector.load %arg11[%c0_16, %c0_17] : memref<24x1xf32, #tpu.memory_space<vmem>>, vector<24x1xf32>
        %cst = arith.constant 3.18877544E-4 : f32
        %29 = vector.broadcast %cst : f32 to vector<24x1xf32>
        %30 = arith.mulf %28, %29 : vector<24x1xf32>
        %c0_18 = arith.constant 0 : index
        %c0_19 = arith.constant 0 : index
        %31 = vector.load %arg12[%c0_18, %c0_19] : memref<24x1xf32, #tpu.memory_space<vmem>>, vector<24x1xf32>
        %cst_20 = arith.constant 3.18877544E-4 : f32
        %32 = vector.broadcast %cst_20 : f32 to vector<24x1xf32>
        %33 = arith.mulf %31, %32 : vector<24x1xf32>
        %34 = arith.mulf %30, %30 : vector<24x1xf32>
        %35 = arith.subf %33, %34 : vector<24x1xf32>
        %cst_21 = arith.constant 0.000000e+00 : f32
        %36 = vector.broadcast %cst_21 : f32 to vector<24x1xf32>
        %37 = arith.maximumf %35, %36 : vector<24x1xf32>
        %c0_22 = arith.constant 0 : index
        %c0_23 = arith.constant 0 : index
        %38 = vector.load %arg5[%c0_22, %c0_23] : memref<24x1xf32, #tpu.memory_space<vmem>>, vector<24x1xf32>
        %cst_24 = arith.constant 9.99999974E-6 : f32
        %39 = vector.broadcast %cst_24 : f32 to vector<24x1xf32>
        %40 = arith.addf %37, %39 : vector<24x1xf32>
        %41 = math.rsqrt %40 : vector<24x1xf32>
        %42 = arith.mulf %38, %41 : vector<24x1xf32>
        %c0_25 = arith.constant 0 : index
        %c0_26 = arith.constant 0 : index
        %43 = vector.load %arg13[%c0_25, %c0_26] : memref<24x1xf32, #tpu.memory_space<vmem>>, vector<24x1xf32>
        tpu.vector_store %arg13[%c0_25, %c0_26], %42 {strides = array<i32>} : memref<24x1xf32, #tpu.memory_space<vmem>>, vector<24x1xf32>,
        %c0_27 = arith.constant 0 : index
        %c0_28 = arith.constant 0 : index
        %44 = vector.load %arg6[%c0_27, %c0_28] : memref<24x1xf32, #tpu.memory_space<vmem>>, vector<24x1xf32>
        %45 = arith.mulf %42, %30 : vector<24x1xf32>
        %46 = arith.subf %44, %45 : vector<24x1xf32>
        %c0_29 = arith.constant 0 : index
        %c0_30 = arith.constant 0 : index
        %47 = vector.load %arg14[%c0_29, %c0_30] : memref<24x1xf32, #tpu.memory_space<vmem>>, vector<24x1xf32>
        tpu.vector_store %arg14[%c0_29, %c0_30], %46 {strides = array<i32>} : memref<24x1xf32, #tpu.memory_space<vmem>>, vector<24x1xf32>,
      } else {
      }
      %c0 = arith.constant 0 : index
      %c0_5 = arith.constant 0 : index
      %c0_6 = arith.constant 0 : index
      %13 = vector.load %arg8[%c0, %c0_5, %c0_6] : memref<1x24x1664xf32, #tpu.memory_space<vmem>>, vector<1x24x1664xf32>
      %14 = vector.shape_cast %13 : vector<1x24x1664xf32> to vector<24x1664xf32>
      %c0_7 = arith.constant 0 : index
      %c0_8 = arith.constant 0 : index
      %15 = vector.load %arg13[%c0_7, %c0_8] : memref<24x1xf32, #tpu.memory_space<vmem>>, vector<24x1xf32>
      %16 = arith.index_cast %1 : i32 to index
      %c0_9 = arith.constant 0 : index
      %c0_10 = arith.constant 0 : index
      %17 = vector.load %arg10[%16, %c0_9, %c0_10] : memref<2x24x1664xf32, #tpu.memory_space<vmem>>, vector<1x24x1664xf32>
      %18 = vector.shape_cast %17 : vector<1x24x1664xf32> to vector<24x1664xf32>
      %19 = vector.broadcast %15 : vector<24x1xf32> to vector<24x1664xf32>
      %20 = arith.mulf %19, %18 : vector<24x1664xf32>
      %21 = arith.addf %14, %20 : vector<24x1664xf32>
      %c0_11 = arith.constant 0 : index
      %c0_12 = arith.constant 0 : index
      %22 = vector.load %arg14[%c0_11, %c0_12] : memref<24x1xf32, #tpu.memory_space<vmem>>, vector<24x1xf32>
      %23 = vector.broadcast %22 : vector<24x1xf32> to vector<24x1664xf32>
      %24 = arith.addf %21, %23 : vector<24x1664xf32>
      %c0_13 = arith.constant 0 : index
      %c0_14 = arith.constant 0 : index
      %c0_15 = arith.constant 0 : index
      %25 = vector.load %arg9[%c0_13, %c0_14, %c0_15] : memref<1x24x1664xf32, #tpu.memory_space<vmem>>, vector<1x24x1664xf32>
      %26 = vector.shape_cast %25 : vector<1x24x1664xf32> to vector<24x1664xf32>
      %27 = vector.shape_cast %24 : vector<24x1664xf32> to vector<1x24x1664xf32>
      tpu.vector_store %arg9[%c0_13, %c0_14, %c0_15], %27 {strides = array<i32>} : memref<1x24x1664xf32, #tpu.memory_space<vmem>>, vector<1x24x1664xf32>,
    } else {
    }
    return
  }
  func.func @transform_0(%arg0: i32, %arg1: i32, %arg2: i32) -> (i32, i32, i32) {
    %c0_i32 = arith.constant 0 : i32
    %0 = arith.cmpi eq, %arg0, %c0_i32 : i32
    %c0_i32_0 = arith.constant 0 : i32
    %1 = arith.select %0, %arg1, %c0_i32_0 : i32
    %c0_i32_1 = arith.constant 0 : i32
    %c0_i32_2 = arith.constant 0 : i32
    %c0_i32_3 = arith.constant 0 : i32
    return %1, %c0_i32_1, %c0_i32_2 : i32, i32, i32
  }
  func.func @transform_1(%arg0: i32, %arg1: i32, %arg2: i32) -> (i32, i32) {
    %c0_i32 = arith.constant 0 : i32
    %c0_i32_0 = arith.constant 0 : i32
    %c0_i32_1 = arith.constant 0 : i32
    return %c0_i32, %c0_i32_0 : i32, i32
  }
  func.func @transform_2(%arg0: i32, %arg1: i32, %arg2: i32) -> (i32, i32) {
    %c0_i32 = arith.constant 0 : i32
    %c0_i32_0 = arith.constant 0 : i32
    %c0_i32_1 = arith.constant 0 : i32
    return %c0_i32, %c0_i32_0 : i32, i32
  }
  func.func @transform_3(%arg0: i32, %arg1: i32, %arg2: i32) -> (i32, i32) {
    %c0_i32 = arith.constant 0 : i32
    %c0_i32_0 = arith.constant 0 : i32
    %c0_i32_1 = arith.constant 0 : i32
    return %c0_i32, %c0_i32_0 : i32, i32
  }
  func.func @transform_4(%arg0: i32, %arg1: i32, %arg2: i32) -> (i32, i32, i32) {
    %c0_i32 = arith.constant 0 : i32
    %0 = arith.cmpi eq, %arg0, %c0_i32 : i32
    %c0_i32_0 = arith.constant 0 : i32
    %1 = arith.select %0, %arg1, %c0_i32_0 : i32
    %c0_i32_1 = arith.constant 0 : i32
    %2 = arith.cmpi eq, %arg0, %c0_i32_1 : i32
    %c1_i32 = arith.constant 1 : i32
    %3 = arith.select %2, %arg2, %c1_i32 : i32
    %c0_i32_2 = arith.constant 0 : i32
    %c0_i32_3 = arith.constant 0 : i32
    return %1, %c0_i32_2, %3 : i32, i32, i32
  }
  func.func @transform_5(%arg0: i32, %arg1: i32, %arg2: i32) -> (i32, i32, i32) {
    %c0_i32 = arith.constant 0 : i32
    %0 = arith.cmpi eq, %arg0, %c0_i32 : i32
    %c0_i32_0 = arith.constant 0 : i32
    %1 = arith.select %0, %c0_i32_0, %arg1 : i32
    %c0_i32_1 = arith.constant 0 : i32
    %2 = arith.cmpi eq, %arg0, %c0_i32_1 : i32
    %c0_i32_2 = arith.constant 0 : i32
    %3 = arith.select %2, %c0_i32_2, %arg2 : i32
    %c0_i32_3 = arith.constant 0 : i32
    %c0_i32_4 = arith.constant 0 : i32
    return %1, %c0_i32_3, %3 : i32, i32, i32
  }
  func.func @transform_6(%arg0: i32, %arg1: i32, %arg2: i32) -> (i32, i32, i32) {
    %c0_i32 = arith.constant 0 : i32
    %0 = arith.cmpi eq, %arg0, %c0_i32 : i32
    %c0_i32_0 = arith.constant 0 : i32
    %1 = arith.select %0, %c0_i32_0, %arg1 : i32
    %c0_i32_1 = arith.constant 0 : i32
    %2 = arith.cmpi eq, %arg0, %c0_i32_1 : i32
    %c0_i32_2 = arith.constant 0 : i32
    %3 = arith.select %2, %c0_i32_2, %arg2 : i32
    %c0_i32_3 = arith.constant 0 : i32
    %c0_i32_4 = arith.constant 0 : i32
    return %1, %c0_i32_3, %3 : i32, i32, i32
  }
}

</mosaic_0001>

<llo_original>
// kernel: fused_forward.1
$region0: #{fused_forward.1}
  #allocation0 [shape = 'u32[]', space=smem, size = 0x4, offset = 0x4, fixed_abs, tag = 'smem constant byte address 0x4 - core index']
  #allocation1 [shape = 'u32[144,128]{1,0:T(1,128)}', space=vmem, size = 0x12000, scoped, tag = 'internal scratch']
  #allocation2 [shape = 'f32[2,24,1664]{2,1,0:T(8,128)}', space=vmem, size = 0x4e000, scoped, tag = 'scratch operand']
  #allocation3 [shape = 'f32[24,1]{1,0:T(8,128)}', space=vmem, size = 0x3000, scoped, tag = 'scratch operand']
  #allocation4 [shape = 'f32[24,1]{1,0:T(8,128)}', space=vmem, size = 0x3000, scoped, tag = 'scratch operand']
  #allocation5 [shape = 'f32[24,1]{1,0:T(8,128)}', space=vmem, size = 0x3000, scoped, tag = 'scratch operand']
  #allocation6 [shape = 'f32[24,1]{1,0:T(8,128)}', space=vmem, size = 0x3000, scoped, tag = 'scratch operand']
  %s0 = inlined_call_operand.vmem [shape: f32[1,1,96], index: 0, kind: input, shape index: {}]
  %s1 = inlined_call_operand.vmem [shape: f32[24,96], index: 1, kind: input, shape index: {}]
  %s2 = inlined_call_operand.vmem [shape: f32[24,1], index: 2, kind: input, shape index: {}]
  %s3 = inlined_call_operand.vmem [shape: f32[24,1], index: 3, kind: input, shape index: {}]
  %s4 = inlined_call_operand.vmem [shape: f32[1,96,3136], index: 4, kind: input, shape index: {}]
  %s5 = inlined_call_operand.vmem [shape: f32[1,24,3136], index: 5, kind: input, shape index: {}]
  %s6 = inlined_call_operand.vmem [shape: f32[1,24,3136], index: 6, kind: output, shape index: {}]
  %s7 = sld [smem:[#allocation0]]
  $region275: #{fused_forward.1} parent=0
    _
  %s9 = ssub.s32 1, %s7
  %s10 = scalar_select 0, %s9, %s7
  $region1: #{fused_forward.1} parent=0
    #allocation7 [shape = 'u8[1277952]{0}', space=vmem, size = 0x138000, scoped, tag = 'input window, operand 4']
    #allocation8 [shape = 'u8[319488]{0}', space=vmem, size = 0x4e000, scoped, tag = 'input window, operand 5']
    #allocation9 [shape = 'u8[319488]{0}', space=vmem, size = 0x4e000, scoped, tag = 'output window, operand 0']
    loop: start=0, step=1, limit=6
    $region2: #{fused_forward.1} parent=1 // loop_pre_header
      _
    $region3: #{fused_forward.1} parent=1 // loop_header
      %s12 = sphi 0, %s16
      %p13 = scmp.ge.s32.totalorder %s12, 6
      %s19 = sphi 0, %s38
      %s20 = sphi 0, %s34
      %s21 = sphi 0, %s30
      %s22 = sphi 0, %s19
      %s23 = sphi 0, %s20
      %s24 = sphi 0, %s21
      %s25 = sphi 0, %s22
      %s26 = sphi 0, %s23
      %s27 = sphi 0, %s24
      %s45 = sphi 0, %s47
      %s48 = sphi 0, %s45
      %s49 = sphi 0, %s48
      %s65 = sphi 0, %s49
      %s69 = sphi 0, %s69
      %s71 = sphi 0, %s69
      %s72 = sphi 0, %s71
      %s86 = sphi 0, %s72
      %s90 = sphi 0, %s90
      %s92 = sphi 0, %s90
      %s93 = sphi 0, %s92
      %s107 = sphi 0, %s93
      %s111 = sphi 0, %s111
      %s113 = sphi 0, %s111
      %s114 = sphi 0, %s113
      %s128 = sphi 0, %s114
      %s142 = sphi 0, %s144
      %s145 = sphi 0, %s142
      %s146 = sphi 0, %s145
      %s162 = sphi 0, %s146
      %s176 = sphi 0, %s178
      %s179 = sphi 0, %s176
      %s180 = sphi 0, %s179
      %s196 = sphi 0, %s180
      %s210 = sphi 0, %s212
      %s213 = sphi 0, %s210
      %s214 = sphi 0, %s213
      %s230 = sphi 0, %s214
    $region4: #{fused_forward.1} parent=1 // loop_header_branch
      %15 = sbr.rel (%p13) target = $region8
    $region5: #{fused_forward.1} parent=1 // loop_body
      %s17 = ssub.s32 %s12, 1
      %s18 = ssub.s32 %s12, 2
      %s28 = sadd.s32 1, %s21
      %p29 = scmp.ge.s32.totalorder %s28, 2
      %s30 = scalar_select %p29, 0, %s28
      %s31 = sadd.s32 1, %s20
      %s32 = scalar_select %p29, %s31, %s20
      %p33 = scmp.ge.s32.totalorder %s32, 1
      %s34 = scalar_select %p33, 0, %s32
      %s35 = sadd.s32 1, %s19
      %s36 = scalar_select %p33, %s35, %s19
      %p37 = scmp.ge.s32.totalorder %s36, 2
      %s38 = scalar_select %p37, 0, %s36
      %p39 = scmp.eq.s32.totalorder %s19, 0
      %s40 = scalar_select %p39, %s20, 0
      %p41 = scmp.eq.s32.totalorder %s38, 0
      %s42 = scalar_select %p41, %s34, 0
      %s43 = ssub.s32 %s40, %s42
      %p44 = scmp.eq.s32.totalorder %s43, 0
      %s46 = sadd.s32 %s45, 1
      %s47 = scalar_select %p44, %s45, %s46
      %p50 = pneg %p44
      %p51 = scmp.eq.s32.totalorder %s12, 3
      %p52 = por %p50, %p51
      %p53 = scmp.ne.s32.totalorder %s45, %s48
      %p54 = scmp.eq.s32.totalorder %s12, 0
      %p55 = por %p53, %p54
      %p56 = scmp.ne.s32.totalorder %s45, %s48
      %p57 = scmp.eq.s32.totalorder %s17, 3
      %p58 = por %p56, %p57
      %p59 = scmp.ne.s32.totalorder %s48, %s49
      %p60 = scmp.eq.s32.totalorder %s17, 0
      %p61 = por %p59, %p60
      %p62 = scmp.ne.s32.totalorder %s48, %s49
      %p63 = scmp.eq.s32.totalorder %s18, 3
      %p64 = por %p62, %p63
      %p66 = scmp.ne.s32.totalorder %s49, %s65
      %p67 = scmp.eq.s32.totalorder %s18, 0
      %p68 = por %p66, %p67
      %s70 = sadd.s32 %s69, 1
      %p73 = scmp.eq.s32.totalorder %s12, 3
      %p74 = scmp.ne.s32.totalorder %s69, %s71
      %p75 = scmp.eq.s32.totalorder %s12, 0
      %p76 = por %p74, %p75
      %p77 = scmp.ne.s32.totalorder %s69, %s71
      %p78 = scmp.eq.s32.totalorder %s17, 3
      %p79 = por %p77, %p78
      %p80 = scmp.ne.s32.totalorder %s71, %s72
      %p81 = scmp.eq.s32.totalorder %s17, 0
      %p82 = por %p80, %p81
      %p83 = scmp.ne.s32.totalorder %s71, %s72
      %p84 = scmp.eq.s32.totalorder %s18, 3
      %p85 = por %p83, %p84
      %p87 = scmp.ne.s32.totalorder %s72, %s86
      %p88 = scmp.eq.s32.totalorder %s18, 0
      %p89 = por %p87, %p88
      %s91 = sadd.s32 %s90, 1
      %p94 = scmp.eq.s32.totalorder %s12, 3
      %p95 = scmp.ne.s32.totalorder %s90, %s92
      %p96 = scmp.eq.s32.totalorder %s12, 0
      %p97 = por %p95, %p96
      %p98 = scmp.ne.s32.totalorder %s90, %s92
      %p99 = scmp.eq.s32.totalorder %s17, 3
      %p100 = por %p98, %p99
      %p101 = scmp.ne.s32.totalorder %s92, %s93
      %p102 = scmp.eq.s32.totalorder %s17, 0
      %p103 = por %p101, %p102
      %p104 = scmp.ne.s32.totalorder %s92, %s93
      %p105 = scmp.eq.s32.totalorder %s18, 3
      %p106 = por %p104, %p105
      %p108 = scmp.ne.s32.totalorder %s93, %s107
      %p109 = scmp.eq.s32.totalorder %s18, 0
      %p110 = por %p108, %p109
      %s112 = sadd.s32 %s111, 1
      %p115 = scmp.eq.s32.totalorder %s12, 3
      %p116 = scmp.ne.s32.totalorder %s111, %s113
      %p117 = scmp.eq.s32.totalorder %s12, 0
      %p118 = por %p116, %p117
      %p119 = scmp.ne.s32.totalorder %s111, %s113
      %p120 = scmp.eq.s32.totalorder %s17, 3
      %p121 = por %p119, %p120
      %p122 = scmp.ne.s32.totalorder %s113, %s114
      %p123 = scmp.eq.s32.totalorder %s17, 0
      %p124 = por %p122, %p123
      %p125 = scmp.ne.s32.totalorder %s113, %s114
      %p126 = scmp.eq.s32.totalorder %s18, 3
      %p127 = por %p125, %p126
      %p129 = scmp.ne.s32.totalorder %s114, %s128
      %p130 = scmp.eq.s32.totalorder %s18, 0
      %p131 = por %p129, %p130
      %p132 = scmp.eq.s32.totalorder %s19, 0
      %s133 = scalar_select %p132, %s20, 0
      %s134 = scalar_select %p132, %s21, 1
      %p135 = scmp.eq.s32.totalorder %s38, 0
      %s136 = scalar_select %p135, %s34, 0
      %s137 = scalar_select %p135, %s30, 1
      %s138 = ssub.s32 %s133, %s136
      %s139 = ssub.s32 %s134, %s137
      %s140 = sor.u32 %s138, %s139
      %p141 = scmp.eq.s32.totalorder %s140, 0
      %s143 = sadd.s32 %s142, 1
      %s144 = scalar_select %p141, %s142, %s143
      %p147 = pneg %p141
      %p148 = scmp.eq.s32.totalorder %s12, 3
      %p149 = por %p147, %p148
      %p150 = scmp.ne.s32.totalorder %s142, %s145
      %p151 = scmp.eq.s32.totalorder %s12, 0
      %p152 = por %p150, %p151
      %p153 = scmp.ne.s32.totalorder %s142, %s145
      %p154 = scmp.eq.s32.totalorder %s17, 3
      %p155 = por %p153, %p154
      %p156 = scmp.ne.s32.totalorder %s145, %s146
      %p157 = scmp.eq.s32.totalorder %s17, 0
      %p158 = por %p156, %p157
      %p159 = scmp.ne.s32.totalorder %s145, %s146
      %p160 = scmp.eq.s32.totalorder %s18, 3
      %p161 = por %p159, %p160
      %p163 = scmp.ne.s32.totalorder %s146, %s162
      %p164 = scmp.eq.s32.totalorder %s18, 0
      %p165 = por %p163, %p164
      %p166 = scmp.eq.s32.totalorder %s19, 0
      %s167 = scalar_select %p166, 0, %s20
      %s168 = scalar_select %p166, 0, %s21
      %p169 = scmp.eq.s32.totalorder %s38, 0
      %s170 = scalar_select %p169, 0, %s34
      %s171 = scalar_select %p169, 0, %s30
      %s172 = ssub.s32 %s167, %s170
      %s173 = ssub.s32 %s168, %s171
      %s174 = sor.u32 %s172, %s173
      %p175 = scmp.eq.s32.totalorder %s174, 0
      %s177 = sadd.s32 %s176, 1
      %s178 = scalar_select %p175, %s176, %s177
      %p181 = pneg %p175
      %p182 = scmp.eq.s32.totalorder %s12, 3
      %p183 = por %p181, %p182
      %p184 = scmp.ne.s32.totalorder %s176, %s179
      %p185 = scmp.eq.s32.totalorder %s12, 0
      %p186 = por %p184, %p185
      %p187 = scmp.ne.s32.totalorder %s176, %s179
      %p188 = scmp.eq.s32.totalorder %s17, 3
      %p189 = por %p187, %p188
      %p190 = scmp.ne.s32.totalorder %s179, %s180
      %p191 = scmp.eq.s32.totalorder %s17, 0
      %p192 = por %p190, %p191
      %p193 = scmp.ne.s32.totalorder %s179, %s180
      %p194 = scmp.eq.s32.totalorder %s18, 3
      %p195 = por %p193, %p194
      %p197 = scmp.ne.s32.totalorder %s180, %s196
      %p198 = scmp.eq.s32.totalorder %s18, 0
      %p199 = por %p197, %p198
      %p200 = scmp.eq.s32.totalorder %s19, 0
      %s201 = scalar_select %p200, 0, %s20
      %s202 = scalar_select %p200, 0, %s21
      %p203 = scmp.eq.s32.totalorder %s38, 0
      %s204 = scalar_select %p203, 0, %s34
      %s205 = scalar_select %p203, 0, %s30
      %s206 = ssub.s32 %s201, %s204
      %s207 = ssub.s32 %s202, %s205
      %s208 = sor.u32 %s206, %s207
      %p209 = scmp.eq.s32.totalorder %s208, 0
      %s211 = sadd.s32 %s210, 1
      %s212 = scalar_select %p209, %s210, %s211
      %p215 = pneg %p209
      %p216 = scmp.eq.s32.totalorder %s12, 3
      %p217 = por %p215, %p216
      %p218 = scmp.ne.s32.totalorder %s210, %s213
      %p219 = scmp.eq.s32.totalorder %s12, 0
      %p220 = por %p218, %p219
      %p221 = scmp.ne.s32.totalorder %s210, %s213
      %p222 = scmp.eq.s32.totalorder %s17, 3
      %p223 = por %p221, %p222
      %p224 = scmp.ne.s32.totalorder %s213, %s214
      %p225 = scmp.eq.s32.totalorder %s17, 0
      %p226 = por %p224, %p225
      %p227 = scmp.ne.s32.totalorder %s213, %s214
      %p228 = scmp.eq.s32.totalorder %s18, 3
      %p229 = por %p227, %p228
      %p231 = scmp.ne.s32.totalorder %s214, %s230
      %p232 = scmp.eq.s32.totalorder %s18, 0
      %p233 = por %p231, %p232
      %p234 = scmp.le.s32.totalorder 1, %s12
      %p235 = scmp.lt.s32.totalorder %s12, 5
      %p236 = pnand %p234, %p235
      %p237 = pneg %p236
      // Predicated region
      $region9: #{fused_forward.1} parent=5 // pred_check
        _
      $region10: #{fused_forward.1} parent=5 // pred_check_branch
        %239 = sbr.rel (%p236) target = $region12
      $region11: #{fused_forward.1} parent=5 // pred_region
        %s240 = ssub.s32 %s12, 1
        // Predicated region
        $region13: #{fused_forward.1} parent=11 // pred_check
          %p241 = pneg %p82
        $region14: #{fused_forward.1} parent=11 // pred_check_branch
          %243 = sbr.rel (%p241) target = $region16
        $region15: #{fused_forward.1} parent=11 // pred_region
          _
        $region16: #{fused_forward.1} parent=11 // pred_fallthru
          _
        // Predicated region
        $region17: #{fused_forward.1} parent=11 // pred_check
          %p244 = pneg %p103
        $region18: #{fused_forward.1} parent=11 // pred_check_branch
          %246 = sbr.rel (%p244) target = $region20
        $region19: #{fused_forward.1} parent=11 // pred_region
          _
        $region20: #{fused_forward.1} parent=11 // pred_fallthru
          _
        // Predicated region
        $region21: #{fused_forward.1} parent=11 // pred_check
          %p247 = pneg %p124
        $region22: #{fused_forward.1} parent=11 // pred_check_branch
          %249 = sbr.rel (%p247) target = $region24
        $region23: #{fused_forward.1} parent=11 // pred_region
          _
        $region24: #{fused_forward.1} parent=11 // pred_fallthru
          _
      $region12: #{fused_forward.1} parent=5 // pred_fallthru
        _
      %p250 = scmp.lt.s32.totalorder %s12, 4
      // Predicated region
      $region25: #{fused_forward.1} parent=5 // pred_check
        %p251 = pneg %p250
      $region26: #{fused_forward.1} parent=5 // pred_check_branch
        %253 = sbr.rel (%p251) target = $region28
      $region27: #{fused_forward.1} parent=5 // pred_region
        // Predicated region
        $region29: #{fused_forward.1} parent=27 // pred_check
          %p254 = pneg %p55
        $region30: #{fused_forward.1} parent=27 // pred_check_branch
          %256 = sbr.rel (%p254) target = $region32
        $region31: #{fused_forward.1} parent=27 // pred_region
          %p257 = scmp.eq.s32.totalorder %s19, 0
          %s258 = scalar_select %p257, %s20, 0
          %p259 = scmp.lt.s32.totalorder %s258, 0
          %s260 = scalar_select %p259, %s258, 0
          %s261 = scalar_lea.vmem %s0, %s260
          %p262 = scmp.eq.s32.totalorder %s19, 0
          %s263 = scalar_select %p262, %s20, 0
        $region32: #{fused_forward.1} parent=27 // pred_fallthru
          _
        // Predicated region
        $region33: #{fused_forward.1} parent=27 // pred_check
          %p264 = pneg %p152
        $region34: #{fused_forward.1} parent=27 // pred_check_branch
          %266 = sbr.rel (%p264) target = $region36
        $region35: #{fused_forward.1} parent=27 // pred_region
          %s267 = sand.u32 %s142, 1
          %s268 = sand.u32 %s142, 1
          %s269 = smul.addr %s268, 1248
          %s270 = scalar_lea.vmem [#allocation7], %s269
          %p271 = scmp.eq.s32.totalorder %s19, 0
          %s272 = scalar_select %p271, %s20, 0
          %s273 = scalar_select %p271, %s21, 1
          %s274 = smul.u32 13, %s273
          %s275 = ssub.s32 25, %s274
          %p276 = scmp.lt.s32.totalorder %s275, 13
          %s277 = scalar_select %p276, %s275, 13
          %s278 = smul.u32 1536, %s277
          %p279 = scmp.ne.s32.totalorder 0, %s278
          %s280 = smul.addr %s272, 300
          %s281 = sadd.s32 %s274, %s280
          %s282 = smul.addr %s281, 8
          %s283 = scalar_lea.vmem %s4, %s282
          %s284 = smul.u32 %s277, 8
          // Predicated region
          $region37: #{fused_forward.1} parent=35 // pred_check
            %p285 = pneg %p279
          $region38: #{fused_forward.1} parent=35 // pred_check_branch
            %287 = sbr.rel (%p285) target = $region40
          $region39: #{fused_forward.1} parent=35 // pred_region
            %p288 = scmp.lt.u32.totalorder %s284, 8
            %p289 = pneg %p288
            // Predicated region
            $region41: #{fused_forward.1} parent=39 // pred_check
              _
            $region42: #{fused_forward.1} parent=39 // pred_check_branch
              %291 = sbr.rel (%p288) target = $region44
            $region43: #{fused_forward.1} parent=39 // pred_region
              %s328 = sand.u32 %s284, 7
              %p329 = scmp.eq.s32.totalorder %s328, 0
              // Predicated region
              $region56: #{fused_forward.1} parent=43 // pred_check
                %p330 = pneg %p329
              $region57: #{fused_forward.1} parent=43 // pred_check_branch
                %332 = sbr.rel (%p330) target = $region59
              $region58: #{fused_forward.1} parent=43 // pred_region
                %s333 = sshrl.u32 %s284, 3
                %s334 = sshrl.u32 %s333, 3
                // While loop
                $region60: #{fused_forward.1} parent=58 // loop_pre_header
                  _
                $region61: #{fused_forward.1} parent=58 // loop_header
                  %s338 = sphi 0, %s340
                  %p339 = scmp.ge.s32.totalorder %s338, %s334
                  %s343 = sphi 0, %s540
                  %s344 = sphi %s283, %s543
                  %s345 = sphi %s270, %s544
                $region62: #{fused_forward.1} parent=58 // loop_header_branch
                  %342 = sbr.rel (%p339) target = $region66
                $region63: #{fused_forward.1} parent=58 // loop_body
                  %v346 = vld [vmem:[%s344] sm:$0xff]
                  %347 = vst [vmem:[%s345] sm:$0xff] %v346
                  %v348 = vld [vmem:[%s344 + $0x8] sm:$0xff]
                  %349 = vst [vmem:[%s345 + $0x8] sm:$0xff] %v348
                  %v350 = vld [vmem:[%s344 + $0x10] sm:$0xff]
                  %351 = vst [vmem:[%s345 + $0x10] sm:$0xff] %v350
                  %v352 = vld [vmem:[%s344 + $0x18] sm:$0xff]
                  %353 = vst [vmem:[%s345 + $0x18] sm:$0xff] %v352
                  %v354 = vld [vmem:[%s344 + $0x20] sm:$0xff]
                  %355 = vst [vmem:[%s345 + $0x20] sm:$0xff] %v354
                  %v356 = vld [vmem:[%s344 + $0x28] sm:$0xff]
                  %357 = vst [vmem:[%s345 + $0x28] sm:$0xff] %v356
                  %v358 = vld [vmem:[%s344 + $0x30] sm:$0xff]
                  %359 = vst [vmem:[%s345 + $0x30] sm:$0xff] %v358
                  %v360 = vld [vmem:[%s344 + $0x38] sm:$0xff]
                  %361 = vst [vmem:[%s345 + $0x38] sm:$0xff] %v360
                  %v362 = vld [vmem:[%s344 + $0xc8] sm:$0xff]
                  %363 = vst [vmem:[%s345 + $0x68] sm:$0xff] %v362
                  %v364 = vld [vmem:[%s344 + $0xd0] sm:$0xff]
                  %365 = vst [vmem:[%s345 + $0x70] sm:$0xff] %v364
                  %v366 = vld [vmem:[%s344 + $0xd8] sm:$0xff]
                  %367 = vst [vmem:[%s345 + $0x78] sm:$0xff] %v366
                  %v368 = vld [vmem:[%s344 + $0xe0] sm:$0xff]
                  %369 = vst [vmem:[%s345 + $0x80] sm:$0xff] %v368
                  %v370 = vld [vmem:[%s344 + $0xe8] sm:$0xff]
                  %371 = vst [vmem:[%s345 + $0x88] sm:$0xff] %v370
                  %v372 = vld [vmem:[%s344 + $0xf0] sm:$0xff]
                  %373 = vst [vmem:[%s345 + $0x90] sm:$0xff] %v372
                  %v374 = vld [vmem:[%s344 + $0xf8] sm:$0xff]
                  %375 = vst [vmem:[%s345 + $0x98] sm:$0xff] %v374
                  %v376 = vld [vmem:[%s344 + $0x100] sm:$0xff]
                  %377 = vst [vmem:[%s345 + $0xa0] sm:$0xff] %v376
                  %v378 = vld [vmem:[%s344 + $0x190] sm:$0xff]
                  %379 = vst [vmem:[%s345 + $0xd0] sm:$0xff] %v378
                  %v380 = vld [vmem:[%s344 + $0x198] sm:$0xff]
                  %381 = vst [vmem:[%s345 + $0xd8] sm:$0xff] %v380
                  %v382 = vld [vmem:[%s344 + $0x1a0] sm:$0xff]
                  %383 = vst [vmem:[%s345 + $0xe0] sm:$0xff] %v382
                  %v384 = vld [vmem:[%s344 + $0x1a8] sm:$0xff]
                  %385 = vst [vmem:[%s345 + $0xe8] sm:$0xff] %v384
                  %v386 = vld [vmem:[%s344 + $0x1b0] sm:$0xff]
                  %387 = vst [vmem:[%s345 + $0xf0] sm:$0xff] %v386
                  %v388 = vld [vmem:[%s344 + $0x1b8] sm:$0xff]
                  %389 = vst [vmem:[%s345 + $0xf8] sm:$0xff] %v388
                  %v390 = vld [vmem:[%s344 + $0x1c0] sm:$0xff]
                  %391 = vst [vmem:[%s345 + $0x100] sm:$0xff] %v390
                  %v392 = vld [vmem:[%s344 + $0x1c8] sm:$0xff]
                  %393 = vst [vmem:[%s345 + $0x108] sm:$0xff] %v392
                  %v394 = vld [vmem:[%s344 + $0x258] sm:$0xff]
                  %395 = vst [vmem:[%s345 + $0x138] sm:$0xff] %v394
                  %v396 = vld [vmem:[%s344 + $0x260] sm:$0xff]
                  %397 = vst [vmem:[%s345 + $0x140] sm:$0xff] %v396
                  %v398 = vld [vmem:[%s344 + $0x268] sm:$0xff]
                  %399 = vst [vmem:[%s345 + $0x148] sm:$0xff] %v398
                  %v400 = vld [vmem:[%s344 + $0x270] sm:$0xff]
                  %401 = vst [vmem:[%s345 + $0x150] sm:$0xff] %v400
                  %v402 = vld [vmem:[%s344 + $0x278] sm:$0xff]
                  %403 = vst [vmem:[%s345 + $0x158] sm:$0xff] %v402
                  %v404 = vld [vmem:[%s344 + $0x280] sm:$0xff]
                  %405 = vst [vmem:[%s345 + $0x160] sm:$0xff] %v404
                  %v406 = vld [vmem:[%s344 + $0x288] sm:$0xff]
                  %407 = vst [vmem:[%s345 + $0x168] sm:$0xff] %v406
                  %v408 = vld [vmem:[%s344 + $0x290] sm:$0xff]
                  %409 = vst [vmem:[%s345 + $0x170] sm:$0xff] %v408
                  %v410 = vld [vmem:[%s344 + $0x320] sm:$0xff]
                  %411 = vst [vmem:[%s345 + $0x1a0] sm:$0xff] %v410
                  %v412 = vld [vmem:[%s344 + $0x328] sm:$0xff]
                  %413 = vst [vmem:[%s345 + $0x1a8] sm:$0xff] %v412
                  %v414 = vld [vmem:[%s344 + $0x330] sm:$0xff]
                  %415 = vst [vmem:[%s345 + $0x1b0] sm:$0xff] %v414
                  %v416 = vld [vmem:[%s344 + $0x338] sm:$0xff]
                  %417 = vst [vmem:[%s345 + $0x1b8] sm:$0xff] %v416
                  %v418 = vld [vmem:[%s344 + $0x340] sm:$0xff]
                  %419 = vst [vmem:[%s345 + $0x1c0] sm:$0xff] %v418
                  %v420 = vld [vmem:[%s344 + $0x348] sm:$0xff]
                  %421 = vst [vmem:[%s345 + $0x1c8] sm:$0xff] %v420
                  %v422 = vld [vmem:[%s344 + $0x350] sm:$0xff]
                  %423 = vst [vmem:[%s345 + $0x1d0] sm:$0xff] %v422
                  %v424 = vld [vmem:[%s344 + $0x358] sm:$0xff]
                  %425 = vst [vmem:[%s345 + $0x1d8] sm:$0xff] %v424
                  %v426 = vld [vmem:[%s344 + $0x3e8] sm:$0xff]
                  %427 = vst [vmem:[%s345 + $0x208] sm:$0xff] %v426
                  %v428 = vld [vmem:[%s344 + $0x3f0] sm:$0xff]
                  %429 = vst [vmem:[%s345 + $0x210] sm:$0xff] %v428
                  %v430 = vld [vmem:[%s344 + $0x3f8] sm:$0xff]
                  %431 = vst [vmem:[%s345 + $0x218] sm:$0xff] %v430
                  %v432 = vld [vmem:[%s344 + $0x400] sm:$0xff]
                  %433 = vst [vmem:[%s345 + $0x220] sm:$0xff] %v432
                  %v434 = vld [vmem:[%s344 + $0x408] sm:$0xff]
                  %435 = vst [vmem:[%s345 + $0x228] sm:$0xff] %v434
                  %v436 = vld [vmem:[%s344 + $0x410] sm:$0xff]
                  %437 = vst [vmem:[%s345 + $0x230] sm:$0xff] %v436
                  %v438 = vld [vmem:[%s344 + $0x418] sm:$0xff]
                  %439 = vst [vmem:[%s345 + $0x238] sm:$0xff] %v438
                  %v440 = vld [vmem:[%s344 + $0x420] sm:$0xff]
                  %441 = vst [vmem:[%s345 + $0x240] sm:$0xff] %v440
                  %v442 = vld [vmem:[%s344 + $0x4b0] sm:$0xff]
                  %443 = vst [vmem:[%s345 + $0x270] sm:$0xff] %v442
                  %v444 = vld [vmem:[%s344 + $0x4b8] sm:$0xff]
                  %445 = vst [vmem:[%s345 + $0x278] sm:$0xff] %v444
                  %v446 = vld [vmem:[%s344 + $0x4c0] sm:$0xff]
                  %447 = vst [vmem:[%s345 + $0x280] sm:$0xff] %v446
                  %v448 = vld [vmem:[%s344 + $0x4c8] sm:$0xff]
                  %449 = vst [vmem:[%s345 + $0x288] sm:$0xff] %v448
                  %v450 = vld [vmem:[%s344 + $0x4d0] sm:$0xff]
                  %451 = vst [vmem:[%s345 + $0x290] sm:$0xff] %v450
                  %v452 = vld [vmem:[%s344 + $0x4d8] sm:$0xff]
                  %453 = vst [vmem:[%s345 + $0x298] sm:$0xff] %v452
                  %v454 = vld [vmem:[%s344 + $0x4e0] sm:$0xff]
                  %455 = vst [vmem:[%s345 + $0x2a0] sm:$0xff] %v454
                  %v456 = vld [vmem:[%s344 + $0x4e8] sm:$0xff]
                  %457 = vst [vmem:[%s345 + $0x2a8] sm:$0xff] %v456
                  %v458 = vld [vmem:[%s344 + $0x578] sm:$0xff]
                  %459 = vst [vmem:[%s345 + $0x2d8] sm:$0xff] %v458
                  %v460 = vld [vmem:[%s344 + $0x580] sm:$0xff]
                  %461 = vst [vmem:[%s345 + $0x2e0] sm:$0xff] %v460
                  %v462 = vld [vmem:[%s344 + $0x588] sm:$0xff]
                  %463 = vst [vmem:[%s345 + $0x2e8] sm:$0xff] %v462
                  %v464 = vld [vmem:[%s344 + $0x590] sm:$0xff]
                  %465 = vst [vmem:[%s345 + $0x2f0] sm:$0xff] %v464
                  %v466 = vld [vmem:[%s344 + $0x598] sm:$0xff]
                  %467 = vst [vmem:[%s345 + $0x2f8] sm:$0xff] %v466
                  %v468 = vld [vmem:[%s344 + $0x5a0] sm:$0xff]
                  %469 = vst [vmem:[%s345 + $0x300] sm:$0xff] %v468
                  %v470 = vld [vmem:[%s344 + $0x5a8] sm:$0xff]
                  %471 = vst [vmem:[%s345 + $0x308] sm:$0xff] %v470
                  %v472 = vld [vmem:[%s344 + $0x5b0] sm:$0xff]
                  %473 = vst [vmem:[%s345 + $0x310] sm:$0xff] %v472
                  %v474 = vld [vmem:[%s344 + $0x640] sm:$0xff]
                  %475 = vst [vmem:[%s345 + $0x340] sm:$0xff] %v474
                  %v476 = vld [vmem:[%s344 + $0x648] sm:$0xff]
                  %477 = vst [vmem:[%s345 + $0x348] sm:$0xff] %v476
                  %v478 = vld [vmem:[%s344 + $0x650] sm:$0xff]
                  %479 = vst [vmem:[%s345 + $0x350] sm:$0xff] %v478
                  %v480 = vld [vmem:[%s344 + $0x658] sm:$0xff]
                  %481 = vst [vmem:[%s345 + $0x358] sm:$0xff] %v480
                  %v482 = vld [vmem:[%s344 + $0x660] sm:$0xff]
                  %483 = vst [vmem:[%s345 + $0x360] sm:$0xff] %v482
                  %v484 = vld [vmem:[%s344 + $0x668] sm:$0xff]
                  %485 = vst [vmem:[%s345 + $0x368] sm:$0xff] %v484
                  %v486 = vld [vmem:[%s344 + $0x670] sm:$0xff]
                  %487 = vst [vmem:[%s345 + $0x370] sm:$0xff] %v486
                  %v488 = vld [vmem:[%s344 + $0x678] sm:$0xff]
                  %489 = vst [vmem:[%s345 + $0x378] sm:$0xff] %v488
                  %v490 = vld [vmem:[%s344 + $0x708] sm:$0xff]
                  %491 = vst [vmem:[%s345 + $0x3a8] sm:$0xff] %v490
                  %v492 = vld [vmem:[%s344 + $0x710] sm:$0xff]
                  %493 = vst [vmem:[%s345 + $0x3b0] sm:$0xff] %v492
                  %v494 = vld [vmem:[%s344 + $0x718] sm:$0xff]
                  %495 = vst [vmem:[%s345 + $0x3b8] sm:$0xff] %v494
                  %v496 = vld [vmem:[%s344 + $0x720] sm:$0xff]
                  %497 = vst [vmem:[%s345 + $0x3c0] sm:$0xff] %v496
                  %v498 = vld [vmem:[%s344 + $0x728] sm:$0xff]
                  %499 = vst [vmem:[%s345 + $0x3c8] sm:$0xff] %v498
                  %v500 = vld [vmem:[%s344 + $0x730] sm:$0xff]
                  %501 = vst [vmem:[%s345 + $0x3d0] sm:$0xff] %v500
                  %v502 = vld [vmem:[%s344 + $0x738] sm:$0xff]
                  %503 = vst [vmem:[%s345 + $0x3d8] sm:$0xff] %v502
                  %v504 = vld [vmem:[%s344 + $0x740] sm:$0xff]
                  %505 = vst [vmem:[%s345 + $0x3e0] sm:$0xff] %v504
                  %v506 = vld [vmem:[%s344 + $0x7d0] sm:$0xff]
                  %507 = vst [vmem:[%s345 + $0x410] sm:$0xff] %v506
                  %v508 = vld [vmem:[%s344 + $0x7d8] sm:$0xff]
                  %509 = vst [vmem:[%s345 + $0x418] sm:$0xff] %v508
                  %v510 = vld [vmem:[%s344 + $0x7e0] sm:$0xff]
                  %511 = vst [vmem:[%s345 + $0x420] sm:$0xff] %v510
                  %v512 = vld [vmem:[%s344 + $0x7e8] sm:$0xff]
                  %513 = vst [vmem:[%s345 + $0x428] sm:$0xff] %v512
                  %v514 = vld [vmem:[%s344 + $0x7f0] sm:$0xff]
                  %515 = vst [vmem:[%s345 + $0x430] sm:$0xff] %v514
                  %v516 = vld [vmem:[%s344 + $0x7f8] sm:$0xff]
                  %517 = vst [vmem:[%s345 + $0x438] sm:$0xff] %v516
                  %v518 = vld [vmem:[%s344 + $0x800] sm:$0xff]
                  %519 = vst [vmem:[%s345 + $0x440] sm:$0xff] %v518
                  %v520 = vld [vmem:[%s344 + $0x808] sm:$0xff]
                  %521 = vst [vmem:[%s345 + $0x448] sm:$0xff] %v520
                  %v522 = vld [vmem:[%s344 + $0x898] sm:$0xff]
                  %523 = vst [vmem:[%s345 + $0x478] sm:$0xff] %v522
                  %v524 = vld [vmem:[%s344 + $0x8a0] sm:$0xff]
                  %525 = vst [vmem:[%s345 + $0x480] sm:$0xff] %v524
                  %v526 = vld [vmem:[%s344 + $0x8a8] sm:$0xff]
                  %527 = vst [vmem:[%s345 + $0x488] sm:$0xff] %v526
                  %v528 = vld [vmem:[%s344 + $0x8b0] sm:$0xff]
                  %529 = vst [vmem:[%s345 + $0x490] sm:$0xff] %v528
                  %v530 = vld [vmem:[%s344 + $0x8b8] sm:$0xff]
                  %531 = vst [vmem:[%s345 + $0x498] sm:$0xff] %v530
                  %v532 = vld [vmem:[%s344 + $0x8c0] sm:$0xff]
                  %533 = vst [vmem:[%s345 + $0x4a0] sm:$0xff] %v532
                  %v534 = vld [vmem:[%s344 + $0x8c8] sm:$0xff]
                  %535 = vst [vmem:[%s345 + $0x4a8] sm:$0xff] %v534
                  %v536 = vld [vmem:[%s344 + $0x8d0] sm:$0xff]
                  %537 = vst [vmem:[%s345 + $0x4b0] sm:$0xff] %v536
                  %s538 = sadd.s32 1, %s343
                  %p539 = scmp.ge.s32.totalorder %s538, %s334
                  %s540 = scalar_select %p539, 0, %s538
                  %s541 = smul.u32 %s540, 64
                  %s542 = smul.u32 %s540, 64
                  %s543 = scalar_lea.vmem %s283, %s541
                  %s544 = scalar_lea.vmem %s270, %s542 [#allocation7]
                $region64: #{fused_forward.1} parent=58 // loop_footer
                  %s340 = sadd.s32 %s338, 1
                $region65: #{fused_forward.1} parent=58 // loop_footer_branch
                  %337 = sbr.rel target = $region61
                $region66: #{fused_forward.1} parent=58 // loop_exit
                  _
                %s545 = sshrl.u32 %s333, 3
                %s546 = sand.u32 %s333, 7
                %s547 = smul.u32 %s545, 8
                %s548 = smul.u32 128, %s547
                %s549 = sshra.s32 %s548, 4
                %s550 = scalar_lea.vmem %s283, %s549
                %s551 = smul.u32 128, %s547
                %s552 = sshra.s32 %s551, 4
                %s553 = scalar_lea.vmem %s270, %s552 [#allocation7]
                // While loop
                $region67: #{fused_forward.1} parent=58 // loop_pre_header
                  _
                $region68: #{fused_forward.1} parent=58 // loop_header
                  %s557 = sphi 0, %s559
                  %p558 = scmp.ge.s32.totalorder %s557, %s546
                  %s562 = sphi 0, %s591
                  %s563 = sphi %s550, %s594
                  %s564 = sphi %s553, %s595
                $region69: #{fused_forward.1} parent=58 // loop_header_branch
                  %561 = sbr.rel (%p558) target = $region73
                $region70: #{fused_forward.1} parent=58 // loop_body
                  %v565 = vld [vmem:[%s563] sm:$0xff]
                  %566 = vst [vmem:[%s564] sm:$0xff] %v565
                  %v567 = vld [vmem:[%s563 + $0xc8] sm:$0xff]
                  %568 = vst [vmem:[%s564 + $0x68] sm:$0xff] %v567
                  %v569 = vld [vmem:[%s563 + $0x190] sm:$0xff]
                  %570 = vst [vmem:[%s564 + $0xd0] sm:$0xff] %v569
                  %v571 = vld [vmem:[%s563 + $0x258] sm:$0xff]
                  %572 = vst [vmem:[%s564 + $0x138] sm:$0xff] %v571
                  %v573 = vld [vmem:[%s563 + $0x320] sm:$0xff]
                  %574 = vst [vmem:[%s564 + $0x1a0] sm:$0xff] %v573
                  %v575 = vld [vmem:[%s563 + $0x3e8] sm:$0xff]
                  %576 = vst [vmem:[%s564 + $0x208] sm:$0xff] %v575
                  %v577 = vld [vmem:[%s563 + $0x4b0] sm:$0xff]
                  %578 = vst [vmem:[%s564 + $0x270] sm:$0xff] %v577
                  %v579 = vld [vmem:[%s563 + $0x578] sm:$0xff]
                  %580 = vst [vmem:[%s564 + $0x2d8] sm:$0xff] %v579
                  %v581 = vld [vmem:[%s563 + $0x640] sm:$0xff]
                  %582 = vst [vmem:[%s564 + $0x340] sm:$0xff] %v581
                  %v583 = vld [vmem:[%s563 + $0x708] sm:$0xff]
                  %584 = vst [vmem:[%s564 + $0x3a8] sm:$0xff] %v583
                  %v585 = vld [vmem:[%s563 + $0x7d0] sm:$0xff]
                  %586 = vst [vmem:[%s564 + $0x410] sm:$0xff] %v585
                  %v587 = vld [vmem:[%s563 + $0x898] sm:$0xff]
                  %588 = vst [vmem:[%s564 + $0x478] sm:$0xff] %v587
                  %s589 = sadd.s32 1, %s562
                  %p590 = scmp.ge.s32.totalorder %s589, %s546
                  %s591 = scalar_select %p590, 0, %s589
                  %s592 = smul.u32 %s591, 8
                  %s593 = smul.u32 %s591, 8
                  %s594 = scalar_lea.vmem %s550, %s592
                  %s595 = scalar_lea.vmem %s553, %s593 [#allocation7]
                $region71: #{fused_forward.1} parent=58 // loop_footer
                  %s559 = sadd.s32 %s557, 1
                $region72: #{fused_forward.1} parent=58 // loop_footer_branch
                  %556 = sbr.rel target = $region68
                $region73: #{fused_forward.1} parent=58 // loop_exit
                  _
              $region59: #{fused_forward.1} parent=43 // pred_fallthru
                _
              %p596 = pneg %p329
              // Predicated region
              $region74: #{fused_forward.1} parent=43 // pred_check
                _
              $region75: #{fused_forward.1} parent=43 // pred_check_branch
                %598 = sbr.rel (%p329) target = $region77
              $region76: #{fused_forward.1} parent=43 // pred_region
                %s599 = sand.u32 %s284, 7
                %s600 = ssub.s32 %s284, %s599
                %s601 = scalar_lea.vmem %s283, %s600
                %s602 = ssub.s32 %s284, %s599
                %s603 = scalar_lea.vmem %s270, %s602 [#allocation7]
                %s604 = sshrl.u32 %s284, 3
                %s605 = sshrl.u32 %s604, 3
                // While loop
                $region78: #{fused_forward.1} parent=76 // loop_pre_header
                  _
                $region79: #{fused_forward.1} parent=76 // loop_header
                  %s609 = sphi 0, %s611
                  %p610 = scmp.ge.s32.totalorder %s609, %s605
                  %s614 = sphi 0, %s811
                  %s615 = sphi %s283, %s814
                  %s616 = sphi %s270, %s815
                $region80: #{fused_forward.1} parent=76 // loop_header_branch
                  %613 = sbr.rel (%p610) target = $region84
                $region81: #{fused_forward.1} parent=76 // loop_body
                  %v617 = vld [vmem:[%s615] sm:$0xff]
                  %618 = vst [vmem:[%s616] sm:$0xff] %v617
                  %v619 = vld [vmem:[%s615 + $0x8] sm:$0xff]
                  %620 = vst [vmem:[%s616 + $0x8] sm:$0xff] %v619
                  %v621 = vld [vmem:[%s615 + $0x10] sm:$0xff]
                  %622 = vst [vmem:[%s616 + $0x10] sm:$0xff] %v621
                  %v623 = vld [vmem:[%s615 + $0x18] sm:$0xff]
                  %624 = vst [vmem:[%s616 + $0x18] sm:$0xff] %v623
                  %v625 = vld [vmem:[%s615 + $0x20] sm:$0xff]
                  %626 = vst [vmem:[%s616 + $0x20] sm:$0xff] %v625
                  %v627 = vld [vmem:[%s615 + $0x28] sm:$0xff]
                  %628 = vst [vmem:[%s616 + $0x28] sm:$0xff] %v627
                  %v629 = vld [vmem:[%s615 + $0x30] sm:$0xff]
                  %630 = vst [vmem:[%s616 + $0x30] sm:$0xff] %v629
                  %v631 = vld [vmem:[%s615 + $0x38] sm:$0xff]
                  %632 = vst [vmem:[%s616 + $0x38] sm:$0xff] %v631
                  %v633 = vld [vmem:[%s615 + $0xc8] sm:$0xff]
                  %634 = vst [vmem:[%s616 + $0x68] sm:$0xff] %v633
                  %v635 = vld [vmem:[%s615 + $0xd0] sm:$0xff]
                  %636 = vst [vmem:[%s616 + $0x70] sm:$0xff] %v635
                  %v637 = vld [vmem:[%s615 + $0xd8] sm:$0xff]
                  %638 = vst [vmem:[%s616 + $0x78] sm:$0xff] %v637
                  %v639 = vld [vmem:[%s615 + $0xe0] sm:$0xff]
                  %640 = vst [vmem:[%s616 + $0x80] sm:$0xff] %v639
                  %v641 = vld [vmem:[%s615 + $0xe8] sm:$0xff]
                  %642 = vst [vmem:[%s616 + $0x88] sm:$0xff] %v641
                  %v643 = vld [vmem:[%s615 + $0xf0] sm:$0xff]
                  %644 = vst [vmem:[%s616 + $0x90] sm:$0xff] %v643
                  %v645 = vld [vmem:[%s615 + $0xf8] sm:$0xff]
                  %646 = vst [vmem:[%s616 + $0x98] sm:$0xff] %v645
                  %v647 = vld [vmem:[%s615 + $0x100] sm:$0xff]
                  %648 = vst [vmem:[%s616 + $0xa0] sm:$0xff] %v647
                  %v649 = vld [vmem:[%s615 + $0x190] sm:$0xff]
                  %650 = vst [vmem:[%s616 + $0xd0] sm:$0xff] %v649
                  %v651 = vld [vmem:[%s615 + $0x198] sm:$0xff]
                  %652 = vst [vmem:[%s616 + $0xd8] sm:$0xff] %v651
                  %v653 = vld [vmem:[%s615 + $0x1a0] sm:$0xff]
                  %654 = vst [vmem:[%s616 + $0xe0] sm:$0xff] %v653
                  %v655 = vld [vmem:[%s615 + $0x1a8] sm:$0xff]
                  %656 = vst [vmem:[%s616 + $0xe8] sm:$0xff] %v655
                  %v657 = vld [vmem:[%s615 + $0x1b0] sm:$0xff]
                  %658 = vst [vmem:[%s616 + $0xf0] sm:$0xff] %v657
                  %v659 = vld [vmem:[%s615 + $0x1b8] sm:$0xff]
                  %660 = vst [vmem:[%s616 + $0xf8] sm:$0xff] %v659
                  %v661 = vld [vmem:[%s615 + $0x1c0] sm:$0xff]
                  %662 = vst [vmem:[%s616 + $0x100] sm:$0xff] %v661
                  %v663 = vld [vmem:[%s615 + $0x1c8] sm:$0xff]
                  %664 = vst [vmem:[%s616 + $0x108] sm:$0xff] %v663
                  %v665 = vld [vmem:[%s615 + $0x258] sm:$0xff]
                  %666 = vst [vmem:[%s616 + $0x138] sm:$0xff] %v665
                  %v667 = vld [vmem:[%s615 + $0x260] sm:$0xff]
                  %668 = vst [vmem:[%s616 + $0x140] sm:$0xff] %v667
                  %v669 = vld [vmem:[%s615 + $0x268] sm:$0xff]
                  %670 = vst [vmem:[%s616 + $0x148] sm:$0xff] %v669
                  %v671 = vld [vmem:[%s615 + $0x270] sm:$0xff]
                  %672 = vst [vmem:[%s616 + $0x150] sm:$0xff] %v671
                  %v673 = vld [vmem:[%s615 + $0x278] sm:$0xff]
                  %674 = vst [vmem:[%s616 + $0x158] sm:$0xff] %v673
                  %v675 = vld [vmem:[%s615 + $0x280] sm:$0xff]
                  %676 = vst [vmem:[%s616 + $0x160] sm:$0xff] %v675
                  %v677 = vld [vmem:[%s615 + $0x288] sm:$0xff]
                  %678 = vst [vmem:[%s616 + $0x168] sm:$0xff] %v677
                  %v679 = vld [vmem:[%s615 + $0x290] sm:$0xff]
                  %680 = vst [vmem:[%s616 + $0x170] sm:$0xff] %v679
                  %v681 = vld [vmem:[%s615 + $0x320] sm:$0xff]
                  %682 = vst [vmem:[%s616 + $0x1a0] sm:$0xff] %v681
                  %v683 = vld [vmem:[%s615 + $0x328] sm:$0xff]
                  %684 = vst [vmem:[%s616 + $0x1a8] sm:$0xff] %v683
                  %v685 = vld [vmem:[%s615 + $0x330] sm:$0xff]
                  %686 = vst [vmem:[%s616 + $0x1b0] sm:$0xff] %v685
                  %v687 = vld [vmem:[%s615 + $0x338] sm:$0xff]
                  %688 = vst [vmem:[%s616 + $0x1b8] sm:$0xff] %v687
                  %v689 = vld [vmem:[%s615 + $0x340] sm:$0xff]
                  %690 = vst [vmem:[%s616 + $0x1c0] sm:$0xff] %v689
                  %v691 = vld [vmem:[%s615 + $0x348] sm:$0xff]
                  %692 = vst [vmem:[%s616 + $0x1c8] sm:$0xff] %v691
                  %v693 = vld [vmem:[%s615 + $0x350] sm:$0xff]
                  %694 = vst [vmem:[%s616 + $0x1d0] sm:$0xff] %v693
                  %v695 = vld [vmem:[%s615 + $0x358] sm:$0xff]
                  %696 = vst [vmem:[%s616 + $0x1d8] sm:$0xff] %v695
                  %v697 = vld [vmem:[%s615 + $0x3e8] sm:$0xff]
                  %698 = vst [vmem:[%s616 + $0x208] sm:$0xff] %v697
                  %v699 = vld [vmem:[%s615 + $0x3f0] sm:$0xff]
                  %700 = vst [vmem:[%s616 + $0x210] sm:$0xff] %v699
                  %v701 = vld [vmem:[%s615 + $0x3f8] sm:$0xff]
                  %702 = vst [vmem:[%s616 + $0x218] sm:$0xff] %v701
                  %v703 = vld [vmem:[%s615 + $0x400] sm:$0xff]
                  %704 = vst [vmem:[%s616 + $0x220] sm:$0xff] %v703
                  %v705 = vld [vmem:[%s615 + $0x408] sm:$0xff]
                  %706 = vst [vmem:[%s616 + $0x228] sm:$0xff] %v705
                  %v707 = vld [vmem:[%s615 + $0x410] sm:$0xff]
                  %708 = vst [vmem:[%s616 + $0x230] sm:$0xff] %v707
                  %v709 = vld [vmem:[%s615 + $0x418] sm:$0xff]
                  %710 = vst [vmem:[%s616 + $0x238] sm:$0xff] %v709
                  %v711 = vld [vmem:[%s615 + $0x420] sm:$0xff]
                  %712 = vst [vmem:[%s616 + $0x240] sm:$0xff] %v711
                  %v713 = vld [vmem:[%s615 + $0x4b0] sm:$0xff]
                  %714 = vst [vmem:[%s616 + $0x270] sm:$0xff] %v713
                  %v715 = vld [vmem:[%s615 + $0x4b8] sm:$0xff]
                  %716 = vst [vmem:[%s616 + $0x278] sm:$0xff] %v715
                  %v717 = vld [vmem:[%s615 + $0x4c0] sm:$0xff]
                  %718 = vst [vmem:[%s616 + $0x280] sm:$0xff] %v717
                  %v719 = vld [vmem:[%s615 + $0x4c8] sm:$0xff]
                  %720 = vst [vmem:[%s616 + $0x288] sm:$0xff] %v719
                  %v721 = vld [vmem:[%s615 + $0x4d0] sm:$0xff]
                  %722 = vst [vmem:[%s616 + $0x290] sm:$0xff] %v721
                  %v723 = vld [vmem:[%s615 + $0x4d8] sm:$0xff]
                  %724 = vst [vmem:[%s616 + $0x298] sm:$0xff] %v723
                  %v725 = vld [vmem:[%s615 + $0x4e0] sm:$0xff]
                  %726 = vst [vmem:[%s616 + $0x2a0] sm:$0xff] %v725
                  %v727 = vld [vmem:[%s615 + $0x4e8] sm:$0xff]
                  %728 = vst [vmem:[%s616 + $0x2a8] sm:$0xff] %v727
                  %v729 = vld [vmem:[%s615 + $0x578] sm:$0xff]
                  %730 = vst [vmem:[%s616 + $0x2d8] sm:$0xff] %v729
                  %v731 = vld [vmem:[%s615 + $0x580] sm:$0xff]
                  %732 = vst [vmem:[%s616 + $0x2e0] sm:$0xff] %v731
                  %v733 = vld [vmem:[%s615 + $0x588] sm:$0xff]
                  %734 = vst [vmem:[%s616 + $0x2e8] sm:$0xff] %v733
                  %v735 = vld [vmem:[%s615 + $0x590] sm:$0xff]
                  %736 = vst [vmem:[%s616 + $0x2f0] sm:$0xff] %v735
                  %v737 = vld [vmem:[%s615 + $0x598] sm:$0xff]
                  %738 = vst [vmem:[%s616 + $0x2f8] sm:$0xff] %v737
                  %v739 = vld [vmem:[%s615 + $0x5a0] sm:$0xff]
                  %740 = vst [vmem:[%s616 + $0x300] sm:$0xff] %v739
                  %v741 = vld [vmem:[%s615 + $0x5a8] sm:$0xff]
                  %742 = vst [vmem:[%s616 + $0x308] sm:$0xff] %v741
                  %v743 = vld [vmem:[%s615 + $0x5b0] sm:$0xff]
                  %744 = vst [vmem:[%s616 + $0x310] sm:$0xff] %v743
                  %v745 = vld [vmem:[%s615 + $0x640] sm:$0xff]
                  %746 = vst [vmem:[%s616 + $0x340] sm:$0xff] %v745
                  %v747 = vld [vmem:[%s615 + $0x648] sm:$0xff]
                  %748 = vst [vmem:[%s616 + $0x348] sm:$0xff] %v747
                  %v749 = vld [vmem:[%s615 + $0x650] sm:$0xff]
                  %750 = vst [vmem:[%s616 + $0x350] sm:$0xff] %v749
                  %v751 = vld [vmem:[%s615 + $0x658] sm:$0xff]
                  %752 = vst [vmem:[%s616 + $0x358] sm:$0xff] %v751
                  %v753 = vld [vmem:[%s615 + $0x660] sm:$0xff]
                  %754 = vst [vmem:[%s616 + $0x360] sm:$0xff] %v753
                  %v755 = vld [vmem:[%s615 + $0x668] sm:$0xff]
                  %756 = vst [vmem:[%s616 + $0x368] sm:$0xff] %v755
                  %v757 = vld [vmem:[%s615 + $0x670] sm:$0xff]
                  %758 = vst [vmem:[%s616 + $0x370] sm:$0xff] %v757
                  %v759 = vld [vmem:[%s615 + $0x678] sm:$0xff]
                  %760 = vst [vmem:[%s616 + $0x378] sm:$0xff] %v759
                  %v761 = vld [vmem:[%s615 + $0x708] sm:$0xff]
                  %762 = vst [vmem:[%s616 + $0x3a8] sm:$0xff] %v761
                  %v763 = vld [vmem:[%s615 + $0x710] sm:$0xff]
                  %764 = vst [vmem:[%s616 + $0x3b0] sm:$0xff] %v763
                  %v765 = vld [vmem:[%s615 + $0x718] sm:$0xff]
                  %766 = vst [vmem:[%s616 + $0x3b8] sm:$0xff] %v765
                  %v767 = vld [vmem:[%s615 + $0x720] sm:$0xff]
                  %768 = vst [vmem:[%s616 + $0x3c0] sm:$0xff] %v767
                  %v769 = vld [vmem:[%s615 + $0x728] sm:$0xff]
                  %770 = vst [vmem:[%s616 + $0x3c8] sm:$0xff] %v769
                  %v771 = vld [vmem:[%s615 + $0x730] sm:$0xff]
                  %772 = vst [vmem:[%s616 + $0x3d0] sm:$0xff] %v771
                  %v773 = vld [vmem:[%s615 + $0x738] sm:$0xff]
                  %774 = vst [vmem:[%s616 + $0x3d8] sm:$0xff] %v773
                  %v775 = vld [vmem:[%s615 + $0x740] sm:$0xff]
                  %776 = vst [vmem:[%s616 + $0x3e0] sm:$0xff] %v775
                  %v777 = vld [vmem:[%s615 + $0x7d0] sm:$0xff]
                  %778 = vst [vmem:[%s616 + $0x410] sm:$0xff] %v777
                  %v779 = vld [vmem:[%s615 + $0x7d8] sm:$0xff]
                  %780 = vst [vmem:[%s616 + $0x418] sm:$0xff] %v779
                  %v781 = vld [vmem:[%s615 + $0x7e0] sm:$0xff]
                  %782 = vst [vmem:[%s616 + $0x420] sm:$0xff] %v781
                  %v783 = vld [vmem:[%s615 + $0x7e8] sm:$0xff]
                  %784 = vst [vmem:[%s616 + $0x428] sm:$0xff] %v783
                  %v785 = vld [vmem:[%s615 + $0x7f0] sm:$0xff]
                  %786 = vst [vmem:[%s616 + $0x430] sm:$0xff] %v785
                  %v787 = vld [vmem:[%s615 + $0x7f8] sm:$0xff]
                  %788 = vst [vmem:[%s616 + $0x438] sm:$0xff] %v787
                  %v789 = vld [vmem:[%s615 + $0x800] sm:$0xff]
                  %790 = vst [vmem:[%s616 + $0x440] sm:$0xff] %v789
                  %v791 = vld [vmem:[%s615 + $0x808] sm:$0xff]
                  %792 = vst [vmem:[%s616 + $0x448] sm:$0xff] %v791
                  %v793 = vld [vmem:[%s615 + $0x898] sm:$0xff]
                  %794 = vst [vmem:[%s616 + $0x478] sm:$0xff] %v793
                  %v795 = vld [vmem:[%s615 + $0x8a0] sm:$0xff]
                  %796 = vst [vmem:[%s616 + $0x480] sm:$0xff] %v795
                  %v797 = vld [vmem:[%s615 + $0x8a8] sm:$0xff]
                  %798 = vst [vmem:[%s616 + $0x488] sm:$0xff] %v797
                  %v799 = vld [vmem:[%s615 + $0x8b0] sm:$0xff]
                  %800 = vst [vmem:[%s616 + $0x490] sm:$0xff] %v799
                  %v801 = vld [vmem:[%s615 + $0x8b8] sm:$0xff]
                  %802 = vst [vmem:[%s616 + $0x498] sm:$0xff] %v801
                  %v803 = vld [vmem:[%s615 + $0x8c0] sm:$0xff]
                  %804 = vst [vmem:[%s616 + $0x4a0] sm:$0xff] %v803
                  %v805 = vld [vmem:[%s615 + $0x8c8] sm:$0xff]
                  %806 = vst [vmem:[%s616 + $0x4a8] sm:$0xff] %v805
                  %v807 = vld [vmem:[%s615 + $0x8d0] sm:$0xff]
                  %808 = vst [vmem:[%s616 + $0x4b0] sm:$0xff] %v807
                  %s809 = sadd.s32 1, %s614
                  %p810 = scmp.ge.s32.totalorder %s809, %s605
                  %s811 = scalar_select %p810, 0, %s809
                  %s812 = smul.u32 %s811, 64
                  %s813 = smul.u32 %s811, 64
                  %s814 = scalar_lea.vmem %s283, %s812
                  %s815 = scalar_lea.vmem %s270, %s813 [#allocation7]
                $region82: #{fused_forward.1} parent=76 // loop_footer
                  %s611 = sadd.s32 %s609, 1
                $region83: #{fused_forward.1} parent=76 // loop_footer_branch
                  %608 = sbr.rel target = $region79
                $region84: #{fused_forward.1} parent=76 // loop_exit
                  _
                %s816 = sshrl.u32 %s604, 3
                %s817 = sand.u32 %s604, 7
                %s818 = smul.u32 %s816, 8
                %s819 = smul.u32 128, %s818
                %s820 = sshra.s32 %s819, 4
                %s821 = scalar_lea.vmem %s283, %s820
                %s822 = smul.u32 128, %s818
                %s823 = sshra.s32 %s822, 4
                %s824 = scalar_lea.vmem %s270, %s823 [#allocation7]
                // While loop
                $region85: #{fused_forward.1} parent=76 // loop_pre_header
                  _
                $region86: #{fused_forward.1} parent=76 // loop_header
                  %s828 = sphi 0, %s830
                  %p829 = scmp.ge.s32.totalorder %s828, %s817
                  %s833 = sphi 0, %s862
                  %s834 = sphi %s821, %s865
                  %s835 = sphi %s824, %s866
                $region87: #{fused_forward.1} parent=76 // loop_header_branch
                  %832 = sbr.rel (%p829) target = $region91
                $region88: #{fused_forward.1} parent=76 // loop_body
                  %v836 = vld [vmem:[%s834] sm:$0xff]
                  %837 = vst [vmem:[%s835] sm:$0xff] %v836
                  %v838 = vld [vmem:[%s834 + $0xc8] sm:$0xff]
                  %839 = vst [vmem:[%s835 + $0x68] sm:$0xff] %v838
                  %v840 = vld [vmem:[%s834 + $0x190] sm:$0xff]
                  %841 = vst [vmem:[%s835 + $0xd0] sm:$0xff] %v840
                  %v842 = vld [vmem:[%s834 + $0x258] sm:$0xff]
                  %843 = vst [vmem:[%s835 + $0x138] sm:$0xff] %v842
                  %v844 = vld [vmem:[%s834 + $0x320] sm:$0xff]
                  %845 = vst [vmem:[%s835 + $0x1a0] sm:$0xff] %v844
                  %v846 = vld [vmem:[%s834 + $0x3e8] sm:$0xff]
                  %847 = vst [vmem:[%s835 + $0x208] sm:$0xff] %v846
                  %v848 = vld [vmem:[%s834 + $0x4b0] sm:$0xff]
                  %849 = vst [vmem:[%s835 + $0x270] sm:$0xff] %v848
                  %v850 = vld [vmem:[%s834 + $0x578] sm:$0xff]
                  %851 = vst [vmem:[%s835 + $0x2d8] sm:$0xff] %v850
                  %v852 = vld [vmem:[%s834 + $0x640] sm:$0xff]
                  %853 = vst [vmem:[%s835 + $0x340] sm:$0xff] %v852
                  %v854 = vld [vmem:[%s834 + $0x708] sm:$0xff]
                  %855 = vst [vmem:[%s835 + $0x3a8] sm:$0xff] %v854
                  %v856 = vld [vmem:[%s834 + $0x7d0] sm:$0xff]
                  %857 = vst [vmem:[%s835 + $0x410] sm:$0xff] %v856
                  %v858 = vld [vmem:[%s834 + $0x898] sm:$0xff]
                  %859 = vst [vmem:[%s835 + $0x478] sm:$0xff] %v858
                  %s860 = sadd.s32 1, %s833
                  %p861 = scmp.ge.s32.totalorder %s860, %s817
                  %s862 = scalar_select %p861, 0, %s860
                  %s863 = smul.u32 %s862, 8
                  %s864 = smul.u32 %s862, 8
                  %s865 = scalar_lea.vmem %s821, %s863
                  %s866 = scalar_lea.vmem %s824, %s864 [#allocation7]
                $region89: #{fused_forward.1} parent=76 // loop_footer
                  %s830 = sadd.s32 %s828, 1
                $region90: #{fused_forward.1} parent=76 // loop_footer_branch
                  %827 = sbr.rel target = $region86
                $region91: #{fused_forward.1} parent=76 // loop_exit
                  _
                %s867 = sshllo.u32 0, %s599
                loop: start=0, step=1, limit=1
                $region92: #{fused_forward.1} parent=76 // loop_pre_header
                  _
                $region93: #{fused_forward.1} parent=76 // loop_header
                  %s869 = sphi 0, %s873
                  %p870 = scmp.ge.s32.totalorder %s869, 1
                  %s874 = sphi %s601, %s601
                  %s875 = sphi %s603, %s603
                $region94: #{fused_forward.1} parent=76 // loop_header_branch
                  %872 = sbr.rel (%p870) target = $region98
                $region95: #{fused_forward.1} parent=76 // loop_body
                  %v876 = vld [vmem:[%s874] sm:%s867]
                  %877 = vst [vmem:[%s875] sm:%s867] %v876
                  %v878 = vld [vmem:[%s874 + $0xc8] sm:%s867]
                  %879 = vst [vmem:[%s875 + $0x68] sm:%s867] %v878
                  %v880 = vld [vmem:[%s874 + $0x190] sm:%s867]
                  %881 = vst [vmem:[%s875 + $0xd0] sm:%s867] %v880
                  %v882 = vld [vmem:[%s874 + $0x258] sm:%s867]
                  %883 = vst [vmem:[%s875 + $0x138] sm:%s867] %v882
                  %v884 = vld [vmem:[%s874 + $0x320] sm:%s867]
                  %885 = vst [vmem:[%s875 + $0x1a0] sm:%s867] %v884
                  %v886 = vld [vmem:[%s874 + $0x3e8] sm:%s867]
                  %887 = vst [vmem:[%s875 + $0x208] sm:%s867] %v886
                  %v888 = vld [vmem:[%s874 + $0x4b0] sm:%s867]
                  %889 = vst [vmem:[%s875 + $0x270] sm:%s867] %v888
                  %v890 = vld [vmem:[%s874 + $0x578] sm:%s867]
                  %891 = vst [vmem:[%s875 + $0x2d8] sm:%s867] %v890
                  %v892 = vld [vmem:[%s874 + $0x640] sm:%s867]
                  %893 = vst [vmem:[%s875 + $0x340] sm:%s867] %v892
                  %v894 = vld [vmem:[%s874 + $0x708] sm:%s867]
                  %895 = vst [vmem:[%s875 + $0x3a8] sm:%s867] %v894
                  %v896 = vld [vmem:[%s874 + $0x7d0] sm:%s867]
                  %897 = vst [vmem:[%s875 + $0x410] sm:%s867] %v896
                  %v898 = vld [vmem:[%s874 + $0x898] sm:%s867]
                  %899 = vst [vmem:[%s875 + $0x478] sm:%s867] %v898
                $region96: #{fused_forward.1} parent=76 // loop_footer
                  %s873 = sadd.s32 1, %s869
                $region97: #{fused_forward.1} parent=76 // loop_footer_branch
                  %868 = sbr.rel target = $region93
                $region98: #{fused_forward.1} parent=76 // loop_exit
                  _
              $region77: #{fused_forward.1} parent=43 // pred_fallthru
                _
            $region44: #{fused_forward.1} parent=39 // pred_fallthru
              _
            // Predicated region
            $region45: #{fused_forward.1} parent=39 // pred_check
              %p292 = pneg %p288
            $region46: #{fused_forward.1} parent=39 // pred_check_branch
              %294 = sbr.rel (%p292) target = $region48
            $region47: #{fused_forward.1} parent=39 // pred_region
              %s295 = sshllo.u32 0, %s284
              loop: start=0, step=1, limit=1
              $region49: #{fused_forward.1} parent=47 // loop_pre_header
                _
              $region50: #{fused_forward.1} parent=47 // loop_header
                %s297 = sphi 0, %s301
                %p298 = scmp.ge.s32.totalorder %s297, 1
                %s302 = sphi %s283, %s283
                %s303 = sphi %s270, %s270
              $region51: #{fused_forward.1} parent=47 // loop_header_branch
                %300 = sbr.rel (%p298) target = $region55
              $region52: #{fused_forward.1} parent=47 // loop_body
                %v304 = vld [vmem:[%s302] sm:%s295]
                %305 = vst [vmem:[%s303] sm:%s295] %v304
                %v306 = vld [vmem:[%s302 + $0xc8] sm:%s295]
                %307 = vst [vmem:[%s303 + $0x68] sm:%s295] %v306
                %v308 = vld [vmem:[%s302 + $0x190] sm:%s295]
                %309 = vst [vmem:[%s303 + $0xd0] sm:%s295] %v308
                %v310 = vld [vmem:[%s302 + $0x258] sm:%s295]
                %311 = vst [vmem:[%s303 + $0x138] sm:%s295] %v310
                %v312 = vld [vmem:[%s302 + $0x320] sm:%s295]
                %313 = vst [vmem:[%s303 + $0x1a0] sm:%s295] %v312
                %v314 = vld [vmem:[%s302 + $0x3e8] sm:%s295]
                %315 = vst [vmem:[%s303 + $0x208] sm:%s295] %v314
                %v316 = vld [vmem:[%s302 + $0x4b0] sm:%s295]
                %317 = vst [vmem:[%s303 + $0x270] sm:%s295] %v316
                %v318 = vld [vmem:[%s302 + $0x578] sm:%s295]
                %319 = vst [vmem:[%s303 + $0x2d8] sm:%s295] %v318
                %v320 = vld [vmem:[%s302 + $0x640] sm:%s295]
                %321 = vst [vmem:[%s303 + $0x340] sm:%s295] %v320
                %v322 = vld [vmem:[%s302 + $0x708] sm:%s295]
                %323 = vst [vmem:[%s303 + $0x3a8] sm:%s295] %v322
                %v324 = vld [vmem:[%s302 + $0x7d0] sm:%s295]
                %325 = vst [vmem:[%s303 + $0x410] sm:%s295] %v324
                %v326 = vld [vmem:[%s302 + $0x898] sm:%s295]
                %327 = vst [vmem:[%s303 + $0x478] sm:%s295] %v326
              $region53: #{fused_forward.1} parent=47 // loop_footer
                %s301 = sadd.s32 1, %s297
              $region54: #{fused_forward.1} parent=47 // loop_footer_branch
                %296 = sbr.rel target = $region50
              $region55: #{fused_forward.1} parent=47 // loop_exit
                _
            $region48: #{fused_forward.1} parent=39 // pred_fallthru
              _
          $region40: #{fused_forward.1} parent=35 // pred_fallthru
            _
          %900 = vnop
        $region36: #{fused_forward.1} parent=27 // pred_fallthru
          _
        // Predicated region
        $region99: #{fused_forward.1} parent=27 // pred_check
          %p901 = pneg %p186
        $region100: #{fused_forward.1} parent=27 // pred_check_branch
          %903 = sbr.rel (%p901) target = $region102
        $region101: #{fused_forward.1} parent=27 // pred_region
          %s904 = sand.u32 %s176, 1
          %s905 = sand.u32 %s176, 1
          %s906 = smul.addr %s905, 312
          %s907 = scalar_lea.vmem [#allocation8], %s906
          %p908 = scmp.eq.s32.totalorder %s19, 0
          %s909 = scalar_select %p908, 0, %s20
          %s910 = scalar_select %p908, 0, %s21
          %s911 = smul.u32 13, %s910
          %s912 = ssub.s32 25, %s911
          %p913 = scmp.lt.s32.totalorder %s912, 13
          %s914 = scalar_select %p913, %s912, 13
          %s915 = smul.u32 384, %s914
          %p916 = scmp.ne.s32.totalorder 0, %s915
          %s917 = smul.addr %s909, 75
          %s918 = sadd.s32 %s911, %s917
          %s919 = smul.addr %s918, 8
          %s920 = scalar_lea.vmem %s5, %s919
          %s921 = smul.u32 %s914, 8
          // Predicated region
          $region103: #{fused_forward.1} parent=101 // pred_check
            %p922 = pneg %p916
          $region104: #{fused_forward.1} parent=101 // pred_check_branch
            %924 = sbr.rel (%p922) target = $region106
          $region105: #{fused_forward.1} parent=101 // pred_region
            %p925 = scmp.lt.u32.totalorder %s921, 8
            %p926 = pneg %p925
            // Predicated region
            $region107: #{fused_forward.1} parent=105 // pred_check
              _
            $region108: #{fused_forward.1} parent=105 // pred_check_branch
              %928 = sbr.rel (%p925) target = $region110
            $region109: #{fused_forward.1} parent=105 // pred_region
              %s947 = sand.u32 %s921, 7
              %p948 = scmp.eq.s32.totalorder %s947, 0
              // Predicated region
              $region122: #{fused_forward.1} parent=109 // pred_check
                %p949 = pneg %p948
              $region123: #{fused_forward.1} parent=109 // pred_check_branch
                %951 = sbr.rel (%p949) target = $region125
              $region124: #{fused_forward.1} parent=109 // pred_region
                %s952 = sshrl.u32 %s921, 3
                %s953 = sdiv.u32.pop %s952, 24
                %s954 = srem.u32.pop %s952, 24
                // While loop
                $region126: #{fused_forward.1} parent=124 // loop_pre_header
                  _
                $region127: #{fused_forward.1} parent=124 // loop_header
                  %s958 = sphi 0, %s960
                  %p959 = scmp.ge.s32.totalorder %s958, %s953
                  %s963 = sphi 0, %s1112
                  %s964 = sphi %s920, %s1115
                  %s965 = sphi %s907, %s1116
                $region128: #{fused_forward.1} parent=124 // loop_header_branch
                  %962 = sbr.rel (%p959) target = $region132
                $region129: #{fused_forward.1} parent=124 // loop_body
                  %v966 = vld [vmem:[%s964] sm:$0xff]
                  %967 = vst [vmem:[%s965] sm:$0xff] %v966
                  %v968 = vld [vmem:[%s964 + $0x8] sm:$0xff]
                  %969 = vst [vmem:[%s965 + $0x8] sm:$0xff] %v968
                  %v970 = vld [vmem:[%s964 + $0x10] sm:$0xff]
                  %971 = vst [vmem:[%s965 + $0x10] sm:$0xff] %v970
                  %v972 = vld [vmem:[%s964 + $0x18] sm:$0xff]
                  %973 = vst [vmem:[%s965 + $0x18] sm:$0xff] %v972
                  %v974 = vld [vmem:[%s964 + $0x20] sm:$0xff]
                  %975 = vst [vmem:[%s965 + $0x20] sm:$0xff] %v974
                  %v976 = vld [vmem:[%s964 + $0x28] sm:$0xff]
                  %977 = vst [vmem:[%s965 + $0x28] sm:$0xff] %v976
                  %v978 = vld [vmem:[%s964 + $0x30] sm:$0xff]
                  %979 = vst [vmem:[%s965 + $0x30] sm:$0xff] %v978
                  %v980 = vld [vmem:[%s964 + $0x38] sm:$0xff]
                  %981 = vst [vmem:[%s965 + $0x38] sm:$0xff] %v980
                  %v982 = vld [vmem:[%s964 + $0x40] sm:$0xff]
                  %983 = vst [vmem:[%s965 + $0x40] sm:$0xff] %v982
                  %v984 = vld [vmem:[%s964 + $0x48] sm:$0xff]
                  %985 = vst [vmem:[%s965 + $0x48] sm:$0xff] %v984
                  %v986 = vld [vmem:[%s964 + $0x50] sm:$0xff]
                  %987 = vst [vmem:[%s965 + $0x50] sm:$0xff] %v986
                  %v988 = vld [vmem:[%s964 + $0x58] sm:$0xff]
                  %989 = vst [vmem:[%s965 + $0x58] sm:$0xff] %v988
                  %v990 = vld [vmem:[%s964 + $0x60] sm:$0xff]
                  %991 = vst [vmem:[%s965 + $0x60] sm:$0xff] %v990
                  %v992 = vld [vmem:[%s964 + $0x68] sm:$0xff]
                  %993 = vst [vmem:[%s965 + $0x68] sm:$0xff] %v992
                  %v994 = vld [vmem:[%s964 + $0x70] sm:$0xff]
                  %995 = vst [vmem:[%s965 + $0x70] sm:$0xff] %v994
                  %v996 = vld [vmem:[%s964 + $0x78] sm:$0xff]
                  %997 = vst [vmem:[%s965 + $0x78] sm:$0xff] %v996
                  %v998 = vld [vmem:[%s964 + $0x80] sm:$0xff]
                  %999 = vst [vmem:[%s965 + $0x80] sm:$0xff] %v998
                  %v1000 = vld [vmem:[%s964 + $0x88] sm:$0xff]
                  %1001 = vst [vmem:[%s965 + $0x88] sm:$0xff] %v1000
                  %v1002 = vld [vmem:[%s964 + $0x90] sm:$0xff]
                  %1003 = vst [vmem:[%s965 + $0x90] sm:$0xff] %v1002
                  %v1004 = vld [vmem:[%s964 + $0x98] sm:$0xff]
                  %1005 = vst [vmem:[%s965 + $0x98] sm:$0xff] %v1004
                  %v1006 = vld [vmem:[%s964 + $0xa0] sm:$0xff]
                  %1007 = vst [vmem:[%s965 + $0xa0] sm:$0xff] %v1006
                  %v1008 = vld [vmem:[%s964 + $0xa8] sm:$0xff]
                  %1009 = vst [vmem:[%s965 + $0xa8] sm:$0xff] %v1008
                  %v1010 = vld [vmem:[%s964 + $0xb0] sm:$0xff]
                  %1011 = vst [vmem:[%s965 + $0xb0] sm:$0xff] %v1010
                  %v1012 = vld [vmem:[%s964 + $0xb8] sm:$0xff]
                  %1013 = vst [vmem:[%s965 + $0xb8] sm:$0xff] %v1012
                  %v1014 = vld [vmem:[%s964 + $0xc8] sm:$0xff]
                  %1015 = vst [vmem:[%s965 + $0x68] sm:$0xff] %v1014
                  %v1016 = vld [vmem:[%s964 + $0xd0] sm:$0xff]
                  %1017 = vst [vmem:[%s965 + $0x70] sm:$0xff] %v1016
                  %v1018 = vld [vmem:[%s964 + $0xd8] sm:$0xff]
                  %1019 = vst [vmem:[%s965 + $0x78] sm:$0xff] %v1018
                  %v1020 = vld [vmem:[%s964 + $0xe0] sm:$0xff]
                  %1021 = vst [vmem:[%s965 + $0x80] sm:$0xff] %v1020
                  %v1022 = vld [vmem:[%s964 + $0xe8] sm:$0xff]
                  %1023 = vst [vmem:[%s965 + $0x88] sm:$0xff] %v1022
                  %v1024 = vld [vmem:[%s964 + $0xf0] sm:$0xff]
                  %1025 = vst [vmem:[%s965 + $0x90] sm:$0xff] %v1024
                  %v1026 = vld [vmem:[%s964 + $0xf8] sm:$0xff]
                  %1027 = vst [vmem:[%s965 + $0x98] sm:$0xff] %v1026
                  %v1028 = vld [vmem:[%s964 + $0x100] sm:$0xff]
                  %1029 = vst [vmem:[%s965 + $0xa0] sm:$0xff] %v1028
                  %v1030 = vld [vmem:[%s964 + $0x108] sm:$0xff]
                  %1031 = vst [vmem:[%s965 + $0xa8] sm:$0xff] %v1030
                  %v1032 = vld [vmem:[%s964 + $0x110] sm:$0xff]
                  %1033 = vst [vmem:[%s965 + $0xb0] sm:$0xff] %v1032
                  %v1034 = vld [vmem:[%s964 + $0x118] sm:$0xff]
                  %1035 = vst [vmem:[%s965 + $0xb8] sm:$0xff] %v1034
                  %v1036 = vld [vmem:[%s964 + $0x120] sm:$0xff]
                  %1037 = vst [vmem:[%s965 + $0xc0] sm:$0xff] %v1036
                  %v1038 = vld [vmem:[%s964 + $0x128] sm:$0xff]
                  %1039 = vst [vmem:[%s965 + $0xc8] sm:$0xff] %v1038
                  %v1040 = vld [vmem:[%s964 + $0x130] sm:$0xff]
                  %1041 = vst [vmem:[%s965 + $0xd0] sm:$0xff] %v1040
                  %v1042 = vld [vmem:[%s964 + $0x138] sm:$0xff]
                  %1043 = vst [vmem:[%s965 + $0xd8] sm:$0xff] %v1042
                  %v1044 = vld [vmem:[%s964 + $0x140] sm:$0xff]
                  %1045 = vst [vmem:[%s965 + $0xe0] sm:$0xff] %v1044
                  %v1046 = vld [vmem:[%s964 + $0x148] sm:$0xff]
                  %1047 = vst [vmem:[%s965 + $0xe8] sm:$0xff] %v1046
                  %v1048 = vld [vmem:[%s964 + $0x150] sm:$0xff]
                  %1049 = vst [vmem:[%s965 + $0xf0] sm:$0xff] %v1048
                  %v1050 = vld [vmem:[%s964 + $0x158] sm:$0xff]
                  %1051 = vst [vmem:[%s965 + $0xf8] sm:$0xff] %v1050
                  %v1052 = vld [vmem:[%s964 + $0x160] sm:$0xff]
                  %1053 = vst [vmem:[%s965 + $0x100] sm:$0xff] %v1052
                  %v1054 = vld [vmem:[%s964 + $0x168] sm:$0xff]
                  %1055 = vst [vmem:[%s965 + $0x108] sm:$0xff] %v1054
                  %v1056 = vld [vmem:[%s964 + $0x170] sm:$0xff]
                  %1057 = vst [vmem:[%s965 + $0x110] sm:$0xff] %v1056
                  %v1058 = vld [vmem:[%s964 + $0x178] sm:$0xff]
                  %1059 = vst [vmem:[%s965 + $0x118] sm:$0xff] %v1058
                  %v1060 = vld [vmem:[%s964 + $0x180] sm:$0xff]
                  %1061 = vst [vmem:[%s965 + $0x120] sm:$0xff] %v1060
                  %v1062 = vld [vmem:[%s964 + $0x190] sm:$0xff]
                  %1063 = vst [vmem:[%s965 + $0xd0] sm:$0xff] %v1062
                  %v1064 = vld [vmem:[%s964 + $0x198] sm:$0xff]
                  %1065 = vst [vmem:[%s965 + $0xd8] sm:$0xff] %v1064
                  %v1066 = vld [vmem:[%s964 + $0x1a0] sm:$0xff]
                  %1067 = vst [vmem:[%s965 + $0xe0] sm:$0xff] %v1066
                  %v1068 = vld [vmem:[%s964 + $0x1a8] sm:$0xff]
                  %1069 = vst [vmem:[%s965 + $0xe8] sm:$0xff] %v1068
                  %v1070 = vld [vmem:[%s964 + $0x1b0] sm:$0xff]
                  %1071 = vst [vmem:[%s965 + $0xf0] sm:$0xff] %v1070
                  %v1072 = vld [vmem:[%s964 + $0x1b8] sm:$0xff]
                  %1073 = vst [vmem:[%s965 + $0xf8] sm:$0xff] %v1072
                  %v1074 = vld [vmem:[%s964 + $0x1c0] sm:$0xff]
                  %1075 = vst [vmem:[%s965 + $0x100] sm:$0xff] %v1074
                  %v1076 = vld [vmem:[%s964 + $0x1c8] sm:$0xff]
                  %1077 = vst [vmem:[%s965 + $0x108] sm:$0xff] %v1076
                  %v1078 = vld [vmem:[%s964 + $0x1d0] sm:$0xff]
                  %1079 = vst [vmem:[%s965 + $0x110] sm:$0xff] %v1078
                  %v1080 = vld [vmem:[%s964 + $0x1d8] sm:$0xff]
                  %1081 = vst [vmem:[%s965 + $0x118] sm:$0xff] %v1080
                  %v1082 = vld [vmem:[%s964 + $0x1e0] sm:$0xff]
                  %1083 = vst [vmem:[%s965 + $0x120] sm:$0xff] %v1082
                  %v1084 = vld [vmem:[%s964 + $0x1e8] sm:$0xff]
                  %1085 = vst [vmem:[%s965 + $0x128] sm:$0xff] %v1084
                  %v1086 = vld [vmem:[%s964 + $0x1f0] sm:$0xff]
                  %1087 = vst [vmem:[%s965 + $0x130] sm:$0xff] %v1086
                  %v1088 = vld [vmem:[%s964 + $0x1f8] sm:$0xff]
                  %1089 = vst [vmem:[%s965 + $0x138] sm:$0xff] %v1088
                  %v1090 = vld [vmem:[%s964 + $0x200] sm:$0xff]
                  %1091 = vst [vmem:[%s965 + $0x140] sm:$0xff] %v1090
                  %v1092 = vld [vmem:[%s964 + $0x208] sm:$0xff]
                  %1093 = vst [vmem:[%s965 + $0x148] sm:$0xff] %v1092
                  %v1094 = vld [vmem:[%s964 + $0x210] sm:$0xff]
                  %1095 = vst [vmem:[%s965 + $0x150] sm:$0xff] %v1094
                  %v1096 = vld [vmem:[%s964 + $0x218] sm:$0xff]
                  %1097 = vst [vmem:[%s965 + $0x158] sm:$0xff] %v1096
                  %v1098 = vld [vmem:[%s964 + $0x220] sm:$0xff]
                  %1099 = vst [vmem:[%s965 + $0x160] sm:$0xff] %v1098
                  %v1100 = vld [vmem:[%s964 + $0x228] sm:$0xff]
                  %1101 = vst [vmem:[%s965 + $0x168] sm:$0xff] %v1100
                  %v1102 = vld [vmem:[%s964 + $0x230] sm:$0xff]
                  %1103 = vst [vmem:[%s965 + $0x170] sm:$0xff] %v1102
                  %v1104 = vld [vmem:[%s964 + $0x238] sm:$0xff]
                  %1105 = vst [vmem:[%s965 + $0x178] sm:$0xff] %v1104
                  %v1106 = vld [vmem:[%s964 + $0x240] sm:$0xff]
                  %1107 = vst [vmem:[%s965 + $0x180] sm:$0xff] %v1106
                  %v1108 = vld [vmem:[%s964 + $0x248] sm:$0xff]
                  %1109 = vst [vmem:[%s965 + $0x188] sm:$0xff] %v1108
                  %s1110 = sadd.s32 1, %s963
                  %p1111 = scmp.ge.s32.totalorder %s1110, %s953
                  %s1112 = scalar_select %p1111, 0, %s1110
                  %s1113 = smul.u32 %s1112, 192
                  %s1114 = smul.u32 %s1112, 192
                  %s1115 = scalar_lea.vmem %s920, %s1113
                  %s1116 = scalar_lea.vmem %s907, %s1114 [#allocation8]
                $region130: #{fused_forward.1} parent=124 // loop_footer
                  %s960 = sadd.s32 %s958, 1
                $region131: #{fused_forward.1} parent=124 // loop_footer_branch
                  %957 = sbr.rel target = $region127
                $region132: #{fused_forward.1} parent=124 // loop_exit
                  _
                %s1117 = sdiv.u32.pop %s952, 24
                %s1118 = srem.u32.pop %s952, 24
                %s1119 = smul.u32 %s1117, 24
                %s1120 = smul.u32 128, %s1119
                %s1121 = sshra.s32 %s1120, 4
                %s1122 = scalar_lea.vmem %s920, %s1121
                %s1123 = smul.u32 128, %s1119
                %s1124 = sshra.s32 %s1123, 4
                %s1125 = scalar_lea.vmem %s907, %s1124 [#allocation8]
                // While loop
                $region133: #{fused_forward.1} parent=124 // loop_pre_header
                  _
                $region134: #{fused_forward.1} parent=124 // loop_header
                  %s1129 = sphi 0, %s1131
                  %p1130 = scmp.ge.s32.totalorder %s1129, %s1118
                  %s1134 = sphi 0, %s1145
                  %s1135 = sphi %s1122, %s1148
                  %s1136 = sphi %s1125, %s1149
                $region135: #{fused_forward.1} parent=124 // loop_header_branch
                  %1133 = sbr.rel (%p1130) target = $region139
                $region136: #{fused_forward.1} parent=124 // loop_body
                  %v1137 = vld [vmem:[%s1135] sm:$0xff]
                  %1138 = vst [vmem:[%s1136] sm:$0xff] %v1137
                  %v1139 = vld [vmem:[%s1135 + $0xc8] sm:$0xff]
                  %1140 = vst [vmem:[%s1136 + $0x68] sm:$0xff] %v1139
                  %v1141 = vld [vmem:[%s1135 + $0x190] sm:$0xff]
                  %1142 = vst [vmem:[%s1136 + $0xd0] sm:$0xff] %v1141
                  %s1143 = sadd.s32 1, %s1134
                  %p1144 = scmp.ge.s32.totalorder %s1143, %s1118
                  %s1145 = scalar_select %p1144, 0, %s1143
                  %s1146 = smul.u32 %s1145, 8
                  %s1147 = smul.u32 %s1145, 8
                  %s1148 = scalar_lea.vmem %s1122, %s1146
                  %s1149 = scalar_lea.vmem %s1125, %s1147 [#allocation8]
                $region137: #{fused_forward.1} parent=124 // loop_footer
                  %s1131 = sadd.s32 %s1129, 1
                $region138: #{fused_forward.1} parent=124 // loop_footer_branch
                  %1128 = sbr.rel target = $region134
                $region139: #{fused_forward.1} parent=124 // loop_exit
                  _
              $region125: #{fused_forward.1} parent=109 // pred_fallthru
                _
              %p1150 = pneg %p948
              // Predicated region
              $region140: #{fused_forward.1} parent=109 // pred_check
                _
              $region141: #{fused_forward.1} parent=109 // pred_check_branch
                %1152 = sbr.rel (%p948) target = $region143
              $region142: #{fused_forward.1} parent=109 // pred_region
                %s1153 = sand.u32 %s921, 7
                %s1154 = ssub.s32 %s921, %s1153
                %s1155 = scalar_lea.vmem %s920, %s1154
                %s1156 = ssub.s32 %s921, %s1153
                %s1157 = scalar_lea.vmem %s907, %s1156 [#allocation8]
                %s1158 = sshrl.u32 %s921, 3
                %s1159 = sdiv.u32.pop %s1158, 24
                %s1160 = srem.u32.pop %s1158, 24
                // While loop
                $region144: #{fused_forward.1} parent=142 // loop_pre_header
                  _
                $region145: #{fused_forward.1} parent=142 // loop_header
                  %s1164 = sphi 0, %s1166
                  %p1165 = scmp.ge.s32.totalorder %s1164, %s1159
                  %s1169 = sphi 0, %s1318
                  %s1170 = sphi %s920, %s1321
                  %s1171 = sphi %s907, %s1322
                $region146: #{fused_forward.1} parent=142 // loop_header_branch
                  %1168 = sbr.rel (%p1165) target = $region150
                $region147: #{fused_forward.1} parent=142 // loop_body
                  %v1172 = vld [vmem:[%s1170] sm:$0xff]
                  %1173 = vst [vmem:[%s1171] sm:$0xff] %v1172
                  %v1174 = vld [vmem:[%s1170 + $0x8] sm:$0xff]
                  %1175 = vst [vmem:[%s1171 + $0x8] sm:$0xff] %v1174
                  %v1176 = vld [vmem:[%s1170 + $0x10] sm:$0xff]
                  %1177 = vst [vmem:[%s1171 + $0x10] sm:$0xff] %v1176
                  %v1178 = vld [vmem:[%s1170 + $0x18] sm:$0xff]
                  %1179 = vst [vmem:[%s1171 + $0x18] sm:$0xff] %v1178
                  %v1180 = vld [vmem:[%s1170 + $0x20] sm:$0xff]
                  %1181 = vst [vmem:[%s1171 + $0x20] sm:$0xff] %v1180
                  %v1182 = vld [vmem:[%s1170 + $0x28] sm:$0xff]
                  %1183 = vst [vmem:[%s1171 + $0x28] sm:$0xff] %v1182
                  %v1184 = vld [vmem:[%s1170 + $0x30] sm:$0xff]
                  %1185 = vst [vmem:[%s1171 + $0x30] sm:$0xff] %v1184
                  %v1186 = vld [vmem:[%s1170 + $0x38] sm:$0xff]
                  %1187 = vst [vmem:[%s1171 + $0x38] sm:$0xff] %v1186
                  %v1188 = vld [vmem:[%s1170 + $0x40] sm:$0xff]
                  %1189 = vst [vmem:[%s1171 + $0x40] sm:$0xff] %v1188
                  %v1190 = vld [vmem:[%s1170 + $0x48] sm:$0xff]
                  %1191 = vst [vmem:[%s1171 + $0x48] sm:$0xff] %v1190
                  %v1192 = vld [vmem:[%s1170 + $0x50] sm:$0xff]
                  %1193 = vst [vmem:[%s1171 + $0x50] sm:$0xff] %v1192
                  %v1194 = vld [vmem:[%s1170 + $0x58] sm:$0xff]
                  %1195 = vst [vmem:[%s1171 + $0x58] sm:$0xff] %v1194
                  %v1196 = vld [vmem:[%s1170 + $0x60] sm:$0xff]
                  %1197 = vst [vmem:[%s1171 + $0x60] sm:$0xff] %v1196
                  %v1198 = vld [vmem:[%s1170 + $0x68] sm:$0xff]
                  %1199 = vst [vmem:[%s1171 + $0x68] sm:$0xff] %v1198
                  %v1200 = vld [vmem:[%s1170 + $0x70] sm:$0xff]
                  %1201 = vst [vmem:[%s1171 + $0x70] sm:$0xff] %v1200
                  %v1202 = vld [vmem:[%s1170 + $0x78] sm:$0xff]
                  %1203 = vst [vmem:[%s1171 + $0x78] sm:$0xff] %v1202
                  %v1204 = vld [vmem:[%s1170 + $0x80] sm:$0xff]
                  %1205 = vst [vmem:[%s1171 + $0x80] sm:$0xff] %v1204
                  %v1206 = vld [vmem:[%s1170 + $0x88] sm:$0xff]
                  %1207 = vst [vmem:[%s1171 + $0x88] sm:$0xff] %v1206
                  %v1208 = vld [vmem:[%s1170 + $0x90] sm:$0xff]
                  %1209 = vst [vmem:[%s1171 + $0x90] sm:$0xff] %v1208
                  %v1210 = vld [vmem:[%s1170 + $0x98] sm:$0xff]
                  %1211 = vst [vmem:[%s1171 + $0x98] sm:$0xff] %v1210
                  %v1212 = vld [vmem:[%s1170 + $0xa0] sm:$0xff]
                  %1213 = vst [vmem:[%s1171 + $0xa0] sm:$0xff] %v1212
                  %v1214 = vld [vmem:[%s1170 + $0xa8] sm:$0xff]
                  %1215 = vst [vmem:[%s1171 + $0xa8] sm:$0xff] %v1214
                  %v1216 = vld [vmem:[%s1170 + $0xb0] sm:$0xff]
                  %1217 = vst [vmem:[%s1171 + $0xb0] sm:$0xff] %v1216
                  %v1218 = vld [vmem:[%s1170 + $0xb8] sm:$0xff]
                  %1219 = vst [vmem:[%s1171 + $0xb8] sm:$0xff] %v1218
                  %v1220 = vld [vmem:[%s1170 + $0xc8] sm:$0xff]
                  %1221 = vst [vmem:[%s1171 + $0x68] sm:$0xff] %v1220
                  %v1222 = vld [vmem:[%s1170 + $0xd0] sm:$0xff]
                  %1223 = vst [vmem:[%s1171 + $0x70] sm:$0xff] %v1222
                  %v1224 = vld [vmem:[%s1170 + $0xd8] sm:$0xff]
                  %1225 = vst [vmem:[%s1171 + $0x78] sm:$0xff] %v1224
                  %v1226 = vld [vmem:[%s1170 + $0xe0] sm:$0xff]
                  %1227 = vst [vmem:[%s1171 + $0x80] sm:$0xff] %v1226
                  %v1228 = vld [vmem:[%s1170 + $0xe8] sm:$0xff]
                  %1229 = vst [vmem:[%s1171 + $0x88] sm:$0xff] %v1228
                  %v1230 = vld [vmem:[%s1170 + $0xf0] sm:$0xff]
                  %1231 = vst [vmem:[%s1171 + $0x90] sm:$0xff] %v1230
                  %v1232 = vld [vmem:[%s1170 + $0xf8] sm:$0xff]
                  %1233 = vst [vmem:[%s1171 + $0x98] sm:$0xff] %v1232
                  %v1234 = vld [vmem:[%s1170 + $0x100] sm:$0xff]
                  %1235 = vst [vmem:[%s1171 + $0xa0] sm:$0xff] %v1234
                  %v1236 = vld [vmem:[%s1170 + $0x108] sm:$0xff]
                  %1237 = vst [vmem:[%s1171 + $0xa8] sm:$0xff] %v1236
                  %v1238 = vld [vmem:[%s1170 + $0x110] sm:$0xff]
                  %1239 = vst [vmem:[%s1171 + $0xb0] sm:$0xff] %v1238
                  %v1240 = vld [vmem:[%s1170 + $0x118] sm:$0xff]
                  %1241 = vst [vmem:[%s1171 + $0xb8] sm:$0xff] %v1240
                  %v1242 = vld [vmem:[%s1170 + $0x120] sm:$0xff]
                  %1243 = vst [vmem:[%s1171 + $0xc0] sm:$0xff] %v1242
                  %v1244 = vld [vmem:[%s1170 + $0x128] sm:$0xff]
                  %1245 = vst [vmem:[%s1171 + $0xc8] sm:$0xff] %v1244
                  %v1246 = vld [vmem:[%s1170 + $0x130] sm:$0xff]
                  %1247 = vst [vmem:[%s1171 + $0xd0] sm:$0xff] %v1246
                  %v1248 = vld [vmem:[%s1170 + $0x138] sm:$0xff]
                  %1249 = vst [vmem:[%s1171 + $0xd8] sm:$0xff] %v1248
                  %v1250 = vld [vmem:[%s1170 + $0x140] sm:$0xff]
                  %1251 = vst [vmem:[%s1171 + $0xe0] sm:$0xff] %v1250
                  %v1252 = vld [vmem:[%s1170 + $0x148] sm:$0xff]
                  %1253 = vst [vmem:[%s1171 + $0xe8] sm:$0xff] %v1252
                  %v1254 = vld [vmem:[%s1170 + $0x150] sm:$0xff]
                  %1255 = vst [vmem:[%s1171 + $0xf0] sm:$0xff] %v1254
                  %v1256 = vld [vmem:[%s1170 + $0x158] sm:$0xff]
                  %1257 = vst [vmem:[%s1171 + $0xf8] sm:$0xff] %v1256
                  %v1258 = vld [vmem:[%s1170 + $0x160] sm:$0xff]
                  %1259 = vst [vmem:[%s1171 + $0x100] sm:$0xff] %v1258
                  %v1260 = vld [vmem:[%s1170 + $0x168] sm:$0xff]
                  %1261 = vst [vmem:[%s1171 + $0x108] sm:$0xff] %v1260
                  %v1262 = vld [vmem:[%s1170 + $0x170] sm:$0xff]
                  %1263 = vst [vmem:[%s1171 + $0x110] sm:$0xff] %v1262
                  %v1264 = vld [vmem:[%s1170 + $0x178] sm:$0xff]
                  %1265 = vst [vmem:[%s1171 + $0x118] sm:$0xff] %v1264
                  %v1266 = vld [vmem:[%s1170 + $0x180] sm:$0xff]
                  %1267 = vst [vmem:[%s1171 + $0x120] sm:$0xff] %v1266
                  %v1268 = vld [vmem:[%s1170 + $0x190] sm:$0xff]
                  %1269 = vst [vmem:[%s1171 + $0xd0] sm:$0xff] %v1268
                  %v1270 = vld [vmem:[%s1170 + $0x198] sm:$0xff]
                  %1271 = vst [vmem:[%s1171 + $0xd8] sm:$0xff] %v1270
                  %v1272 = vld [vmem:[%s1170 + $0x1a0] sm:$0xff]
                  %1273 = vst [vmem:[%s1171 + $0xe0] sm:$0xff] %v1272
                  %v1274 = vld [vmem:[%s1170 + $0x1a8] sm:$0xff]
                  %1275 = vst [vmem:[%s1171 + $0xe8] sm:$0xff] %v1274
                  %v1276 = vld [vmem:[%s1170 + $0x1b0] sm:$0xff]
                  %1277 = vst [vmem:[%s1171 + $0xf0] sm:$0xff] %v1276
                  %v1278 = vld [vmem:[%s1170 + $0x1b8] sm:$0xff]
                  %1279 = vst [vmem:[%s1171 + $0xf8] sm:$0xff] %v1278
                  %v1280 = vld [vmem:[%s1170 + $0x1c0] sm:$0xff]
                  %1281 = vst [vmem:[%s1171 + $0x100] sm:$0xff] %v1280
                  %v1282 = vld [vmem:[%s1170 + $0x1c8] sm:$0xff]
                  %1283 = vst [vmem:[%s1171 + $0x108] sm:$0xff] %v1282
                  %v1284 = vld [vmem:[%s1170 + $0x1d0] sm:$0xff]
                  %1285 = vst [vmem:[%s1171 + $0x110] sm:$0xff] %v1284
                  %v1286 = vld [vmem:[%s1170 + $0x1d8] sm:$0xff]
                  %1287 = vst [vmem:[%s1171 + $0x118] sm:$0xff] %v1286
                  %v1288 = vld [vmem:[%s1170 + $0x1e0] sm:$0xff]
                  %1289 = vst [vmem:[%s1171 + $0x120] sm:$0xff] %v1288
                  %v1290 = vld [vmem:[%s1170 + $0x1e8] sm:$0xff]
                  %1291 = vst [vmem:[%s1171 + $0x128] sm:$0xff] %v1290
                  %v1292 = vld [vmem:[%s1170 + $0x1f0] sm:$0xff]
                  %1293 = vst [vmem:[%s1171 + $0x130] sm:$0xff] %v1292
                  %v1294 = vld [vmem:[%s1170 + $0x1f8] sm:$0xff]
                  %1295 = vst [vmem:[%s1171 + $0x138] sm:$0xff] %v1294
                  %v1296 = vld [vmem:[%s1170 + $0x200] sm:$0xff]
                  %1297 = vst [vmem:[%s1171 + $0x140] sm:$0xff] %v1296
                  %v1298 = vld [vmem:[%s1170 + $0x208] sm:$0xff]
                  %1299 = vst [vmem:[%s1171 + $0x148] sm:$0xff] %v1298
                  %v1300 = vld [vmem:[%s1170 + $0x210] sm:$0xff]
                  %1301 = vst [vmem:[%s1171 + $0x150] sm:$0xff] %v1300
                  %v1302 = vld [vmem:[%s1170 + $0x218] sm:$0xff]
                  %1303 = vst [vmem:[%s1171 + $0x158] sm:$0xff] %v1302
                  %v1304 = vld [vmem:[%s1170 + $0x220] sm:$0xff]
                  %1305 = vst [vmem:[%s1171 + $0x160] sm:$0xff] %v1304
                  %v1306 = vld [vmem:[%s1170 + $0x228] sm:$0xff]
                  %1307 = vst [vmem:[%s1171 + $0x168] sm:$0xff] %v1306
                  %v1308 = vld [vmem:[%s1170 + $0x230] sm:$0xff]
                  %1309 = vst [vmem:[%s1171 + $0x170] sm:$0xff] %v1308
                  %v1310 = vld [vmem:[%s1170 + $0x238] sm:$0xff]
                  %1311 = vst [vmem:[%s1171 + $0x178] sm:$0xff] %v1310
                  %v1312 = vld [vmem:[%s1170 + $0x240] sm:$0xff]
                  %1313 = vst [vmem:[%s1171 + $0x180] sm:$0xff] %v1312
                  %v1314 = vld [vmem:[%s1170 + $0x248] sm:$0xff]
                  %1315 = vst [vmem:[%s1171 + $0x188] sm:$0xff] %v1314
                  %s1316 = sadd.s32 1, %s1169
                  %p1317 = scmp.ge.s32.totalorder %s1316, %s1159
                  %s1318 = scalar_select %p1317, 0, %s1316
                  %s1319 = smul.u32 %s1318, 192
                  %s1320 = smul.u32 %s1318, 192
                  %s1321 = scalar_lea.vmem %s920, %s1319
                  %s1322 = scalar_lea.vmem %s907, %s1320 [#allocation8]
                $region148: #{fused_forward.1} parent=142 // loop_footer
                  %s1166 = sadd.s32 %s1164, 1
                $region149: #{fused_forward.1} parent=142 // loop_footer_branch
                  %1163 = sbr.rel target = $region145
                $region150: #{fused_forward.1} parent=142 // loop_exit
                  _
                %s1323 = sdiv.u32.pop %s1158, 24
                %s1324 = srem.u32.pop %s1158, 24
                %s1325 = smul.u32 %s1323, 24
                %s1326 = smul.u32 128, %s1325
                %s1327 = sshra.s32 %s1326, 4
                %s1328 = scalar_lea.vmem %s920, %s1327
                %s1329 = smul.u32 128, %s1325
                %s1330 = sshra.s32 %s1329, 4
                %s1331 = scalar_lea.vmem %s907, %s1330 [#allocation8]
                // While loop
                $region151: #{fused_forward.1} parent=142 // loop_pre_header
                  _
                $region152: #{fused_forward.1} parent=142 // loop_header
                  %s1335 = sphi 0, %s1337
                  %p1336 = scmp.ge.s32.totalorder %s1335, %s1324
                  %s1340 = sphi 0, %s1351
                  %s1341 = sphi %s1328, %s1354
                  %s1342 = sphi %s1331, %s1355
                $region153: #{fused_forward.1} parent=142 // loop_header_branch
                  %1339 = sbr.rel (%p1336) target = $region157
                $region154: #{fused_forward.1} parent=142 // loop_body
                  %v1343 = vld [vmem:[%s1341] sm:$0xff]
                  %1344 = vst [vmem:[%s1342] sm:$0xff] %v1343
                  %v1345 = vld [vmem:[%s1341 + $0xc8] sm:$0xff]
                  %1346 = vst [vmem:[%s1342 + $0x68] sm:$0xff] %v1345
                  %v1347 = vld [vmem:[%s1341 + $0x190] sm:$0xff]
                  %1348 = vst [vmem:[%s1342 + $0xd0] sm:$0xff] %v1347
                  %s1349 = sadd.s32 1, %s1340
                  %p1350 = scmp.ge.s32.totalorder %s1349, %s1324
                  %s1351 = scalar_select %p1350, 0, %s1349
                  %s1352 = smul.u32 %s1351, 8
                  %s1353 = smul.u32 %s1351, 8
                  %s1354 = scalar_lea.vmem %s1328, %s1352
                  %s1355 = scalar_lea.vmem %s1331, %s1353 [#allocation8]
                $region155: #{fused_forward.1} parent=142 // loop_footer
                  %s1337 = sadd.s32 %s1335, 1
                $region156: #{fused_forward.1} parent=142 // loop_footer_branch
                  %1334 = sbr.rel target = $region152
                $region157: #{fused_forward.1} parent=142 // loop_exit
                  _
                %s1356 = sshllo.u32 0, %s1153
                loop: start=0, step=1, limit=1
                $region158: #{fused_forward.1} parent=142 // loop_pre_header
                  _
                $region159: #{fused_forward.1} parent=142 // loop_header
                  %s1358 = sphi 0, %s1362
                  %p1359 = scmp.ge.s32.totalorder %s1358, 1
                  %s1363 = sphi %s1155, %s1155
                  %s1364 = sphi %s1157, %s1157
                $region160: #{fused_forward.1} parent=142 // loop_header_branch
                  %1361 = sbr.rel (%p1359) target = $region164
                $region161: #{fused_forward.1} parent=142 // loop_body
                  %v1365 = vld [vmem:[%s1363] sm:%s1356]
                  %1366 = vst [vmem:[%s1364] sm:%s1356] %v1365
                  %v1367 = vld [vmem:[%s1363 + $0xc8] sm:%s1356]
                  %1368 = vst [vmem:[%s1364 + $0x68] sm:%s1356] %v1367
                  %v1369 = vld [vmem:[%s1363 + $0x190] sm:%s1356]
                  %1370 = vst [vmem:[%s1364 + $0xd0] sm:%s1356] %v1369
                $region162: #{fused_forward.1} parent=142 // loop_footer
                  %s1362 = sadd.s32 1, %s1358
                $region163: #{fused_forward.1} parent=142 // loop_footer_branch
                  %1357 = sbr.rel target = $region159
                $region164: #{fused_forward.1} parent=142 // loop_exit
                  _
              $region143: #{fused_forward.1} parent=109 // pred_fallthru
                _
            $region110: #{fused_forward.1} parent=105 // pred_fallthru
              _
            // Predicated region
            $region111: #{fused_forward.1} parent=105 // pred_check
              %p929 = pneg %p925
            $region112: #{fused_forward.1} parent=105 // pred_check_branch
              %931 = sbr.rel (%p929) target = $region114
            $region113: #{fused_forward.1} parent=105 // pred_region
              %s932 = sshllo.u32 0, %s921
              loop: start=0, step=1, limit=1
              $region115: #{fused_forward.1} parent=113 // loop_pre_header
                _
              $region116: #{fused_forward.1} parent=113 // loop_header
                %s934 = sphi 0, %s938
                %p935 = scmp.ge.s32.totalorder %s934, 1
                %s939 = sphi %s920, %s920
                %s940 = sphi %s907, %s907
              $region117: #{fused_forward.1} parent=113 // loop_header_branch
                %937 = sbr.rel (%p935) target = $region121
              $region118: #{fused_forward.1} parent=113 // loop_body
                %v941 = vld [vmem:[%s939] sm:%s932]
                %942 = vst [vmem:[%s940] sm:%s932] %v941
                %v943 = vld [vmem:[%s939 + $0xc8] sm:%s932]
                %944 = vst [vmem:[%s940 + $0x68] sm:%s932] %v943
                %v945 = vld [vmem:[%s939 + $0x190] sm:%s932]
                %946 = vst [vmem:[%s940 + $0xd0] sm:%s932] %v945
              $region119: #{fused_forward.1} parent=113 // loop_footer
                %s938 = sadd.s32 1, %s934
              $region120: #{fused_forward.1} parent=113 // loop_footer_branch
                %933 = sbr.rel target = $region116
              $region121: #{fused_forward.1} parent=113 // loop_exit
                _
            $region114: #{fused_forward.1} parent=105 // pred_fallthru
              _
          $region106: #{fused_forward.1} parent=101 // pred_fallthru
            _
          %1371 = vnop
        $region102: #{fused_forward.1} parent=27 // pred_fallthru
          _
      $region28: #{fused_forward.1} parent=5 // pred_fallthru
        _
      %p1372 = scmp.le.s32.totalorder 1, %s12
      %p1373 = scmp.lt.s32.totalorder %s12, 5
      %p1374 = pnand %p1372, %p1373
      %p1375 = pneg %p1374
      // Predicated region
      $region165: #{fused_forward.1} parent=5 // pred_check
        _
      $region166: #{fused_forward.1} parent=5 // pred_check_branch
        %1377 = sbr.rel (%p1374) target = $region168
      $region167: #{fused_forward.1} parent=5 // pred_region
        %s1378 = ssub.s32 %s12, 1
        %s1379 = sand.u32 %s145, 1
        %s1380 = sand.u32 %s145, 1
        %s1381 = smul.addr %s1380, 1248
        %s1382 = scalar_lea.vmem [#allocation7], %s1381
        // Predicated region
        $region169: #{fused_forward.1} parent=167 // pred_check
          %p1383 = pneg %p158
        $region170: #{fused_forward.1} parent=167 // pred_check_branch
          %1385 = sbr.rel (%p1383) target = $region172
        $region171: #{fused_forward.1} parent=167 // pred_region
          _
        $region172: #{fused_forward.1} parent=167 // pred_fallthru
          _
        %s1386 = sand.u32 %s179, 1
        %s1387 = sand.u32 %s179, 1
        %s1388 = smul.addr %s1387, 312
        %s1389 = scalar_lea.vmem [#allocation8], %s1388
        // Predicated region
        $region173: #{fused_forward.1} parent=167 // pred_check
          %p1390 = pneg %p192
        $region174: #{fused_forward.1} parent=167 // pred_check_branch
          %1392 = sbr.rel (%p1390) target = $region176
        $region175: #{fused_forward.1} parent=167 // pred_region
          _
        $region176: #{fused_forward.1} parent=167 // pred_fallthru
          _
        %p1393 = scmp.eq.s32.totalorder %s22, 0
        %s1394 = scalar_select %p1393, %s23, 0
        %p1395 = scmp.lt.s32.totalorder %s1394, 0
        %s1396 = scalar_select %p1395, %s1394, 0
        %s1397 = scalar_lea.vmem %s0, %s1396
        %p1398 = pneg %p61
        %p1399 = pneg %p58
        %p1400 = pneg %p82
        %p1401 = pneg %p79
        %p1402 = pneg %p103
        %p1403 = pneg %p100
        %p1404 = pneg %p124
        %p1405 = pneg %p121
        %s1406 = sand.u32 %s145, 1
        %s1407 = sand.u32 %s145, 1
        %s1408 = smul.addr %s1407, 1248
        %s1409 = scalar_lea.vmem [#allocation7], %s1408
        %p1410 = pneg %p158
        %p1411 = pneg %p155
        %s1412 = sand.u32 %s179, 1
        %s1413 = sand.u32 %s179, 1
        %s1414 = smul.addr %s1413, 312
        %s1415 = scalar_lea.vmem [#allocation8], %s1414
        %p1416 = pneg %p192
        %p1417 = pneg %p189
        %p1418 = pneg %p226
        %p1419 = pneg %p223
        %s1420 = sand.u32 %s213, 1
        %s1421 = sand.u32 %s213, 1
        %s1422 = smul.addr %s1421, 312
        %s1423 = scalar_lea.vmem [#allocation9], %s1422
        %p1424 = scmp.eq.s32.totalorder %s22, 0
        %s1425 = scalar_select %p1424, %s23, 0
        %p1426 = scmp.lt.s32.totalorder %s1425, 0
        %s1427 = scalar_select %p1426, %s1425, 0
        %s1428 = scalar_lea.vmem %s0, %s1427
        %p1429 = scmp.eq.s32.totalorder %s22, 0
        %s1430 = scalar_select %p1429, %s23, 0
        %p1431 = scmp.eq.s32.totalorder %s22, 0
        %s1432 = scalar_select %p1431, %s23, 0
        %s1433 = scalar_select %p1431, %s24, 1
        %s1434 = smul.u32 13, %s1433
        %s1435 = ssub.s32 25, %s1434
        %p1436 = scmp.lt.s32.totalorder %s1435, 13
        %s1437 = scalar_select %p1436, %s1435, 13
        %s1438 = smul.u32 1536, %s1437
        %p1439 = scmp.eq.s32.totalorder %s22, 0
        %s1440 = scalar_select %p1439, 0, %s23
        %s1441 = scalar_select %p1439, 0, %s24
        %s1442 = smul.u32 13, %s1441
        %s1443 = ssub.s32 25, %s1442
        %p1444 = scmp.lt.s32.totalorder %s1443, 13
        %s1445 = scalar_select %p1444, %s1443, 13
        %s1446 = smul.u32 384, %s1445
        %p1447 = scmp.eq.s32.totalorder %s22, 0
        %s1448 = scalar_select %p1447, 0, %s23
        %s1449 = scalar_select %p1447, 0, %s24
        %s1450 = smul.u32 13, %s1449
        %s1451 = ssub.s32 25, %s1450
        %p1452 = scmp.lt.s32.totalorder %s1451, 13
        %s1453 = scalar_select %p1452, %s1451, 13
        %s1454 = smul.u32 384, %s1453
        %s1455 = smul.u32 %s23, 2
        %s1456 = sadd.s32 %s1455, %s24
        %p1457 = scmp.eq.s32.totalorder %s22, 0
        // Predicated region
        $region177: #{fused_forward.1} parent=167 // pred_check
          %p1458 = pneg %p1457
        $region178: #{fused_forward.1} parent=167 // pred_check_branch
          %1460 = sbr.rel (%p1458) target = $region180
        $region179: #{fused_forward.1} parent=167 // pred_region
          %p1461 = scmp.eq.s32.totalorder %s23, 0
          %p1462 = scmp.eq.s32.totalorder %s24, 0
          %p1463 = pnand %p1461, %p1462
          %p1464 = pneg %p1463
          // Predicated region
          $region181: #{fused_forward.1} parent=179 // pred_check
            _
          $region182: #{fused_forward.1} parent=179 // pred_check_branch
            %1466 = sbr.rel (%p1463) target = $region184
          $region183: #{fused_forward.1} parent=179 // pred_region
            %vm1467 = vcmask 7168
            %1468 = vst.msk [vmem:[#allocation3] sm:$0xff] %vm1467, 0.0
            %1469 = vst.msk [vmem:[#allocation3 + $0x8] sm:$0xff] %vm1467, 0.0
            %1470 = vst.msk [vmem:[#allocation3 + $0x10] sm:$0xff] %vm1467, 0.0
            %1471 = vst.msk [vmem:[#allocation4] sm:$0xff] %vm1467, 0.0
            %1472 = vst.msk [vmem:[#allocation4 + $0x8] sm:$0xff] %vm1467, 0.0
            %1473 = vst.msk [vmem:[#allocation4 + $0x10] sm:$0xff] %vm1467, 0.0
          $region184: #{fused_forward.1} parent=179 // pred_fallthru
            _
          %v1474 = vld [vmem:[%s1428] sm:$0x1]
          %v1475 = vsub.f32 0.0, %v1474
          %v1476 = vmul.f32 %v1475, 1.442695
          %v1477 = vpow.pop %v1476
          %v1478 = vadd.f32 %v1477, 1.0
          %v1479 = vrcp.pop %v1478
          %v1480 = vmul.f32 1.0, %v1479
          %v1481 = vld [vmem:[%s1] sm:$0xff]
          %v1482 = vld [vmem:[%s1 + $0x8] sm:$0xff]
          %v1483 = vld [vmem:[%s1 + $0x10] sm:$0xff]
          %v1485 = vlaneseq
          %v1486 = vshrl.u32 %v1485, 7
          %v1487 = vsub.s32 0, %v1486
          %v1488 = vrot.slane %v1480, %v1487
          %v1490 = vmul.f32 %v1481, %v1488
          %v1491 = vmul.f32 %v1482, %v1488
          %v1492 = vmul.f32 %v1483, %v1488
          %v1493 = vld [vmem:[%s1382] sm:$0xff]
          %v1494 = vld [vmem:[%s1382 + $0x8] sm:$0xff]
          %v1495 = vld [vmem:[%s1382 + $0x10] sm:$0xff]
          %v1496 = vld [vmem:[%s1382 + $0x18] sm:$0xff]
          %v1497 = vld [vmem:[%s1382 + $0x20] sm:$0xff]
          %v1498 = vld [vmem:[%s1382 + $0x28] sm:$0xff]
          %v1499 = vld [vmem:[%s1382 + $0x30] sm:$0xff]
          %v1500 = vld [vmem:[%s1382 + $0x38] sm:$0xff]
          %v1501 = vld [vmem:[%s1382 + $0x40] sm:$0xff]
          %v1502 = vld [vmem:[%s1382 + $0x48] sm:$0xff]
          %v1503 = vld [vmem:[%s1382 + $0x50] sm:$0xff]
          %v1504 = vld [vmem:[%s1382 + $0x58] sm:$0xff]
          %v1505 = vld [vmem:[%s1382 + $0x60] sm:$0xff]
          %v1506 = vld [vmem:[%s1382 + $0x68] sm:$0xff]
          %v1507 = vld [vmem:[%s1382 + $0x70] sm:$0xff]
          %v1508 = vld [vmem:[%s1382 + $0x78] sm:$0xff]
          %v1509 = vld [vmem:[%s1382 + $0x80] sm:$0xff]
          %v1510 = vld [vmem:[%s1382 + $0x88] sm:$0xff]
          %v1511 = vld [vmem:[%s1382 + $0x90] sm:$0xff]
          %v1512 = vld [vmem:[%s1382 + $0x98] sm:$0xff]
          %v1513 = vld [vmem:[%s1382 + $0xa0] sm:$0xff]
          %v1514 = vld [vmem:[%s1382 + $0xa8] sm:$0xff]
          %v1515 = vld [vmem:[%s1382 + $0xb0] sm:$0xff]
          %v1516 = vld [vmem:[%s1382 + $0xb8] sm:$0xff]
          %v1517 = vld [vmem:[%s1382 + $0xc0] sm:$0xff]
          %v1518 = vld [vmem:[%s1382 + $0xc8] sm:$0xff]
          %v1519 = vld [vmem:[%s1382 + $0xd0] sm:$0xff]
          %v1520 = vld [vmem:[%s1382 + $0xd8] sm:$0xff]
          %v1521 = vld [vmem:[%s1382 + $0xe0] sm:$0xff]
          %v1522 = vld [vmem:[%s1382 + $0xe8] sm:$0xff]
          %v1523 = vld [vmem:[%s1382 + $0xf0] sm:$0xff]
          %v1524 = vld [vmem:[%s1382 + $0xf8] sm:$0xff]
          %v1525 = vld [vmem:[%s1382 + $0x100] sm:$0xff]
          %v1526 = vld [vmem:[%s1382 + $0x108] sm:$0xff]
          %v1527 = vld [vmem:[%s1382 + $0x110] sm:$0xff]
          %v1528 = vld [vmem:[%s1382 + $0x118] sm:$0xff]
          %v1529 = vld [vmem:[%s1382 + $0x120] sm:$0xff]
          %v1530 = vld [vmem:[%s1382 + $0x128] sm:$0xff]
          %v1531 = vld [vmem:[%s1382 + $0x130] sm:$0xff]
          %v1532 = vld [vmem:[%s1382 + $0x138] sm:$0xff]
          %v1533 = vld [vmem:[%s1382 + $0x140] sm:$0xff]
          %v1534 = vld [vmem:[%s1382 + $0x148] sm:$0xff]
          %v1535 = vld [vmem:[%s1382 + $0x150] sm:$0xff]
          %v1536 = vld [vmem:[%s1382 + $0x158] sm:$0xff]
          %v1537 = vld [vmem:[%s1382 + $0x160] sm:$0xff]
          %v1538 = vld [vmem:[%s1382 + $0x168] sm:$0xff]
          %v1539 = vld [vmem:[%s1382 + $0x170] sm:$0xff]
          %v1540 = vld [vmem:[%s1382 + $0x178] sm:$0xff]
          %v1541 = vld [vmem:[%s1382 + $0x180] sm:$0xff]
          %v1542 = vld [vmem:[%s1382 + $0x188] sm:$0xff]
          %v1543 = vld [vmem:[%s1382 + $0x190] sm:$0xff]
          %v1544 = vld [vmem:[%s1382 + $0x198] sm:$0xff]
          %v1545 = vld [vmem:[%s1382 + $0x1a0] sm:$0xff]
          %v1546 = vld [vmem:[%s1382 + $0x1a8] sm:$0xff]
          %v1547 = vld [vmem:[%s1382 + $0x1b0] sm:$0xff]
          %v1548 = vld [vmem:[%s1382 + $0x1b8] sm:$0xff]
          %v1549 = vld [vmem:[%s1382 + $0x1c0] sm:$0xff]
          %v1550 = vld [vmem:[%s1382 + $0x1c8] sm:$0xff]
          %v1551 = vld [vmem:[%s1382 + $0x1d0] sm:$0xff]
          %v1552 = vld [vmem:[%s1382 + $0x1d8] sm:$0xff]
          %v1553 = vld [vmem:[%s1382 + $0x1e0] sm:$0xff]
          %v1554 = vld [vmem:[%s1382 + $0x1e8] sm:$0xff]
          %v1555 = vld [vmem:[%s1382 + $0x1f0] sm:$0xff]
          %v1556 = vld [vmem:[%s1382 + $0x1f8] sm:$0xff]
          %v1557 = vld [vmem:[%s1382 + $0x200] sm:$0xff]
          %v1558 = vld [vmem:[%s1382 + $0x208] sm:$0xff]
          %v1559 = vld [vmem:[%s1382 + $0x210] sm:$0xff]
          %v1560 = vld [vmem:[%s1382 + $0x218] sm:$0xff]
          %v1561 = vld [vmem:[%s1382 + $0x220] sm:$0xff]
          %v1562 = vld [vmem:[%s1382 + $0x228] sm:$0xff]
          %v1563 = vld [vmem:[%s1382 + $0x230] sm:$0xff]
          %v1564 = vld [vmem:[%s1382 + $0x238] sm:$0xff]
          %v1565 = vld [vmem:[%s1382 + $0x240] sm:$0xff]
          %v1566 = vld [vmem:[%s1382 + $0x248] sm:$0xff]
          %v1567 = vld [vmem:[%s1382 + $0x250] sm:$0xff]
          %v1568 = vld [vmem:[%s1382 + $0x258] sm:$0xff]
          %v1569 = vld [vmem:[%s1382 + $0x260] sm:$0xff]
          %v1570 = vld [vmem:[%s1382 + $0x268] sm:$0xff]
          %v1571 = vld [vmem:[%s1382 + $0x270] sm:$0xff]
          %v1572 = vld [vmem:[%s1382 + $0x278] sm:$0xff]
          %v1573 = vld [vmem:[%s1382 + $0x280] sm:$0xff]
          %v1574 = vld [vmem:[%s1382 + $0x288] sm:$0xff]
          %v1575 = vld [vmem:[%s1382 + $0x290] sm:$0xff]
          %v1576 = vld [vmem:[%s1382 + $0x298] sm:$0xff]
          %v1577 = vld [vmem:[%s1382 + $0x2a0] sm:$0xff]
          %v1578 = vld [vmem:[%s1382 + $0x2a8] sm:$0xff]
          %v1579 = vld [vmem:[%s1382 + $0x2b0] sm:$0xff]
          %v1580 = vld [vmem:[%s1382 + $0x2b8] sm:$0xff]
          %v1581 = vld [vmem:[%s1382 + $0x2c0] sm:$0xff]
          %v1582 = vld [vmem:[%s1382 + $0x2c8] sm:$0xff]
          %v1583 = vld [vmem:[%s1382 + $0x2d0] sm:$0xff]
          %v1584 = vld [vmem:[%s1382 + $0x2d8] sm:$0xff]
          %v1585 = vld [vmem:[%s1382 + $0x2e0] sm:$0xff]
          %v1586 = vld [vmem:[%s1382 + $0x2e8] sm:$0xff]
          %v1587 = vld [vmem:[%s1382 + $0x2f0] sm:$0xff]
          %v1588 = vld [vmem:[%s1382 + $0x2f8] sm:$0xff]
          %v1589 = vld [vmem:[%s1382 + $0x300] sm:$0xff]
          %v1590 = vld [vmem:[%s1382 + $0x308] sm:$0xff]
          %v1591 = vld [vmem:[%s1382 + $0x310] sm:$0xff]
          %v1592 = vld [vmem:[%s1382 + $0x318] sm:$0xff]
          %v1593 = vld [vmem:[%s1382 + $0x320] sm:$0xff]
          %v1594 = vld [vmem:[%s1382 + $0x328] sm:$0xff]
          %v1595 = vld [vmem:[%s1382 + $0x330] sm:$0xff]
          %v1596 = vld [vmem:[%s1382 + $0x338] sm:$0xff]
          %v1597 = vld [vmem:[%s1382 + $0x340] sm:$0xff]
          %v1598 = vld [vmem:[%s1382 + $0x348] sm:$0xff]
          %v1599 = vld [vmem:[%s1382 + $0x350] sm:$0xff]
          %v1600 = vld [vmem:[%s1382 + $0x358] sm:$0xff]
          %v1601 = vld [vmem:[%s1382 + $0x360] sm:$0xff]
          %v1602 = vld [vmem:[%s1382 + $0x368] sm:$0xff]
          %v1603 = vld [vmem:[%s1382 + $0x370] sm:$0xff]
          %v1604 = vld [vmem:[%s1382 + $0x378] sm:$0xff]
          %v1605 = vld [vmem:[%s1382 + $0x380] sm:$0xff]
          %v1606 = vld [vmem:[%s1382 + $0x388] sm:$0xff]
          %v1607 = vld [vmem:[%s1382 + $0x390] sm:$0xff]
          %v1608 = vld [vmem:[%s1382 + $0x398] sm:$0xff]
          %v1609 = vld [vmem:[%s1382 + $0x3a0] sm:$0xff]
          %v1610 = vld [vmem:[%s1382 + $0x3a8] sm:$0xff]
          %v1611 = vld [vmem:[%s1382 + $0x3b0] sm:$0xff]
          %v1612 = vld [vmem:[%s1382 + $0x3b8] sm:$0xff]
          %v1613 = vld [vmem:[%s1382 + $0x3c0] sm:$0xff]
          %v1614 = vld [vmem:[%s1382 + $0x3c8] sm:$0xff]
          %v1615 = vld [vmem:[%s1382 + $0x3d0] sm:$0xff]
          %v1616 = vld [vmem:[%s1382 + $0x3d8] sm:$0xff]
          %v1617 = vld [vmem:[%s1382 + $0x3e0] sm:$0xff]
          %v1618 = vld [vmem:[%s1382 + $0x3e8] sm:$0xff]
          %v1619 = vld [vmem:[%s1382 + $0x3f0] sm:$0xff]
          %v1620 = vld [vmem:[%s1382 + $0x3f8] sm:$0xff]
          %v1621 = vld [vmem:[%s1382 + $0x400] sm:$0xff]
          %v1622 = vld [vmem:[%s1382 + $0x408] sm:$0xff]
          %v1623 = vld [vmem:[%s1382 + $0x410] sm:$0xff]
          %v1624 = vld [vmem:[%s1382 + $0x418] sm:$0xff]
          %v1625 = vld [vmem:[%s1382 + $0x420] sm:$0xff]
          %v1626 = vld [vmem:[%s1382 + $0x428] sm:$0xff]
          %v1627 = vld [vmem:[%s1382 + $0x430] sm:$0xff]
          %v1628 = vld [vmem:[%s1382 + $0x438] sm:$0xff]
          %v1629 = vld [vmem:[%s1382 + $0x440] sm:$0xff]
          %v1630 = vld [vmem:[%s1382 + $0x448] sm:$0xff]
          %v1631 = vld [vmem:[%s1382 + $0x450] sm:$0xff]
          %v1632 = vld [vmem:[%s1382 + $0x458] sm:$0xff]
          %v1633 = vld [vmem:[%s1382 + $0x460] sm:$0xff]
          %v1634 = vld [vmem:[%s1382 + $0x468] sm:$0xff]
          %v1635 = vld [vmem:[%s1382 + $0x470] sm:$0xff]
          %v1636 = vld [vmem:[%s1382 + $0x478] sm:$0xff]
          %v1637 = vld [vmem:[%s1382 + $0x480] sm:$0xff]
          %v1638 = vld [vmem:[%s1382 + $0x488] sm:$0xff]
          %v1639 = vld [vmem:[%s1382 + $0x490] sm:$0xff]
          %v1640 = vld [vmem:[%s1382 + $0x498] sm:$0xff]
          %v1641 = vld [vmem:[%s1382 + $0x4a0] sm:$0xff]
          %v1642 = vld [vmem:[%s1382 + $0x4a8] sm:$0xff]
          %v1643 = vld [vmem:[%s1382 + $0x4b0] sm:$0xff]
          %v1644 = vld [vmem:[%s1382 + $0x4b8] sm:$0xff]
          %v1645 = vld [vmem:[%s1382 + $0x4c0] sm:$0xff]
          %v1646 = vld [vmem:[%s1382 + $0x4c8] sm:$0xff]
          %v1647 = vld [vmem:[%s1382 + $0x4d0] sm:$0xff]
          %v1648 = vld [vmem:[%s1382 + $0x4d8] sm:$0xff]
          %vm1649 = vcmask 785408
          %v1651 = vsel %vm1649, %v1490, 0
          %v1654 = vsel %vm1649, %v1491, 0
          %v1657 = vsel %vm1649, %v1492, 0
          %1659 = vmatprep.subr.mxu0 %v1494
          %1660 = vmatpush1.msra.mxu0 %v1493
          %1661 = vmatprep.subr.mxu0 %v1507
          %1662 = vmatpush1.msra.mxu0 %v1506
          %1663 = vmatprep.subr.mxu0 %v1520
          %1664 = vmatpush1.msra.mxu0 %v1519
          %1665 = vmatprep.subr.mxu0 %v1533
          %1666 = vmatpush1.msra.mxu0 %v1532
          %1667 = vmatprep.subr.mxu0 %v1546
          %1668 = vmatpush1.msra.mxu0 %v1545
          %1669 = vmatprep.subr.mxu0 %v1559
          %1670 = vmatpush1.msra.mxu0 %v1558
          %1671 = vmatprep.subr.mxu0 %v1572
          %1672 = vmatpush1.msra.mxu0 %v1571
          %1673 = vmatprep.subr.mxu0 %v1585
          %1674 = vmatpush1.msra.mxu0 %v1584
          %1675 = vmatprep.subr.mxu0 %v1598
          %1676 = vmatpush1.msra.mxu0 %v1597
          %1677 = vmatprep.subr.mxu0 %v1611
          %1678 = vmatpush1.msra.mxu0 %v1610
          %1679 = vmatprep.subr.mxu0 %v1624
          %1680 = vmatpush1.msra.mxu0 %v1623
          %1681 = vmatprep.subr.mxu0 %v1637
          %1682 = vmatpush1.msra.mxu0 %v1636
          %1683 = vmatprep.subr.mxu0 0.0
          %1684 = vmatpush1.msra.mxu0 0.0
          %1685 = vmatprep.subr.mxu0 0.0
          %1686 = vmatpush1.msra.mxu0 0.0
          %1687 = vmatprep.subr.mxu0 0.0
          %1688 = vmatpush1.msra.mxu0 0.0
          %1689 = vmatprep.subr.mxu0 0.0
          %1690 = vmatpush1.msra.mxu0 0.0
          %1691 = vmatprep.subr.mxu0 0.0
          %1692 = vmatpush1.msra.mxu0 0.0
          %1693 = vmatprep.subr.mxu0 0.0
          %1694 = vmatpush1.msra.mxu0 0.0
          %1695 = vmatprep.subr.mxu0 0.0
          %1696 = vmatpush1.msra.mxu0 0.0
          %1697 = vmatprep.subr.mxu0 0.0
          %1698 = vmatpush1.msra.mxu0 0.0
          %1699 = vmatprep.subr.mxu0 0.0
          %1700 = vmatpush1.msra.mxu0 0.0
          %1701 = vmatprep.subr.mxu0 0.0
          %1702 = vmatpush1.msra.mxu0 0.0
          %1703 = vmatprep.subr.mxu0 0.0
          %1704 = vmatpush1.msra.mxu0 0.0
          %1705 = vmatprep.subr.mxu0 0.0
          %1706 = vmatpush1.msra.mxu0 0.0
          %1707 = vmatprep.subr.mxu0 0.0
          %1708 = vmatpush1.msra.mxu0 0.0
          %1709 = vmatprep.subr.mxu0 0.0
          %1710 = vmatpush1.msra.mxu0 0.0
          %1711 = vmatprep.subr.mxu0 0.0
          %1712 = vmatpush1.msra.mxu0 0.0
          %1713 = vmatprep.subr.mxu0 0.0
          %1714 = vmatpush1.msra.mxu0 0.0
          %1715 = vmatprep.subr.mxu0 0.0
          %1716 = vmatpush1.msra.mxu0 0.0
          %1717 = vmatprep.subr.mxu0 0.0
          %1718 = vmatpush1.msra.mxu0 0.0
          %1719 = vmatprep.subr.mxu0 0.0
          %1720 = vmatpush1.msra.mxu0 0.0
          %1721 = vmatprep.subr.mxu0 0.0
          %1722 = vmatpush1.msra.mxu0 0.0
          %1723 = vmatprep.mubr.f32.mxu0 0.0
          %1724 = vmatmul.mubr.f32.gmra.mrb[0].mxu0 %v1651
          %v1725 = vpop.f32.mrb[0].mxu0
          %v1726 = vadd.f32 0.0, %v1725
          %v1727 = vpop.f32.mrb[0].mxu0
          %v1728 = vadd.f32 0.0, %v1727
          %1729 = vmatprep.mubr.f32.mxu0 0.0
          %1730 = vmatmul.mubr.f32.gmra.mrb[0].mxu0 %v1654
          %v1731 = vpop.f32.mrb[0].mxu0
          %v1732 = vadd.f32 0.0, %v1731
          %v1733 = vpop.f32.mrb[0].mxu0
          %v1734 = vadd.f32 0.0, %v1733
          %1735 = vmatprep.mubr.f32.mxu0 0.0
          %1736 = vmatmul.mubr.f32.gmra.mrb[0].mxu0 %v1657
          %v1737 = vpop.f32.mrb[0].mxu0
          %v1738 = vadd.f32 0.0, %v1737
          %v1739 = vpop.f32.mrb[0].mxu0
          %v1740 = vadd.f32 0.0, %v1739
          %1741 = vdwg.mxu0
          %1742 = vmatprep.subr.mxu0 %v1496
          %1743 = vmatpush1.msra.mxu0 %v1495
          %1744 = vmatprep.subr.mxu0 %v1509
          %1745 = vmatpush1.msra.mxu0 %v1508
          %1746 = vmatprep.subr.mxu0 %v1522
          %1747 = vmatpush1.msra.mxu0 %v1521
          %1748 = vmatprep.subr.mxu0 %v1535
          %1749 = vmatpush1.msra.mxu0 %v1534
          %1750 = vmatprep.subr.mxu0 %v1548
          %1751 = vmatpush1.msra.mxu0 %v1547
          %1752 = vmatprep.subr.mxu0 %v1561
          %1753 = vmatpush1.msra.mxu0 %v1560
          %1754 = vmatprep.subr.mxu0 %v1574
          %1755 = vmatpush1.msra.mxu0 %v1573
          %1756 = vmatprep.subr.mxu0 %v1587
          %1757 = vmatpush1.msra.mxu0 %v1586
          %1758 = vmatprep.subr.mxu0 %v1600
          %1759 = vmatpush1.msra.mxu0 %v1599
          %1760 = vmatprep.subr.mxu0 %v1613
          %1761 = vmatpush1.msra.mxu0 %v1612
          %1762 = vmatprep.subr.mxu0 %v1626
          %1763 = vmatpush1.msra.mxu0 %v1625
          %1764 = vmatprep.subr.mxu0 %v1639
          %1765 = vmatpush1.msra.mxu0 %v1638
          %1766 = vmatprep.subr.mxu0 0.0
          %1767 = vmatpush1.msra.mxu0 0.0
          %1768 = vmatprep.subr.mxu0 0.0
          %1769 = vmatpush1.msra.mxu0 0.0
          %1770 = vmatprep.subr.mxu0 0.0
          %1771 = vmatpush1.msra.mxu0 0.0
          %1772 = vmatprep.subr.mxu0 0.0
          %1773 = vmatpush1.msra.mxu0 0.0
          %1774 = vmatprep.subr.mxu0 0.0
          %1775 = vmatpush1.msra.mxu0 0.0
          %1776 = vmatprep.subr.mxu0 0.0
          %1777 = vmatpush1.msra.mxu0 0.0
          %1778 = vmatprep.subr.mxu0 0.0
          %1779 = vmatpush1.msra.mxu0 0.0
          %1780 = vmatprep.subr.mxu0 0.0
          %1781 = vmatpush1.msra.mxu0 0.0
          %1782 = vmatprep.subr.mxu0 0.0
          %1783 = vmatpush1.msra.mxu0 0.0
          %1784 = vmatprep.subr.mxu0 0.0
          %1785 = vmatpush1.msra.mxu0 0.0
          %1786 = vmatprep.subr.mxu0 0.0
          %1787 = vmatpush1.msra.mxu0 0.0
          %1788 = vmatprep.subr.mxu0 0.0
          %1789 = vmatpush1.msra.mxu0 0.0
          %1790 = vmatprep.subr.mxu0 0.0
          %1791 = vmatpush1.msra.mxu0 0.0
          %1792 = vmatprep.subr.mxu0 0.0
          %1793 = vmatpush1.msra.mxu0 0.0
          %1794 = vmatprep.subr.mxu0 0.0
          %1795 = vmatpush1.msra.mxu0 0.0
          %1796 = vmatprep.subr.mxu0 0.0
          %1797 = vmatpush1.msra.mxu0 0.0
          %1798 = vmatprep.subr.mxu0 0.0
          %1799 = vmatpush1.msra.mxu0 0.0
          %1800 = vmatprep.subr.mxu0 0.0
          %1801 = vmatpush1.msra.mxu0 0.0
          %1802 = vmatprep.subr.mxu0 0.0
          %1803 = vmatpush1.msra.mxu0 0.0
          %1804 = vmatprep.subr.mxu0 0.0
          %1805 = vmatpush1.msra.mxu0 0.0
          %1806 = vmatprep.mubr.f32.mxu0 0.0
          %1807 = vmatmul.mubr.f32.gmra.mrb[0].mxu0 %v1651
          %v1808 = vpop.f32.mrb[0].mxu0
          %v1809 = vadd.f32 0.0, %v1808
          %v1810 = vpop.f32.mrb[0].mxu0
          %v1811 = vadd.f32 0.0, %v1810
          %1812 = vmatprep.mubr.f32.mxu0 0.0
          %1813 = vmatmul.mubr.f32.gmra.mrb[0].mxu0 %v1654
          %v1814 = vpop.f32.mrb[0].mxu0
          %v1815 = vadd.f32 0.0, %v1814
          %v1816 = vpop.f32.mrb[0].mxu0
          %v1817 = vadd.f32 0.0, %v1816
          %1818 = vmatprep.mubr.f32.mxu0 0.0
          %1819 = vmatmul.mubr.f32.gmra.mrb[0].mxu0 %v1657
          %v1820 = vpop.f32.mrb[0].mxu0
          %v1821 = vadd.f32 0.0, %v1820
          %v1822 = vpop.f32.mrb[0].mxu0
          %v1823 = vadd.f32 0.0, %v1822
          %1824 = vdwg.mxu0
          %1825 = vmatprep.subr.mxu0 %v1498
          %1826 = vmatpush1.msra.mxu0 %v1497
          %1827 = vmatprep.subr.mxu0 %v1511
          %1828 = vmatpush1.msra.mxu0 %v1510
          %1829 = vmatprep.subr.mxu0 %v1524
          %1830 = vmatpush1.msra.mxu0 %v1523
          %1831 = vmatprep.subr.mxu0 %v1537
          %1832 = vmatpush1.msra.mxu0 %v1536
          %1833 = vmatprep.subr.mxu0 %v1550
          %1834 = vmatpush1.msra.mxu0 %v1549
          %1835 = vmatprep.subr.mxu0 %v1563
          %1836 = vmatpush1.msra.mxu0 %v1562
          %1837 = vmatprep.subr.mxu0 %v1576
          %1838 = vmatpush1.msra.mxu0 %v1575
          %1839 = vmatprep.subr.mxu0 %v1589
          %1840 = vmatpush1.msra.mxu0 %v1588
          %1841 = vmatprep.subr.mxu0 %v1602
          %1842 = vmatpush1.msra.mxu0 %v1601
          %1843 = vmatprep.subr.mxu0 %v1615
          %1844 = vmatpush1.msra.mxu0 %v1614
          %1845 = vmatprep.subr.mxu0 %v1628
          %1846 = vmatpush1.msra.mxu0 %v1627
          %1847 = vmatprep.subr.mxu0 %v1641
          %1848 = vmatpush1.msra.mxu0 %v1640
          %1849 = vmatprep.subr.mxu0 0.0
          %1850 = vmatpush1.msra.mxu0 0.0
          %1851 = vmatprep.subr.mxu0 0.0
          %1852 = vmatpush1.msra.mxu0 0.0
          %1853 = vmatprep.subr.mxu0 0.0
          %1854 = vmatpush1.msra.mxu0 0.0
          %1855 = vmatprep.subr.mxu0 0.0
          %1856 = vmatpush1.msra.mxu0 0.0
          %1857 = vmatprep.subr.mxu0 0.0
          %1858 = vmatpush1.msra.mxu0 0.0
          %1859 = vmatprep.subr.mxu0 0.0
          %1860 = vmatpush1.msra.mxu0 0.0
          %1861 = vmatprep.subr.mxu0 0.0
          %1862 = vmatpush1.msra.mxu0 0.0
          %1863 = vmatprep.subr.mxu0 0.0
          %1864 = vmatpush1.msra.mxu0 0.0
          %1865 = vmatprep.subr.mxu0 0.0
          %1866 = vmatpush1.msra.mxu0 0.0
          %1867 = vmatprep.subr.mxu0 0.0
          %1868 = vmatpush1.msra.mxu0 0.0
          %1869 = vmatprep.subr.mxu0 0.0
          %1870 = vmatpush1.msra.mxu0 0.0
          %1871 = vmatprep.subr.mxu0 0.0
          %1872 = vmatpush1.msra.mxu0 0.0
          %1873 = vmatprep.subr.mxu0 0.0
          %1874 = vmatpush1.msra.mxu0 0.0
          %1875 = vmatprep.subr.mxu0 0.0
          %1876 = vmatpush1.msra.mxu0 0.0
          %1877 = vmatprep.subr.mxu0 0.0
          %1878 = vmatpush1.msra.mxu0 0.0
          %1879 = vmatprep.subr.mxu0 0.0
          %1880 = vmatpush1.msra.mxu0 0.0
          %1881 = vmatprep.subr.mxu0 0.0
          %1882 = vmatpush1.msra.mxu0 0.0
          %1883 = vmatprep.subr.mxu0 0.0
          %1884 = vmatpush1.msra.mxu0 0.0
          %1885 = vmatprep.subr.mxu0 0.0
          %1886 = vmatpush1.msra.mxu0 0.0
          %1887 = vmatprep.subr.mxu0 0.0
          %1888 = vmatpush1.msra.mxu0 0.0
          %1889 = vmatprep.mubr.f32.mxu0 0.0
          %1890 = vmatmul.mubr.f32.gmra.mrb[0].mxu0 %v1651
          %v1891 = vpop.f32.mrb[0].mxu0
          %v1892 = vadd.f32 0.0, %v1891
          %v1893 = vpop.f32.mrb[0].mxu0
          %v1894 = vadd.f32 0.0, %v1893
          %1895 = vmatprep.mubr.f32.mxu0 0.0
          %1896 = vmatmul.mubr.f32.gmra.mrb[0].mxu0 %v1654
          %v1897 = vpop.f32.mrb[0].mxu0
          %v1898 = vadd.f32 0.0, %v1897
          %v1899 = vpop.f32.mrb[0].mxu0
          %v1900 = vadd.f32 0.0, %v1899
          %1901 = vmatprep.mubr.f32.mxu0 0.0
          %1902 = vmatmul.mubr.f32.gmra.mrb[0].mxu0 %v1657
          %v1903 = vpop.f32.mrb[0].mxu0
          %v1904 = vadd.f32 0.0, %v1903
          %v1905 = vpop.f32.mrb[0].mxu0
          %v1906 = vadd.f32 0.0, %v1905
          %1907 = vdwg.mxu0
          %1908 = vmatprep.subr.mxu0 %v1500
          %1909 = vmatpush1.msra.mxu0 %v1499
          %1910 = vmatprep.subr.mxu0 %v1513
          %1911 = vmatpush1.msra.mxu0 %v1512
          %1912 = vmatprep.subr.mxu0 %v1526
          %1913 = vmatpush1.msra.mxu0 %v1525
          %1914 = vmatprep.subr.mxu0 %v1539
          %1915 = vmatpush1.msra.mxu0 %v1538
          %1916 = vmatprep.subr.mxu0 %v1552
          %1917 = vmatpush1.msra.mxu0 %v1551
          %1918 = vmatprep.subr.mxu0 %v1565
          %1919 = vmatpush1.msra.mxu0 %v1564
          %1920 = vmatprep.subr.mxu0 %v1578
          %1921 = vmatpush1.msra.mxu0 %v1577
          %1922 = vmatprep.subr.mxu0 %v1591
          %1923 = vmatpush1.msra.mxu0 %v1590
          %1924 = vmatprep.subr.mxu0 %v1604
          %1925 = vmatpush1.msra.mxu0 %v1603
          %1926 = vmatprep.subr.mxu0 %v1617
          %1927 = vmatpush1.msra.mxu0 %v1616
          %1928 = vmatprep.subr.mxu0 %v1630
          %1929 = vmatpush1.msra.mxu0 %v1629
          %1930 = vmatprep.subr.mxu0 %v1643
          %1931 = vmatpush1.msra.mxu0 %v1642
          %1932 = vmatprep.subr.mxu0 0.0
          %1933 = vmatpush1.msra.mxu0 0.0
          %1934 = vmatprep.subr.mxu0 0.0
          %1935 = vmatpush1.msra.mxu0 0.0
          %1936 = vmatprep.subr.mxu0 0.0
          %1937 = vmatpush1.msra.mxu0 0.0
          %1938 = vmatprep.subr.mxu0 0.0
          %1939 = vmatpush1.msra.mxu0 0.0
          %1940 = vmatprep.subr.mxu0 0.0
          %1941 = vmatpush1.msra.mxu0 0.0
          %1942 = vmatprep.subr.mxu0 0.0
          %1943 = vmatpush1.msra.mxu0 0.0
          %1944 = vmatprep.subr.mxu0 0.0
          %1945 = vmatpush1.msra.mxu0 0.0
          %1946 = vmatprep.subr.mxu0 0.0
          %1947 = vmatpush1.msra.mxu0 0.0
          %1948 = vmatprep.subr.mxu0 0.0
          %1949 = vmatpush1.msra.mxu0 0.0
          %1950 = vmatprep.subr.mxu0 0.0
          %1951 = vmatpush1.msra.mxu0 0.0
          %1952 = vmatprep.subr.mxu0 0.0
          %1953 = vmatpush1.msra.mxu0 0.0
          %1954 = vmatprep.subr.mxu0 0.0
          %1955 = vmatpush1.msra.mxu0 0.0
          %1956 = vmatprep.subr.mxu0 0.0
          %1957 = vmatpush1.msra.mxu0 0.0
          %1958 = vmatprep.subr.mxu0 0.0
          %1959 = vmatpush1.msra.mxu0 0.0
          %1960 = vmatprep.subr.mxu0 0.0
          %1961 = vmatpush1.msra.mxu0 0.0
          %1962 = vmatprep.subr.mxu0 0.0
          %1963 = vmatpush1.msra.mxu0 0.0
          %1964 = vmatprep.subr.mxu0 0.0
          %1965 = vmatpush1.msra.mxu0 0.0
          %1966 = vmatprep.subr.mxu0 0.0
          %1967 = vmatpush1.msra.mxu0 0.0
          %1968 = vmatprep.subr.mxu0 0.0
          %1969 = vmatpush1.msra.mxu0 0.0
          %1970 = vmatprep.subr.mxu0 0.0
          %1971 = vmatpush1.msra.mxu0 0.0
          %1972 = vmatprep.mubr.f32.mxu0 0.0
          %1973 = vmatmul.mubr.f32.gmra.mrb[0].mxu0 %v1651
          %v1974 = vpop.f32.mrb[0].mxu0
          %v1975 = vadd.f32 0.0, %v1974
          %v1976 = vpop.f32.mrb[0].mxu0
          %v1977 = vadd.f32 0.0, %v1976
          %1978 = vmatprep.mubr.f32.mxu0 0.0
          %1979 = vmatmul.mubr.f32.gmra.mrb[0].mxu0 %v1654
          %v1980 = vpop.f32.mrb[0].mxu0
          %v1981 = vadd.f32 0.0, %v1980
          %v1982 = vpop.f32.mrb[0].mxu0
          %v1983 = vadd.f32 0.0, %v1982
          %1984 = vmatprep.mubr.f32.mxu0 0.0
          %1985 = vmatmul.mubr.f32.gmra.mrb[0].mxu0 %v1657
          %v1986 = vpop.f32.mrb[0].mxu0
          %v1987 = vadd.f32 0.0, %v1986
          %v1988 = vpop.f32.mrb[0].mxu0
          %v1989 = vadd.f32 0.0, %v1988
          %1990 = vdwg.mxu0
          %1991 = vmatprep.subr.mxu0 %v1502
          %1992 = vmatpush1.msra.mxu0 %v1501
          %1993 = vmatprep.subr.mxu0 %v1515
          %1994 = vmatpush1.msra.mxu0 %v1514
          %1995 = vmatprep.subr.mxu0 %v1528
          %1996 = vmatpush1.msra.mxu0 %v1527
          %1997 = vmatprep.subr.mxu0 %v1541
          %1998 = vmatpush1.msra.mxu0 %v1540
          %1999 = vmatprep.subr.mxu0 %v1554
          %2000 = vmatpush1.msra.mxu0 %v1553
          %2001 = vmatprep.subr.mxu0 %v1567
          %2002 = vmatpush1.msra.mxu0 %v1566
          %2003 = vmatprep.subr.mxu0 %v1580
          %2004 = vmatpush1.msra.mxu0 %v1579
          %2005 = vmatprep.subr.mxu0 %v1593
          %2006 = vmatpush1.msra.mxu0 %v1592
          %2007 = vmatprep.subr.mxu0 %v1606
          %2008 = vmatpush1.msra.mxu0 %v1605
          %2009 = vmatprep.subr.mxu0 %v1619
          %2010 = vmatpush1.msra.mxu0 %v1618
          %2011 = vmatprep.subr.mxu0 %v1632
          %2012 = vmatpush1.msra.mxu0 %v1631
          %2013 = vmatprep.subr.mxu0 %v1645
          %2014 = vmatpush1.msra.mxu0 %v1644
          %2015 = vmatprep.subr.mxu0 0.0
          %2016 = vmatpush1.msra.mxu0 0.0
          %2017 = vmatprep.subr.mxu0 0.0
          %2018 = vmatpush1.msra.mxu0 0.0
          %2019 = vmatprep.subr.mxu0 0.0
          %2020 = vmatpush1.msra.mxu0 0.0
          %2021 = vmatprep.subr.mxu0 0.0
          %2022 = vmatpush1.msra.mxu0 0.0
          %2023 = vmatprep.subr.mxu0 0.0
          %2024 = vmatpush1.msra.mxu0 0.0
          %2025 = vmatprep.subr.mxu0 0.0
          %2026 = vmatpush1.msra.mxu0 0.0
          %2027 = vmatprep.subr.mxu0 0.0
          %2028 = vmatpush1.msra.mxu0 0.0
          %2029 = vmatprep.subr.mxu0 0.0
          %2030 = vmatpush1.msra.mxu0 0.0
          %2031 = vmatprep.subr.mxu0 0.0
          %2032 = vmatpush1.msra.mxu0 0.0
          %2033 = vmatprep.subr.mxu0 0.0
          %2034 = vmatpush1.msra.mxu0 0.0
          %2035 = vmatprep.subr.mxu0 0.0
          %2036 = vmatpush1.msra.mxu0 0.0
          %2037 = vmatprep.subr.mxu0 0.0
          %2038 = vmatpush1.msra.mxu0 0.0
          %2039 = vmatprep.subr.mxu0 0.0
          %2040 = vmatpush1.msra.mxu0 0.0
          %2041 = vmatprep.subr.mxu0 0.0
          %2042 = vmatpush1.msra.mxu0 0.0
          %2043 = vmatprep.subr.mxu0 0.0
          %2044 = vmatpush1.msra.mxu0 0.0
          %2045 = vmatprep.subr.mxu0 0.0
          %2046 = vmatpush1.msra.mxu0 0.0
          %2047 = vmatprep.subr.mxu0 0.0
          %2048 = vmatpush1.msra.mxu0 0.0
          %2049 = vmatprep.subr.mxu0 0.0
          %2050 = vmatpush1.msra.mxu0 0.0
          %2051 = vmatprep.subr.mxu0 0.0
          %2052 = vmatpush1.msra.mxu0 0.0
          %2053 = vmatprep.subr.mxu0 0.0
          %2054 = vmatpush1.msra.mxu0 0.0
          %2055 = vmatprep.mubr.f32.mxu0 0.0
          %2056 = vmatmul.mubr.f32.gmra.mrb[0].mxu0 %v1651
          %v2057 = vpop.f32.mrb[0].mxu0
          %v2058 = vadd.f32 0.0, %v2057
          %v2059 = vpop.f32.mrb[0].mxu0
          %v2060 = vadd.f32 0.0, %v2059
          %2061 = vmatprep.mubr.f32.mxu0 0.0
          %2062 = vmatmul.mubr.f32.gmra.mrb[0].mxu0 %v1654
          %v2063 = vpop.f32.mrb[0].mxu0
          %v2064 = vadd.f32 0.0, %v2063
          %v2065 = vpop.f32.mrb[0].mxu0
          %v2066 = vadd.f32 0.0, %v2065
          %2067 = vmatprep.mubr.f32.mxu0 0.0
          %2068 = vmatmul.mubr.f32.gmra.mrb[0].mxu0 %v1657
          %v2069 = vpop.f32.mrb[0].mxu0
          %v2070 = vadd.f32 0.0, %v2069
          %v2071 = vpop.f32.mrb[0].mxu0
          %v2072 = vadd.f32 0.0, %v2071
          %2073 = vdwg.mxu0
          %2074 = vmatprep.subr.mxu0 %v1504
          %2075 = vmatpush1.msra.mxu0 %v1503
          %2076 = vmatprep.subr.mxu0 %v1517
          %2077 = vmatpush1.msra.mxu0 %v1516
          %2078 = vmatprep.subr.mxu0 %v1530
          %2079 = vmatpush1.msra.mxu0 %v1529
          %2080 = vmatprep.subr.mxu0 %v1543
          %2081 = vmatpush1.msra.mxu0 %v1542
          %2082 = vmatprep.subr.mxu0 %v1556
          %2083 = vmatpush1.msra.mxu0 %v1555
          %2084 = vmatprep.subr.mxu0 %v1569
          %2085 = vmatpush1.msra.mxu0 %v1568
          %2086 = vmatprep.subr.mxu0 %v1582
          %2087 = vmatpush1.msra.mxu0 %v1581
          %2088 = vmatprep.subr.mxu0 %v1595
          %2089 = vmatpush1.msra.mxu0 %v1594
          %2090 = vmatprep.subr.mxu0 %v1608
          %2091 = vmatpush1.msra.mxu0 %v1607
          %2092 = vmatprep.subr.mxu0 %v1621
          %2093 = vmatpush1.msra.mxu0 %v1620
          %2094 = vmatprep.subr.mxu0 %v1634
          %2095 = vmatpush1.msra.mxu0 %v1633
          %2096 = vmatprep.subr.mxu0 %v1647
          %2097 = vmatpush1.msra.mxu0 %v1646
          %2098 = vmatprep.subr.mxu0 0.0
          %2099 = vmatpush1.msra.mxu0 0.0
          %2100 = vmatprep.subr.mxu0 0.0
          %2101 = vmatpush1.msra.mxu0 0.0
          %2102 = vmatprep.subr.mxu0 0.0
          %2103 = vmatpush1.msra.mxu0 0.0
          %2104 = vmatprep.subr.mxu0 0.0
          %2105 = vmatpush1.msra.mxu0 0.0
          %2106 = vmatprep.subr.mxu0 0.0
          %2107 = vmatpush1.msra.mxu0 0.0
          %2108 = vmatprep.subr.mxu0 0.0
          %2109 = vmatpush1.msra.mxu0 0.0
          %2110 = vmatprep.subr.mxu0 0.0
          %2111 = vmatpush1.msra.mxu0 0.0
          %2112 = vmatprep.subr.mxu0 0.0
          %2113 = vmatpush1.msra.mxu0 0.0
          %2114 = vmatprep.subr.mxu0 0.0
          %2115 = vmatpush1.msra.mxu0 0.0
          %2116 = vmatprep.subr.mxu0 0.0
          %2117 = vmatpush1.msra.mxu0 0.0
          %2118 = vmatprep.subr.mxu0 0.0
          %2119 = vmatpush1.msra.mxu0 0.0
          %2120 = vmatprep.subr.mxu0 0.0
          %2121 = vmatpush1.msra.mxu0 0.0
          %2122 = vmatprep.subr.mxu0 0.0
          %2123 = vmatpush1.msra.mxu0 0.0
          %2124 = vmatprep.subr.mxu0 0.0
          %2125 = vmatpush1.msra.mxu0 0.0
          %2126 = vmatprep.subr.mxu0 0.0
          %2127 = vmatpush1.msra.mxu0 0.0
          %2128 = vmatprep.subr.mxu0 0.0
          %2129 = vmatpush1.msra.mxu0 0.0
          %2130 = vmatprep.subr.mxu0 0.0
          %2131 = vmatpush1.msra.mxu0 0.0
          %2132 = vmatprep.subr.mxu0 0.0
          %2133 = vmatpush1.msra.mxu0 0.0
          %2134 = vmatprep.subr.mxu0 0.0
          %2135 = vmatpush1.msra.mxu0 0.0
          %2136 = vmatprep.subr.mxu0 0.0
          %2137 = vmatpush1.msra.mxu0 0.0
          %2138 = vmatprep.mubr.f32.mxu0 0.0
          %2139 = vmatmul.mubr.f32.gmra.mrb[0].mxu0 %v1651
          %v2140 = vpop.f32.mrb[0].mxu0
          %v2141 = vadd.f32 0.0, %v2140
          %v2142 = vpop.f32.mrb[0].mxu0
          %v2143 = vadd.f32 0.0, %v2142
          %2144 = vmatprep.mubr.f32.mxu0 0.0
          %2145 = vmatmul.mubr.f32.gmra.mrb[0].mxu0 %v1654
          %v2146 = vpop.f32.mrb[0].mxu0
          %v2147 = vadd.f32 0.0, %v2146
          %v2148 = vpop.f32.mrb[0].mxu0
          %v2149 = vadd.f32 0.0, %v2148
          %2150 = vmatprep.mubr.f32.mxu0 0.0
          %2151 = vmatmul.mubr.f32.gmra.mrb[0].mxu0 %v1657
          %v2152 = vpop.f32.mrb[0].mxu0
          %v2153 = vadd.f32 0.0, %v2152
          %v2154 = vpop.f32.mrb[0].mxu0
          %v2155 = vadd.f32 0.0, %v2154
          %2156 = vdwg.mxu0
          %2157 = vmatprep.subr.mxu0 0.0
          %2158 = vmatpush1.msra.mxu0 %v1505
          %2159 = vmatprep.subr.mxu0 0.0
          %2160 = vmatpush1.msra.mxu0 %v1518
          %2161 = vmatprep.subr.mxu0 0.0
          %2162 = vmatpush1.msra.mxu0 %v1531
          %2163 = vmatprep.subr.mxu0 0.0
          %2164 = vmatpush1.msra.mxu0 %v1544
          %2165 = vmatprep.subr.mxu0 0.0
          %2166 = vmatpush1.msra.mxu0 %v1557
          %2167 = vmatprep.subr.mxu0 0.0
          %2168 = vmatpush1.msra.mxu0 %v1570
          %2169 = vmatprep.subr.mxu0 0.0
          %2170 = vmatpush1.msra.mxu0 %v1583
          %2171 = vmatprep.subr.mxu0 0.0
          %2172 = vmatpush1.msra.mxu0 %v1596
          %2173 = vmatprep.subr.mxu0 0.0
          %2174 = vmatpush1.msra.mxu0 %v1609
          %2175 = vmatprep.subr.mxu0 0.0
          %2176 = vmatpush1.msra.mxu0 %v1622
          %2177 = vmatprep.subr.mxu0 0.0
          %2178 = vmatpush1.msra.mxu0 %v1635
          %2179 = vmatprep.subr.mxu0 0.0
          %2180 = vmatpush1.msra.mxu0 %v1648
          %2181 = vmatprep.subr.mxu0 0.0
          %2182 = vmatpush1.msra.mxu0 0.0
          %2183 = vmatprep.subr.mxu0 0.0
          %2184 = vmatpush1.msra.mxu0 0.0
          %2185 = vmatprep.subr.mxu0 0.0
          %2186 = vmatpush1.msra.mxu0 0.0
          %2187 = vmatprep.subr.mxu0 0.0
          %2188 = vmatpush1.msra.mxu0 0.0
          %2189 = vmatprep.subr.mxu0 0.0
          %2190 = vmatpush1.msra.mxu0 0.0
          %2191 = vmatprep.subr.mxu0 0.0
          %2192 = vmatpush1.msra.mxu0 0.0
          %2193 = vmatprep.subr.mxu0 0.0
          %2194 = vmatpush1.msra.mxu0 0.0
          %2195 = vmatprep.subr.mxu0 0.0
          %2196 = vmatpush1.msra.mxu0 0.0
          %2197 = vmatprep.subr.mxu0 0.0
          %2198 = vmatpush1.msra.mxu0 0.0
          %2199 = vmatprep.subr.mxu0 0.0
          %2200 = vmatpush1.msra.mxu0 0.0
          %2201 = vmatprep.subr.mxu0 0.0
          %2202 = vmatpush1.msra.mxu0 0.0
          %2203 = vmatprep.subr.mxu0 0.0
          %2204 = vmatpush1.msra.mxu0 0.0
          %2205 = vmatprep.subr.mxu0 0.0
          %2206 = vmatpush1.msra.mxu0 0.0
          %2207 = vmatprep.subr.mxu0 0.0
          %2208 = vmatpush1.msra.mxu0 0.0
          %2209 = vmatprep.subr.mxu0 0.0
          %2210 = vmatpush1.msra.mxu0 0.0
          %2211 = vmatprep.subr.mxu0 0.0
          %2212 = vmatpush1.msra.mxu0 0.0
          %2213 = vmatprep.subr.mxu0 0.0
          %2214 = vmatpush1.msra.mxu0 0.0
          %2215 = vmatprep.subr.mxu0 0.0
          %2216 = vmatpush1.msra.mxu0 0.0
          %2217 = vmatprep.subr.mxu0 0.0
          %2218 = vmatpush1.msra.mxu0 0.0
          %2219 = vmatprep.subr.mxu0 0.0
          %2220 = vmatpush1.msra.mxu0 0.0
          %2221 = vmatprep.mubr.f32.mxu0 0.0
          %2222 = vmatmul.mubr.f32.gmra.mrb[0].mxu0 %v1651
          %v2223 = vpop.f32.mrb[0].mxu0
          %v2224 = vadd.f32 0.0, %v2223
          %v2225 = vpop.f32.mrb[0].mxu0
          %2226 = vmatprep.mubr.f32.mxu0 0.0
          %2227 = vmatmul.mubr.f32.gmra.mrb[0].mxu0 %v1654
          %v2228 = vpop.f32.mrb[0].mxu0
          %v2229 = vadd.f32 0.0, %v2228
          %v2230 = vpop.f32.mrb[0].mxu0
          %2231 = vmatprep.mubr.f32.mxu0 0.0
          %2232 = vmatmul.mubr.f32.gmra.mrb[0].mxu0 %v1657
          %v2233 = vpop.f32.mrb[0].mxu0
          %v2234 = vadd.f32 0.0, %v2233
          %v2235 = vpop.f32.mrb[0].mxu0
          %2236 = vdwg.mxu0
          %s2237 = smul.u32 %s1456, 39
          %s2238 = smul.addr %s2237, 8
          %s2239 = scalar_lea.vmem [#allocation2], %s2238
          %2240 = vst [vmem:[%s2239] sm:$0xff] %v1726
          %2241 = vst [vmem:[%s2239 + $0x8] sm:$0xff] %v1728
          %2242 = vst [vmem:[%s2239 + $0x10] sm:$0xff] %v1809
          %2243 = vst [vmem:[%s2239 + $0x18] sm:$0xff] %v1811
          %2244 = vst [vmem:[%s2239 + $0x20] sm:$0xff] %v1892
          %2245 = vst [vmem:[%s2239 + $0x28] sm:$0xff] %v1894
          %2246 = vst [vmem:[%s2239 + $0x30] sm:$0xff] %v1975
          %2247 = vst [vmem:[%s2239 + $0x38] sm:$0xff] %v1977
          %2248 = vst [vmem:[%s2239 + $0x40] sm:$0xff] %v2058
          %2249 = vst [vmem:[%s2239 + $0x48] sm:$0xff] %v2060
          %2250 = vst [vmem:[%s2239 + $0x50] sm:$0xff] %v2141
          %2251 = vst [vmem:[%s2239 + $0x58] sm:$0xff] %v2143
          %2252 = vst [vmem:[%s2239 + $0x60] sm:$0xff] %v2224
          %2253 = vst [vmem:[%s2239 + $0x68] sm:$0xff] %v1732
          %2254 = vst [vmem:[%s2239 + $0x70] sm:$0xff] %v1734
          %2255 = vst [vmem:[%s2239 + $0x78] sm:$0xff] %v1815
          %2256 = vst [vmem:[%s2239 + $0x80] sm:$0xff] %v1817
          %2257 = vst [vmem:[%s2239 + $0x88] sm:$0xff] %v1898
          %2258 = vst [vmem:[%s2239 + $0x90] sm:$0xff] %v1900
          %2259 = vst [vmem:[%s2239 + $0x98] sm:$0xff] %v1981
          %2260 = vst [vmem:[%s2239 + $0xa0] sm:$0xff] %v1983
          %2261 = vst [vmem:[%s2239 + $0xa8] sm:$0xff] %v2064
          %2262 = vst [vmem:[%s2239 + $0xb0] sm:$0xff] %v2066
          %2263 = vst [vmem:[%s2239 + $0xb8] sm:$0xff] %v2147
          %2264 = vst [vmem:[%s2239 + $0xc0] sm:$0xff] %v2149
          %2265 = vst [vmem:[%s2239 + $0xc8] sm:$0xff] %v2229
          %2266 = vst [vmem:[%s2239 + $0xd0] sm:$0xff] %v1738
          %2267 = vst [vmem:[%s2239 + $0xd8] sm:$0xff] %v1740
          %2268 = vst [vmem:[%s2239 + $0xe0] sm:$0xff] %v1821
          %2269 = vst [vmem:[%s2239 + $0xe8] sm:$0xff] %v1823
          %2270 = vst [vmem:[%s2239 + $0xf0] sm:$0xff] %v1904
          %2271 = vst [vmem:[%s2239 + $0xf8] sm:$0xff] %v1906
          %2272 = vst [vmem:[%s2239 + $0x100] sm:$0xff] %v1987
          %2273 = vst [vmem:[%s2239 + $0x108] sm:$0xff] %v1989
          %2274 = vst [vmem:[%s2239 + $0x110] sm:$0xff] %v2070
          %2275 = vst [vmem:[%s2239 + $0x118] sm:$0xff] %v2072
          %2276 = vst [vmem:[%s2239 + $0x120] sm:$0xff] %v2153
          %2277 = vst [vmem:[%s2239 + $0x128] sm:$0xff] %v2155
          %2278 = vst [vmem:[%s2239 + $0x130] sm:$0xff] %v2234
          %p2279 = scmp.eq.s32.totalorder %s24, 1
          // Predicated region
          $region185: #{fused_forward.1} parent=179 // pred_check
            %p2280 = pneg %p2279
          $region186: #{fused_forward.1} parent=179 // pred_check_branch
            %2282 = sbr.rel (%p2280) target = $region188
          $region187: #{fused_forward.1} parent=179 // pred_region
            %s2283 = smul.u32 %s24, 1664
            %v2284 = vlaneseq
            %v2285 = vand.u32 %v2284, 127
            %v2286 = vadd.s32 %v2285, 128
            %v2287 = vadd.s32 %v2285, 256
            %v2288 = vadd.s32 %v2285, 384
            %v2289 = vadd.s32 %v2285, 512
            %v2290 = vadd.s32 %v2285, 640
            %v2291 = vadd.s32 %v2285, 768
            %v2292 = vadd.s32 %v2285, 896
            %v2293 = vadd.s32 %v2285, 1024
            %v2294 = vadd.s32 %v2285, 1152
            %v2295 = vadd.s32 %v2285, 1280
            %v2296 = vadd.s32 %v2285, 1408
            %v2297 = vadd.s32 %v2285, 1536
            %v2298 = vstv %s2283
            %v2299 = vadd.s32 %v2298, %v2285
            %v2300 = vadd.s32 %v2298, %v2286
            %v2301 = vadd.s32 %v2298, %v2287
            %v2302 = vadd.s32 %v2298, %v2288
            %v2303 = vadd.s32 %v2298, %v2289
            %v2304 = vadd.s32 %v2298, %v2290
            %v2305 = vadd.s32 %v2298, %v2291
            %v2306 = vadd.s32 %v2298, %v2292
            %v2307 = vadd.s32 %v2298, %v2293
            %v2308 = vadd.s32 %v2298, %v2294
            %v2309 = vadd.s32 %v2298, %v2295
            %v2310 = vadd.s32 %v2298, %v2296
            %v2311 = vadd.s32 %v2298, %v2297
            %vm2312 = vcmp.lt.s32.totalorder %v2299, 3136
            %vm2313 = vcmp.lt.s32.totalorder %v2300, 3136
            %vm2314 = vcmp.lt.s32.totalorder %v2301, 3136
            %vm2315 = vcmp.lt.s32.totalorder %v2302, 3136
            %vm2316 = vcmp.lt.s32.totalorder %v2303, 3136
            %vm2317 = vcmp.lt.s32.totalorder %v2304, 3136
            %vm2318 = vcmp.lt.s32.totalorder %v2305, 3136
            %vm2319 = vcmp.lt.s32.totalorder %v2306, 3136
            %vm2320 = vcmp.lt.s32.totalorder %v2307, 3136
            %vm2321 = vcmp.lt.s32.totalorder %v2308, 3136
            %vm2322 = vcmp.lt.s32.totalorder %v2309, 3136
            %vm2323 = vcmp.lt.s32.totalorder %v2310, 3136
            %vm2324 = vcmp.lt.s32.totalorder %v2311, 3136
            %v2325 = vsel %vm2312, %v1726, 0.0
            %v2326 = vsel %vm2313, %v1728, 0.0
            %v2327 = vsel %vm2314, %v1809, 0.0
            %v2328 = vsel %vm2315, %v1811, 0.0
            %v2329 = vsel %vm2316, %v1892, 0.0
            %v2330 = vsel %vm2317, %v1894, 0.0
            %v2331 = vsel %vm2318, %v1975, 0.0
            %v2332 = vsel %vm2319, %v1977, 0.0
            %v2333 = vsel %vm2320, %v2058, 0.0
            %v2334 = vsel %vm2321, %v2060, 0.0
            %v2335 = vsel %vm2322, %v2141, 0.0
            %v2336 = vsel %vm2323, %v2143, 0.0
            %v2337 = vsel %vm2324, %v2224, 0.0
            %v2338 = vsel %vm2312, %v1732, 0.0
            %v2339 = vsel %vm2313, %v1734, 0.0
            %v2340 = vsel %vm2314, %v1815, 0.0
            %v2341 = vsel %vm2315, %v1817, 0.0
            %v2342 = vsel %vm2316, %v1898, 0.0
            %v2343 = vsel %vm2317, %v1900, 0.0
            %v2344 = vsel %vm2318, %v1981, 0.0
            %v2345 = vsel %vm2319, %v1983, 0.0
            %v2346 = vsel %vm2320, %v2064, 0.0
            %v2347 = vsel %vm2321, %v2066, 0.0
            %v2348 = vsel %vm2322, %v2147, 0.0
            %v2349 = vsel %vm2323, %v2149, 0.0
            %v2350 = vsel %vm2324, %v2229, 0.0
            %v2351 = vsel %vm2312, %v1738, 0.0
            %v2352 = vsel %vm2313, %v1740, 0.0
            %v2353 = vsel %vm2314, %v1821, 0.0
            %v2354 = vsel %vm2315, %v1823, 0.0
            %v2355 = vsel %vm2316, %v1904, 0.0
            %v2356 = vsel %vm2317, %v1906, 0.0
            %v2357 = vsel %vm2318, %v1987, 0.0
            %v2358 = vsel %vm2319, %v1989, 0.0
            %v2359 = vsel %vm2320, %v2070, 0.0
            %v2360 = vsel %vm2321, %v2072, 0.0
            %v2361 = vsel %vm2322, %v2153, 0.0
            %v2362 = vsel %vm2323, %v2155, 0.0
            %v2363 = vsel %vm2324, %v2234, 0.0
            %v2364 = vld [vmem:[#allocation3] sm:$0xff]
            %v2365 = vld [vmem:[#allocation3 + $0x8] sm:$0xff]
            %v2366 = vld [vmem:[#allocation3 + $0x10] sm:$0xff]
            %v2367 = vadd.f32 %v2325, %v2326
            %v2368 = vadd.f32 %v2367, %v2327
            %v2369 = vadd.f32 %v2368, %v2328
            %v2370 = vadd.f32 %v2369, %v2329
            %v2371 = vadd.f32 %v2370, %v2330
            %v2372 = vadd.f32 %v2371, %v2331
            %v2373 = vadd.f32 %v2372, %v2332
            %v2374 = vadd.f32 %v2373, %v2333
            %v2375 = vadd.f32 %v2374, %v2334
            %v2376 = vadd.f32 %v2375, %v2335
            %v2377 = vadd.f32 %v2376, %v2336
            %v2378 = vadd.f32 %v2377, %v2337
            %2379 = vadd.xlane.f32.xlu0 %v2378
            %v2380 = vpop.xlane.xlu0 %2379
            %v2381 = vadd.f32 %v2338, %v2339
            %v2382 = vadd.f32 %v2381, %v2340
            %v2383 = vadd.f32 %v2382, %v2341
            %v2384 = vadd.f32 %v2383, %v2342
            %v2385 = vadd.f32 %v2384, %v2343
            %v2386 = vadd.f32 %v2385, %v2344
            %v2387 = vadd.f32 %v2386, %v2345
            %v2388 = vadd.f32 %v2387, %v2346
            %v2389 = vadd.f32 %v2388, %v2347
            %v2390 = vadd.f32 %v2389, %v2348
            %v2391 = vadd.f32 %v2390, %v2349
            %v2392 = vadd.f32 %v2391, %v2350
            %2393 = vadd.xlane.f32.xlu0 %v2392
            %v2394 = vpop.xlane.xlu0 %2393
            %v2395 = vadd.f32 %v2351, %v2352
            %v2396 = vadd.f32 %v2395, %v2353
            %v2397 = vadd.f32 %v2396, %v2354
            %v2398 = vadd.f32 %v2397, %v2355
            %v2399 = vadd.f32 %v2398, %v2356
            %v2400 = vadd.f32 %v2399, %v2357
            %v2401 = vadd.f32 %v2400, %v2358
            %v2402 = vadd.f32 %v2401, %v2359
            %v2403 = vadd.f32 %v2402, %v2360
            %v2404 = vadd.f32 %v2403, %v2361
            %v2405 = vadd.f32 %v2404, %v2362
            %v2406 = vadd.f32 %v2405, %v2363
            %2407 = vadd.xlane.f32.xlu0 %v2406
            %v2408 = vpop.xlane.xlu0 %2407
            %v2409 = vadd.f32 %v2364, %v2380
            %v2410 = vadd.f32 %v2365, %v2394
            %v2411 = vadd.f32 %v2366, %v2408
            %vm2412 = vcmask 7168
            %2413 = vst.msk [vmem:[#allocation3] sm:$0xff] %vm2412, %v2409
            %2414 = vst.msk [vmem:[#allocation3 + $0x8] sm:$0xff] %vm2412, %v2410
            %2415 = vst.msk [vmem:[#allocation3 + $0x10] sm:$0xff] %vm2412, %v2411
            %v2416 = vld [vmem:[#allocation4] sm:$0xff]
            %v2417 = vld [vmem:[#allocation4 + $0x8] sm:$0xff]
            %v2418 = vld [vmem:[#allocation4 + $0x10] sm:$0xff]
            %v2419 = vmul.f32 %v2325, %v2325
            %v2420 = vmul.f32 %v2326, %v2326
            %v2421 = vmul.f32 %v2327, %v2327
            %v2422 = vmul.f32 %v2328, %v2328
            %v2423 = vmul.f32 %v2329, %v2329
            %v2424 = vmul.f32 %v2330, %v2330
            %v2425 = vmul.f32 %v2331, %v2331
            %v2426 = vmul.f32 %v2332, %v2332
            %v2427 = vmul.f32 %v2333, %v2333
            %v2428 = vmul.f32 %v2334, %v2334
            %v2429 = vmul.f32 %v2335, %v2335
            %v2430 = vmul.f32 %v2336, %v2336
            %v2431 = vmul.f32 %v2337, %v2337
            %v2432 = vmul.f32 %v2338, %v2338
            %v2433 = vmul.f32 %v2339, %v2339
            %v2434 = vmul.f32 %v2340, %v2340
            %v2435 = vmul.f32 %v2341, %v2341
            %v2436 = vmul.f32 %v2342, %v2342
            %v2437 = vmul.f32 %v2343, %v2343
            %v2438 = vmul.f32 %v2344, %v2344
            %v2439 = vmul.f32 %v2345, %v2345
            %v2440 = vmul.f32 %v2346, %v2346
            %v2441 = vmul.f32 %v2347, %v2347
            %v2442 = vmul.f32 %v2348, %v2348
            %v2443 = vmul.f32 %v2349, %v2349
            %v2444 = vmul.f32 %v2350, %v2350
            %v2445 = vmul.f32 %v2351, %v2351
            %v2446 = vmul.f32 %v2352, %v2352
            %v2447 = vmul.f32 %v2353, %v2353
            %v2448 = vmul.f32 %v2354, %v2354
            %v2449 = vmul.f32 %v2355, %v2355
            %v2450 = vmul.f32 %v2356, %v2356
            %v2451 = vmul.f32 %v2357, %v2357
            %v2452 = vmul.f32 %v2358, %v2358
            %v2453 = vmul.f32 %v2359, %v2359
            %v2454 = vmul.f32 %v2360, %v2360
            %v2455 = vmul.f32 %v2361, %v2361
            %v2456 = vmul.f32 %v2362, %v2362
            %v2457 = vmul.f32 %v2363, %v2363
            %v2458 = vadd.f32 %v2419, %v2420
            %v2459 = vadd.f32 %v2458, %v2421
            %v2460 = vadd.f32 %v2459, %v2422
            %v2461 = vadd.f32 %v2460, %v2423
            %v2462 = vadd.f32 %v2461, %v2424
            %v2463 = vadd.f32 %v2462, %v2425
            %v2464 = vadd.f32 %v2463, %v2426
            %v2465 = vadd.f32 %v2464, %v2427
            %v2466 = vadd.f32 %v2465, %v2428
            %v2467 = vadd.f32 %v2466, %v2429
            %v2468 = vadd.f32 %v2467, %v2430
            %v2469 = vadd.f32 %v2468, %v2431
            %2470 = vadd.xlane.f32.xlu0 %v2469
            %v2471 = vpop.xlane.xlu0 %2470
            %v2472 = vadd.f32 %v2432, %v2433
            %v2473 = vadd.f32 %v2472, %v2434
            %v2474 = vadd.f32 %v2473, %v2435
            %v2475 = vadd.f32 %v2474, %v2436
            %v2476 = vadd.f32 %v2475, %v2437
            %v2477 = vadd.f32 %v2476, %v2438
            %v2478 = vadd.f32 %v2477, %v2439
            %v2479 = vadd.f32 %v2478, %v2440
            %v2480 = vadd.f32 %v2479, %v2441
            %v2481 = vadd.f32 %v2480, %v2442
            %v2482 = vadd.f32 %v2481, %v2443
            %v2483 = vadd.f32 %v2482, %v2444
            %2484 = vadd.xlane.f32.xlu0 %v2483
            %v2485 = vpop.xlane.xlu0 %2484
            %v2486 = vadd.f32 %v2445, %v2446
            %v2487 = vadd.f32 %v2486, %v2447
            %v2488 = vadd.f32 %v2487, %v2448
            %v2489 = vadd.f32 %v2488, %v2449
            %v2490 = vadd.f32 %v2489, %v2450
            %v2491 = vadd.f32 %v2490, %v2451
            %v2492 = vadd.f32 %v2491, %v2452
            %v2493 = vadd.f32 %v2492, %v2453
            %v2494 = vadd.f32 %v2493, %v2454
            %v2495 = vadd.f32 %v2494, %v2455
            %v2496 = vadd.f32 %v2495, %v2456
            %v2497 = vadd.f32 %v2496, %v2457
            %2498 = vadd.xlane.f32.xlu0 %v2497
            %v2499 = vpop.xlane.xlu0 %2498
            %v2500 = vadd.f32 %v2416, %v2471
            %v2501 = vadd.f32 %v2417, %v2485
            %v2502 = vadd.f32 %v2418, %v2499
            %2503 = vst.msk [vmem:[#allocation4] sm:$0xff] %vm2412, %v2500
            %2504 = vst.msk [vmem:[#allocation4 + $0x8] sm:$0xff] %vm2412, %v2501
            %2505 = vst.msk [vmem:[#allocation4 + $0x10] sm:$0xff] %vm2412, %v2502
          $region188: #{fused_forward.1} parent=179 // pred_fallthru
            _
          %p2506 = scmp.ne.s32.totalorder %s24, 1
          // Predicated region
          $region189: #{fused_forward.1} parent=179 // pred_check
            %p2507 = pneg %p2506
          $region190: #{fused_forward.1} parent=179 // pred_check_branch
            %2509 = sbr.rel (%p2507) target = $region192
          $region191: #{fused_forward.1} parent=179 // pred_region
            %v2510 = vld [vmem:[#allocation3] sm:$0xff]
            %v2511 = vld [vmem:[#allocation3 + $0x8] sm:$0xff]
            %v2512 = vld [vmem:[#allocation3 + $0x10] sm:$0xff]
            %v2513 = vadd.f32 %v1726, %v1728
            %v2514 = vadd.f32 %v2513, %v1809
            %v2515 = vadd.f32 %v2514, %v1811
            %v2516 = vadd.f32 %v2515, %v1892
            %v2517 = vadd.f32 %v2516, %v1894
            %v2518 = vadd.f32 %v2517, %v1975
            %v2519 = vadd.f32 %v2518, %v1977
            %v2520 = vadd.f32 %v2519, %v2058
            %v2521 = vadd.f32 %v2520, %v2060
            %v2522 = vadd.f32 %v2521, %v2141
            %v2523 = vadd.f32 %v2522, %v2143
            %v2524 = vadd.f32 %v2523, %v2224
            %2525 = vadd.xlane.f32.xlu0 %v2524
            %v2526 = vpop.xlane.xlu0 %2525
            %v2527 = vadd.f32 %v1732, %v1734
            %v2528 = vadd.f32 %v2527, %v1815
            %v2529 = vadd.f32 %v2528, %v1817
            %v2530 = vadd.f32 %v2529, %v1898
            %v2531 = vadd.f32 %v2530, %v1900
            %v2532 = vadd.f32 %v2531, %v1981
            %v2533 = vadd.f32 %v2532, %v1983
            %v2534 = vadd.f32 %v2533, %v2064
            %v2535 = vadd.f32 %v2534, %v2066
            %v2536 = vadd.f32 %v2535, %v2147
            %v2537 = vadd.f32 %v2536, %v2149
            %v2538 = vadd.f32 %v2537, %v2229
            %2539 = vadd.xlane.f32.xlu0 %v2538
            %v2540 = vpop.xlane.xlu0 %2539
            %v2541 = vadd.f32 %v1738, %v1740
            %v2542 = vadd.f32 %v2541, %v1821
            %v2543 = vadd.f32 %v2542, %v1823
            %v2544 = vadd.f32 %v2543, %v1904
            %v2545 = vadd.f32 %v2544, %v1906
            %v2546 = vadd.f32 %v2545, %v1987
            %v2547 = vadd.f32 %v2546, %v1989
            %v2548 = vadd.f32 %v2547, %v2070
            %v2549 = vadd.f32 %v2548, %v2072
            %v2550 = vadd.f32 %v2549, %v2153
            %v2551 = vadd.f32 %v2550, %v2155
            %v2552 = vadd.f32 %v2551, %v2234
            %2553 = vadd.xlane.f32.xlu0 %v2552
            %v2554 = vpop.xlane.xlu0 %2553
            %v2555 = vadd.f32 %v2510, %v2526
            %v2556 = vadd.f32 %v2511, %v2540
            %v2557 = vadd.f32 %v2512, %v2554
            %vm2558 = vcmask 7168
            %2559 = vst.msk [vmem:[#allocation3] sm:$0xff] %vm2558, %v2555
            %2560 = vst.msk [vmem:[#allocation3 + $0x8] sm:$0xff] %vm2558, %v2556
            %2561 = vst.msk [vmem:[#allocation3 + $0x10] sm:$0xff] %vm2558, %v2557
            %v2562 = vld [vmem:[#allocation4] sm:$0xff]
            %v2563 = vld [vmem:[#allocation4 + $0x8] sm:$0xff]
            %v2564 = vld [vmem:[#allocation4 + $0x10] sm:$0xff]
            %v2565 = vmul.f32 %v1726, %v1726
            %v2566 = vmul.f32 %v1728, %v1728
            %v2567 = vmul.f32 %v1809, %v1809
            %v2568 = vmul.f32 %v1811, %v1811
            %v2569 = vmul.f32 %v1892, %v1892
            %v2570 = vmul.f32 %v1894, %v1894
            %v2571 = vmul.f32 %v1975, %v1975
            %v2572 = vmul.f32 %v1977, %v1977
            %v2573 = vmul.f32 %v2058, %v2058
            %v2574 = vmul.f32 %v2060, %v2060
            %v2575 = vmul.f32 %v2141, %v2141
            %v2576 = vmul.f32 %v2143, %v2143
            %v2577 = vmul.f32 %v2224, %v2224
            %v2578 = vmul.f32 %v1732, %v1732
            %v2579 = vmul.f32 %v1734, %v1734
            %v2580 = vmul.f32 %v1815, %v1815
            %v2581 = vmul.f32 %v1817, %v1817
            %v2582 = vmul.f32 %v1898, %v1898
            %v2583 = vmul.f32 %v1900, %v1900
            %v2584 = vmul.f32 %v1981, %v1981
            %v2585 = vmul.f32 %v1983, %v1983
            %v2586 = vmul.f32 %v2064, %v2064
            %v2587 = vmul.f32 %v2066, %v2066
            %v2588 = vmul.f32 %v2147, %v2147
            %v2589 = vmul.f32 %v2149, %v2149
            %v2590 = vmul.f32 %v2229, %v2229
            %v2591 = vmul.f32 %v1738, %v1738
            %v2592 = vmul.f32 %v1740, %v1740
            %v2593 = vmul.f32 %v1821, %v1821
            %v2594 = vmul.f32 %v1823, %v1823
            %v2595 = vmul.f32 %v1904, %v1904
            %v2596 = vmul.f32 %v1906, %v1906
            %v2597 = vmul.f32 %v1987, %v1987
            %v2598 = vmul.f32 %v1989, %v1989
            %v2599 = vmul.f32 %v2070, %v2070
            %v2600 = vmul.f32 %v2072, %v2072
            %v2601 = vmul.f32 %v2153, %v2153
            %v2602 = vmul.f32 %v2155, %v2155
            %v2603 = vmul.f32 %v2234, %v2234
            %v2604 = vadd.f32 %v2565, %v2566
            %v2605 = vadd.f32 %v2604, %v2567
            %v2606 = vadd.f32 %v2605, %v2568
            %v2607 = vadd.f32 %v2606, %v2569
            %v2608 = vadd.f32 %v2607, %v2570
            %v2609 = vadd.f32 %v2608, %v2571
            %v2610 = vadd.f32 %v2609, %v2572
            %v2611 = vadd.f32 %v2610, %v2573
            %v2612 = vadd.f32 %v2611, %v2574
            %v2613 = vadd.f32 %v2612, %v2575
            %v2614 = vadd.f32 %v2613, %v2576
            %v2615 = vadd.f32 %v2614, %v2577
            %2616 = vadd.xlane.f32.xlu0 %v2615
            %v2617 = vpop.xlane.xlu0 %2616
            %v2618 = vadd.f32 %v2578, %v2579
            %v2619 = vadd.f32 %v2618, %v2580
            %v2620 = vadd.f32 %v2619, %v2581
            %v2621 = vadd.f32 %v2620, %v2582
            %v2622 = vadd.f32 %v2621, %v2583
            %v2623 = vadd.f32 %v2622, %v2584
            %v2624 = vadd.f32 %v2623, %v2585
            %v2625 = vadd.f32 %v2624, %v2586
            %v2626 = vadd.f32 %v2625, %v2587
            %v2627 = vadd.f32 %v2626, %v2588
            %v2628 = vadd.f32 %v2627, %v2589
            %v2629 = vadd.f32 %v2628, %v2590
            %2630 = vadd.xlane.f32.xlu0 %v2629
            %v2631 = vpop.xlane.xlu0 %2630
            %v2632 = vadd.f32 %v2591, %v2592
            %v2633 = vadd.f32 %v2632, %v2593
            %v2634 = vadd.f32 %v2633, %v2594
            %v2635 = vadd.f32 %v2634, %v2595
            %v2636 = vadd.f32 %v2635, %v2596
            %v2637 = vadd.f32 %v2636, %v2597
            %v2638 = vadd.f32 %v2637, %v2598
            %v2639 = vadd.f32 %v2638, %v2599
            %v2640 = vadd.f32 %v2639, %v2600
            %v2641 = vadd.f32 %v2640, %v2601
            %v2642 = vadd.f32 %v2641, %v2602
            %v2643 = vadd.f32 %v2642, %v2603
            %2644 = vadd.xlane.f32.xlu0 %v2643
            %v2645 = vpop.xlane.xlu0 %2644
            %v2646 = vadd.f32 %v2562, %v2617
            %v2647 = vadd.f32 %v2563, %v2631
            %v2648 = vadd.f32 %v2564, %v2645
            %2649 = vst.msk [vmem:[#allocation4] sm:$0xff] %vm2558, %v2646
            %2650 = vst.msk [vmem:[#allocation4 + $0x8] sm:$0xff] %vm2558, %v2647
            %2651 = vst.msk [vmem:[#allocation4 + $0x10] sm:$0xff] %vm2558, %v2648
          $region192: #{fused_forward.1} parent=179 // pred_fallthru
            _
        $region180: #{fused_forward.1} parent=167 // pred_fallthru
          _
        %p2652 = scmp.eq.s32.totalorder %s22, 1
        // Predicated region
        $region193: #{fused_forward.1} parent=167 // pred_check
          %p2653 = pneg %p2652
        $region194: #{fused_forward.1} parent=167 // pred_check_branch
          %2655 = sbr.rel (%p2653) target = $region196
        $region195: #{fused_forward.1} parent=167 // pred_region
          %p2656 = scmp.eq.s32.totalorder %s23, 0
          %p2657 = scmp.eq.s32.totalorder %s24, 0
          %p2658 = pnand %p2656, %p2657
          %p2659 = pneg %p2658
          // Predicated region
          $region197: #{fused_forward.1} parent=195 // pred_check
            _
          $region198: #{fused_forward.1} parent=195 // pred_check_branch
            %2661 = sbr.rel (%p2658) target = $region200
          $region199: #{fused_forward.1} parent=195 // pred_region
            %v2662 = vld [vmem:[#allocation3] sm:$0xff]
            %v2663 = vld [vmem:[#allocation3 + $0x8] sm:$0xff]
            %v2664 = vld [vmem:[#allocation3 + $0x10] sm:$0xff]
            %v2665 = vmul.f32 %v2662, 0.00031887754
            %v2666 = vmul.f32 %v2663, 0.00031887754
            %v2667 = vmul.f32 %v2664, 0.00031887754
            %v2668 = vld [vmem:[#allocation4] sm:$0xff]
            %v2669 = vld [vmem:[#allocation4 + $0x8] sm:$0xff]
            %v2670 = vld [vmem:[#allocation4 + $0x10] sm:$0xff]
            %v2671 = vmul.f32 %v2668, 0.00031887754
            %v2672 = vmul.f32 %v2669, 0.00031887754
            %v2673 = vmul.f32 %v2670, 0.00031887754
            %v2674 = vmul.f32 %v2665, %v2665
            %v2675 = vmul.f32 %v2666, %v2666
            %v2676 = vmul.f32 %v2667, %v2667
            %v2677 = vsub.f32 %v2671, %v2674
            %v2678 = vsub.f32 %v2672, %v2675
            %v2679 = vsub.f32 %v2673, %v2676
            %v2680 = vmax.f32 %v2677, 0.0
            %v2681 = vmax.f32 %v2678, 0.0
            %v2682 = vmax.f32 %v2679, 0.0
            %v2683 = vld [vmem:[%s2] sm:$0xff]
            %v2684 = vld [vmem:[%s2 + $0x8] sm:$0xff]
            %v2685 = vld [vmem:[%s2 + $0x10] sm:$0xff]
            %v2686 = vadd.f32 %v2680, 1e-05
            %v2687 = vadd.f32 %v2681, 1e-05
            %v2688 = vadd.f32 %v2682, 1e-05
            %v2689 = vrsqrt.pop %v2686
            %v2690 = vrsqrt.pop %v2687
            %v2691 = vrsqrt.pop %v2688
            %v2692 = vmul.f32 %v2683, %v2689
            %v2693 = vmul.f32 %v2684, %v2690
            %v2694 = vmul.f32 %v2685, %v2691
            %vm2695 = vcmask 7168
            %2696 = vst.msk [vmem:[#allocation5] sm:$0xff] %vm2695, %v2692
            %2697 = vst.msk [vmem:[#allocation5 + $0x8] sm:$0xff] %vm2695, %v2693
            %2698 = vst.msk [vmem:[#allocation5 + $0x10] sm:$0xff] %vm2695, %v2694
            %v2699 = vld [vmem:[%s3] sm:$0xff]
            %v2700 = vld [vmem:[%s3 + $0x8] sm:$0xff]
            %v2701 = vld [vmem:[%s3 + $0x10] sm:$0xff]
            %v2702 = vmul.f32 %v2692, %v2665
            %v2703 = vmul.f32 %v2693, %v2666
            %v2704 = vmul.f32 %v2694, %v2667
            %v2705 = vsub.f32 %v2699, %v2702
            %v2706 = vsub.f32 %v2700, %v2703
            %v2707 = vsub.f32 %v2701, %v2704
            %2708 = vst.msk [vmem:[#allocation6] sm:$0xff] %vm2695, %v2705
            %2709 = vst.msk [vmem:[#allocation6 + $0x8] sm:$0xff] %vm2695, %v2706
            %2710 = vst.msk [vmem:[#allocation6 + $0x10] sm:$0xff] %vm2695, %v2707
          $region200: #{fused_forward.1} parent=195 // pred_fallthru
            _
          %v2711 = vld [vmem:[%s1389] sm:$0xff]
          %v2712 = vld [vmem:[%s1389 + $0x8] sm:$0xff]
          %v2713 = vld [vmem:[%s1389 + $0x10] sm:$0xff]
          %v2714 = vld [vmem:[%s1389 + $0x18] sm:$0xff]
          %v2715 = vld [vmem:[%s1389 + $0x20] sm:$0xff]
          %v2716 = vld [vmem:[%s1389 + $0x28] sm:$0xff]
          %v2717 = vld [vmem:[%s1389 + $0x30] sm:$0xff]
          %v2718 = vld [vmem:[%s1389 + $0x38] sm:$0xff]
          %v2719 = vld [vmem:[%s1389 + $0x40] sm:$0xff]
          %v2720 = vld [vmem:[%s1389 + $0x48] sm:$0xff]
          %v2721 = vld [vmem:[%s1389 + $0x50] sm:$0xff]
          %v2722 = vld [vmem:[%s1389 + $0x58] sm:$0xff]
          %v2723 = vld [vmem:[%s1389 + $0x60] sm:$0xff]
          %v2724 = vld [vmem:[%s1389 + $0x68] sm:$0xff]
          %v2725 = vld [vmem:[%s1389 + $0x70] sm:$0xff]
          %v2726 = vld [vmem:[%s1389 + $0x78] sm:$0xff]
          %v2727 = vld [vmem:[%s1389 + $0x80] sm:$0xff]
          %v2728 = vld [vmem:[%s1389 + $0x88] sm:$0xff]
          %v2729 = vld [vmem:[%s1389 + $0x90] sm:$0xff]
          %v2730 = vld [vmem:[%s1389 + $0x98] sm:$0xff]
          %v2731 = vld [vmem:[%s1389 + $0xa0] sm:$0xff]
          %v2732 = vld [vmem:[%s1389 + $0xa8] sm:$0xff]
          %v2733 = vld [vmem:[%s1389 + $0xb0] sm:$0xff]
          %v2734 = vld [vmem:[%s1389 + $0xb8] sm:$0xff]
          %v2735 = vld [vmem:[%s1389 + $0xc0] sm:$0xff]
          %v2736 = vld [vmem:[%s1389 + $0xc8] sm:$0xff]
          %v2737 = vld [vmem:[%s1389 + $0xd0] sm:$0xff]
          %v2738 = vld [vmem:[%s1389 + $0xd8] sm:$0xff]
          %v2739 = vld [vmem:[%s1389 + $0xe0] sm:$0xff]
          %v2740 = vld [vmem:[%s1389 + $0xe8] sm:$0xff]
          %v2741 = vld [vmem:[%s1389 + $0xf0] sm:$0xff]
          %v2742 = vld [vmem:[%s1389 + $0xf8] sm:$0xff]
          %v2743 = vld [vmem:[%s1389 + $0x100] sm:$0xff]
          %v2744 = vld [vmem:[%s1389 + $0x108] sm:$0xff]
          %v2745 = vld [vmem:[%s1389 + $0x110] sm:$0xff]
          %v2746 = vld [vmem:[%s1389 + $0x118] sm:$0xff]
          %v2747 = vld [vmem:[%s1389 + $0x120] sm:$0xff]
          %v2748 = vld [vmem:[%s1389 + $0x128] sm:$0xff]
          %v2749 = vld [vmem:[%s1389 + $0x130] sm:$0xff]
          %v2750 = vld [vmem:[#allocation5] sm:$0xff]
          %v2751 = vld [vmem:[#allocation5 + $0x8] sm:$0xff]
          %v2752 = vld [vmem:[#allocation5 + $0x10] sm:$0xff]
          %s2753 = smul.u32 %s1456, 39
          %s2754 = smul.addr %s2753, 8
          %s2755 = scalar_lea.vmem [#allocation2], %s2754
          %v2756 = vld [vmem:[%s2755] sm:$0xff]
          %v2757 = vld [vmem:[%s2755 + $0x8] sm:$0xff]
          %v2758 = vld [vmem:[%s2755 + $0x10] sm:$0xff]
          %v2759 = vld [vmem:[%s2755 + $0x18] sm:$0xff]
          %v2760 = vld [vmem:[%s2755 + $0x20] sm:$0xff]
          %v2761 = vld [vmem:[%s2755 + $0x28] sm:$0xff]
          %v2762 = vld [vmem:[%s2755 + $0x30] sm:$0xff]
          %v2763 = vld [vmem:[%s2755 + $0x38] sm:$0xff]
          %v2764 = vld [vmem:[%s2755 + $0x40] sm:$0xff]
          %v2765 = vld [vmem:[%s2755 + $0x48] sm:$0xff]
          %v2766 = vld [vmem:[%s2755 + $0x50] sm:$0xff]
          %v2767 = vld [vmem:[%s2755 + $0x58] sm:$0xff]
          %v2768 = vld [vmem:[%s2755 + $0x60] sm:$0xff]
          %v2769 = vld [vmem:[%s2755 + $0x68] sm:$0xff]
          %v2770 = vld [vmem:[%s2755 + $0x70] sm:$0xff]
          %v2771 = vld [vmem:[%s2755 + $0x78] sm:$0xff]
          %v2772 = vld [vmem:[%s2755 + $0x80] sm:$0xff]
          %v2773 = vld [vmem:[%s2755 + $0x88] sm:$0xff]
          %v2774 = vld [vmem:[%s2755 + $0x90] sm:$0xff]
          %v2775 = vld [vmem:[%s2755 + $0x98] sm:$0xff]
          %v2776 = vld [vmem:[%s2755 + $0xa0] sm:$0xff]
          %v2777 = vld [vmem:[%s2755 + $0xa8] sm:$0xff]
          %v2778 = vld [vmem:[%s2755 + $0xb0] sm:$0xff]
          %v2779 = vld [vmem:[%s2755 + $0xb8] sm:$0xff]
          %v2780 = vld [vmem:[%s2755 + $0xc0] sm:$0xff]
          %v2781 = vld [vmem:[%s2755 + $0xc8] sm:$0xff]
          %v2782 = vld [vmem:[%s2755 + $0xd0] sm:$0xff]
          %v2783 = vld [vmem:[%s2755 + $0xd8] sm:$0xff]
          %v2784 = vld [vmem:[%s2755 + $0xe0] sm:$0xff]
          %v2785 = vld [vmem:[%s2755 + $0xe8] sm:$0xff]
          %v2786 = vld [vmem:[%s2755 + $0xf0] sm:$0xff]
          %v2787 = vld [vmem:[%s2755 + $0xf8] sm:$0xff]
          %v2788 = vld [vmem:[%s2755 + $0x100] sm:$0xff]
          %v2789 = vld [vmem:[%s2755 + $0x108] sm:$0xff]
          %v2790 = vld [vmem:[%s2755 + $0x110] sm:$0xff]
          %v2791 = vld [vmem:[%s2755 + $0x118] sm:$0xff]
          %v2792 = vld [vmem:[%s2755 + $0x120] sm:$0xff]
          %v2793 = vld [vmem:[%s2755 + $0x128] sm:$0xff]
          %v2794 = vld [vmem:[%s2755 + $0x130] sm:$0xff]
          %2796 = vset.pattern.permute.xlu0 0
          %2797 = vperm.xlu0 %2796, %v2750
          %v2798 = vpop.permute.xlu0 %2797
          %2801 = vset.pattern.permute.xlu0 0
          %2802 = vperm.xlu0 %2801, %v2751
          %v2803 = vpop.permute.xlu0 %2802
          %2806 = vset.pattern.permute.xlu0 0
          %2807 = vperm.xlu0 %2806, %v2752
          %v2808 = vpop.permute.xlu0 %2807
          %v2810 = vmul.f32 %v2798, %v2756
          %v2811 = vmul.f32 %v2798, %v2757
          %v2812 = vmul.f32 %v2798, %v2758
          %v2813 = vmul.f32 %v2798, %v2759
          %v2814 = vmul.f32 %v2798, %v2760
          %v2815 = vmul.f32 %v2798, %v2761
          %v2816 = vmul.f32 %v2798, %v2762
          %v2817 = vmul.f32 %v2798, %v2763
          %v2818 = vmul.f32 %v2798, %v2764
          %v2819 = vmul.f32 %v2798, %v2765
          %v2820 = vmul.f32 %v2798, %v2766
          %v2821 = vmul.f32 %v2798, %v2767
          %v2822 = vmul.f32 %v2798, %v2768
          %v2823 = vmul.f32 %v2803, %v2769
          %v2824 = vmul.f32 %v2803, %v2770
          %v2825 = vmul.f32 %v2803, %v2771
          %v2826 = vmul.f32 %v2803, %v2772
          %v2827 = vmul.f32 %v2803, %v2773
          %v2828 = vmul.f32 %v2803, %v2774
          %v2829 = vmul.f32 %v2803, %v2775
          %v2830 = vmul.f32 %v2803, %v2776
          %v2831 = vmul.f32 %v2803, %v2777
          %v2832 = vmul.f32 %v2803, %v2778
          %v2833 = vmul.f32 %v2803, %v2779
          %v2834 = vmul.f32 %v2803, %v2780
          %v2835 = vmul.f32 %v2803, %v2781
          %v2836 = vmul.f32 %v2808, %v2782
          %v2837 = vmul.f32 %v2808, %v2783
          %v2838 = vmul.f32 %v2808, %v2784
          %v2839 = vmul.f32 %v2808, %v2785
          %v2840 = vmul.f32 %v2808, %v2786
          %v2841 = vmul.f32 %v2808, %v2787
          %v2842 = vmul.f32 %v2808, %v2788
          %v2843 = vmul.f32 %v2808, %v2789
          %v2844 = vmul.f32 %v2808, %v2790
          %v2845 = vmul.f32 %v2808, %v2791
          %v2846 = vmul.f32 %v2808, %v2792
          %v2847 = vmul.f32 %v2808, %v2793
          %v2848 = vmul.f32 %v2808, %v2794
          %v2849 = vadd.f32 %v2711, %v2810
          %v2850 = vadd.f32 %v2712, %v2811
          %v2851 = vadd.f32 %v2713, %v2812
          %v2852 = vadd.f32 %v2714, %v2813
          %v2853 = vadd.f32 %v2715, %v2814
          %v2854 = vadd.f32 %v2716, %v2815
          %v2855 = vadd.f32 %v2717, %v2816
          %v2856 = vadd.f32 %v2718, %v2817
          %v2857 = vadd.f32 %v2719, %v2818
          %v2858 = vadd.f32 %v2720, %v2819
          %v2859 = vadd.f32 %v2721, %v2820
          %v2860 = vadd.f32 %v2722, %v2821
          %v2861 = vadd.f32 %v2723, %v2822
          %v2862 = vadd.f32 %v2724, %v2823
          %v2863 = vadd.f32 %v2725, %v2824
          %v2864 = vadd.f32 %v2726, %v2825
          %v2865 = vadd.f32 %v2727, %v2826
          %v2866 = vadd.f32 %v2728, %v2827
          %v2867 = vadd.f32 %v2729, %v2828
          %v2868 = vadd.f32 %v2730, %v2829
          %v2869 = vadd.f32 %v2731, %v2830
          %v2870 = vadd.f32 %v2732, %v2831
          %v2871 = vadd.f32 %v2733, %v2832
          %v2872 = vadd.f32 %v2734, %v2833
          %v2873 = vadd.f32 %v2735, %v2834
          %v2874 = vadd.f32 %v2736, %v2835
          %v2875 = vadd.f32 %v2737, %v2836
          %v2876 = vadd.f32 %v2738, %v2837
          %v2877 = vadd.f32 %v2739, %v2838
          %v2878 = vadd.f32 %v2740, %v2839
          %v2879 = vadd.f32 %v2741, %v2840
          %v2880 = vadd.f32 %v2742, %v2841
          %v2881 = vadd.f32 %v2743, %v2842
          %v2882 = vadd.f32 %v2744, %v2843
          %v2883 = vadd.f32 %v2745, %v2844
          %v2884 = vadd.f32 %v2746, %v2845
          %v2885 = vadd.f32 %v2747, %v2846
          %v2886 = vadd.f32 %v2748, %v2847
          %v2887 = vadd.f32 %v2749, %v2848
          %v2888 = vld [vmem:[#allocation6] sm:$0xff]
          %v2889 = vld [vmem:[#allocation6 + $0x8] sm:$0xff]
          %v2890 = vld [vmem:[#allocation6 + $0x10] sm:$0xff]
          %2892 = vset.pattern.permute.xlu0 0
          %2893 = vperm.xlu0 %2892, %v2888
          %v2894 = vpop.permute.xlu0 %2893
          %2897 = vset.pattern.permute.xlu0 0
          %2898 = vperm.xlu0 %2897, %v2889
          %v2899 = vpop.permute.xlu0 %2898
          %2902 = vset.pattern.permute.xlu0 0
          %2903 = vperm.xlu0 %2902, %v2890
          %v2904 = vpop.permute.xlu0 %2903
          %v2906 = vadd.f32 %v2849, %v2894
          %v2907 = vadd.f32 %v2850, %v2894
          %v2908 = vadd.f32 %v2851, %v2894
          %v2909 = vadd.f32 %v2852, %v2894
          %v2910 = vadd.f32 %v2853, %v2894
          %v2911 = vadd.f32 %v2854, %v2894
          %v2912 = vadd.f32 %v2855, %v2894
          %v2913 = vadd.f32 %v2856, %v2894
          %v2914 = vadd.f32 %v2857, %v2894
          %v2915 = vadd.f32 %v2858, %v2894
          %v2916 = vadd.f32 %v2859, %v2894
          %v2917 = vadd.f32 %v2860, %v2894
          %v2918 = vadd.f32 %v2861, %v2894
          %v2919 = vadd.f32 %v2862, %v2899
          %v2920 = vadd.f32 %v2863, %v2899
          %v2921 = vadd.f32 %v2864, %v2899
          %v2922 = vadd.f32 %v2865, %v2899
          %v2923 = vadd.f32 %v2866, %v2899
          %v2924 = vadd.f32 %v2867, %v2899
          %v2925 = vadd.f32 %v2868, %v2899
          %v2926 = vadd.f32 %v2869, %v2899
          %v2927 = vadd.f32 %v2870, %v2899
          %v2928 = vadd.f32 %v2871, %v2899
          %v2929 = vadd.f32 %v2872, %v2899
          %v2930 = vadd.f32 %v2873, %v2899
          %v2931 = vadd.f32 %v2874, %v2899
          %v2932 = vadd.f32 %v2875, %v2904
          %v2933 = vadd.f32 %v2876, %v2904
          %v2934 = vadd.f32 %v2877, %v2904
          %v2935 = vadd.f32 %v2878, %v2904
          %v2936 = vadd.f32 %v2879, %v2904
          %v2937 = vadd.f32 %v2880, %v2904
          %v2938 = vadd.f32 %v2881, %v2904
          %v2939 = vadd.f32 %v2882, %v2904
          %v2940 = vadd.f32 %v2883, %v2904
          %v2941 = vadd.f32 %v2884, %v2904
          %v2942 = vadd.f32 %v2885, %v2904
          %v2943 = vadd.f32 %v2886, %v2904
          %v2944 = vadd.f32 %v2887, %v2904
          %2945 = vst [vmem:[%s1423] sm:$0xff] %v2906
          %2946 = vst [vmem:[%s1423 + $0x8] sm:$0xff] %v2907
          %2947 = vst [vmem:[%s1423 + $0x10] sm:$0xff] %v2908
          %2948 = vst [vmem:[%s1423 + $0x18] sm:$0xff] %v2909
          %2949 = vst [vmem:[%s1423 + $0x20] sm:$0xff] %v2910
          %2950 = vst [vmem:[%s1423 + $0x28] sm:$0xff] %v2911
          %2951 = vst [vmem:[%s1423 + $0x30] sm:$0xff] %v2912
          %2952 = vst [vmem:[%s1423 + $0x38] sm:$0xff] %v2913
          %2953 = vst [vmem:[%s1423 + $0x40] sm:$0xff] %v2914
          %2954 = vst [vmem:[%s1423 + $0x48] sm:$0xff] %v2915
          %2955 = vst [vmem:[%s1423 + $0x50] sm:$0xff] %v2916
          %2956 = vst [vmem:[%s1423 + $0x58] sm:$0xff] %v2917
          %2957 = vst [vmem:[%s1423 + $0x60] sm:$0xff] %v2918
          %2958 = vst [vmem:[%s1423 + $0x68] sm:$0xff] %v2919
          %2959 = vst [vmem:[%s1423 + $0x70] sm:$0xff] %v2920
          %2960 = vst [vmem:[%s1423 + $0x78] sm:$0xff] %v2921
          %2961 = vst [vmem:[%s1423 + $0x80] sm:$0xff] %v2922
          %2962 = vst [vmem:[%s1423 + $0x88] sm:$0xff] %v2923
          %2963 = vst [vmem:[%s1423 + $0x90] sm:$0xff] %v2924
          %2964 = vst [vmem:[%s1423 + $0x98] sm:$0xff] %v2925
          %2965 = vst [vmem:[%s1423 + $0xa0] sm:$0xff] %v2926
          %2966 = vst [vmem:[%s1423 + $0xa8] sm:$0xff] %v2927
          %2967 = vst [vmem:[%s1423 + $0xb0] sm:$0xff] %v2928
          %2968 = vst [vmem:[%s1423 + $0xb8] sm:$0xff] %v2929
          %2969 = vst [vmem:[%s1423 + $0xc0] sm:$0xff] %v2930
          %2970 = vst [vmem:[%s1423 + $0xc8] sm:$0xff] %v2931
          %2971 = vst [vmem:[%s1423 + $0xd0] sm:$0xff] %v2932
          %2972 = vst [vmem:[%s1423 + $0xd8] sm:$0xff] %v2933
          %2973 = vst [vmem:[%s1423 + $0xe0] sm:$0xff] %v2934
          %2974 = vst [vmem:[%s1423 + $0xe8] sm:$0xff] %v2935
          %2975 = vst [vmem:[%s1423 + $0xf0] sm:$0xff] %v2936
          %2976 = vst [vmem:[%s1423 + $0xf8] sm:$0xff] %v2937
          %2977 = vst [vmem:[%s1423 + $0x100] sm:$0xff] %v2938
          %2978 = vst [vmem:[%s1423 + $0x108] sm:$0xff] %v2939
          %2979 = vst [vmem:[%s1423 + $0x110] sm:$0xff] %v2940
          %2980 = vst [vmem:[%s1423 + $0x118] sm:$0xff] %v2941
          %2981 = vst [vmem:[%s1423 + $0x120] sm:$0xff] %v2942
          %2982 = vst [vmem:[%s1423 + $0x128] sm:$0xff] %v2943
          %2983 = vst [vmem:[%s1423 + $0x130] sm:$0xff] %v2944
        $region196: #{fused_forward.1} parent=167 // pred_fallthru
          _
        %s2984 = sand.u32 %s213, 1
        %s2985 = sand.u32 %s213, 1
        %s2986 = smul.addr %s2985, 312
        %s2987 = scalar_lea.vmem [#allocation9], %s2986
        // Predicated region
        $region201: #{fused_forward.1} parent=167 // pred_check
          %p2988 = pneg %p223
        $region202: #{fused_forward.1} parent=167 // pred_check_branch
          %2990 = sbr.rel (%p2988) target = $region204
        $region203: #{fused_forward.1} parent=167 // pred_region
          %p2991 = scmp.eq.s32.totalorder %s22, 0
          %s2992 = scalar_select %p2991, 0, %s23
          %s2993 = scalar_select %p2991, 0, %s24
          %s2994 = smul.u32 13, %s2993
          %s2995 = ssub.s32 25, %s2994
          %p2996 = scmp.lt.s32.totalorder %s2995, 13
          %s2997 = scalar_select %p2996, %s2995, 13
          %s2998 = smul.u32 384, %s2997
          %p2999 = scmp.ne.s32.totalorder 0, %s2998
          %s3000 = smul.addr %s2992, 75
          %s3001 = sadd.s32 %s2994, %s3000
          %s3002 = smul.addr %s3001, 8
          %s3003 = scalar_lea.vmem %s6, %s3002
          %s3004 = smul.u32 %s2997, 8
          // Predicated region
          $region205: #{fused_forward.1} parent=203 // pred_check
            %p3005 = pneg %p2999
          $region206: #{fused_forward.1} parent=203 // pred_check_branch
            %3007 = sbr.rel (%p3005) target = $region208
          $region207: #{fused_forward.1} parent=203 // pred_region
            %p3008 = scmp.lt.u32.totalorder %s3004, 8
            %p3009 = pneg %p3008
            // Predicated region
            $region209: #{fused_forward.1} parent=207 // pred_check
              _
            $region210: #{fused_forward.1} parent=207 // pred_check_branch
              %3011 = sbr.rel (%p3008) target = $region212
            $region211: #{fused_forward.1} parent=207 // pred_region
              %s3030 = sand.u32 %s3004, 7
              %p3031 = scmp.eq.s32.totalorder %s3030, 0
              // Predicated region
              $region224: #{fused_forward.1} parent=211 // pred_check
                %p3032 = pneg %p3031
              $region225: #{fused_forward.1} parent=211 // pred_check_branch
                %3034 = sbr.rel (%p3032) target = $region227
              $region226: #{fused_forward.1} parent=211 // pred_region
                %s3035 = sshrl.u32 %s3004, 3
                %s3036 = sdiv.u32.pop %s3035, 24
                %s3037 = srem.u32.pop %s3035, 24
                // While loop
                $region228: #{fused_forward.1} parent=226 // loop_pre_header
                  _
                $region229: #{fused_forward.1} parent=226 // loop_header
                  %s3041 = sphi 0, %s3043
                  %p3042 = scmp.ge.s32.totalorder %s3041, %s3036
                  %s3046 = sphi 0, %s3195
                  %s3047 = sphi %s2987, %s3198
                  %s3048 = sphi %s3003, %s3199
                $region230: #{fused_forward.1} parent=226 // loop_header_branch
                  %3045 = sbr.rel (%p3042) target = $region234
                $region231: #{fused_forward.1} parent=226 // loop_body
                  %v3049 = vld [vmem:[%s3047] sm:$0xff]
                  %3050 = vst [vmem:[%s3048] sm:$0xff] %v3049
                  %v3051 = vld [vmem:[%s3047 + $0x8] sm:$0xff]
                  %3052 = vst [vmem:[%s3048 + $0x8] sm:$0xff] %v3051
                  %v3053 = vld [vmem:[%s3047 + $0x10] sm:$0xff]
                  %3054 = vst [vmem:[%s3048 + $0x10] sm:$0xff] %v3053
                  %v3055 = vld [vmem:[%s3047 + $0x18] sm:$0xff]
                  %3056 = vst [vmem:[%s3048 + $0x18] sm:$0xff] %v3055
                  %v3057 = vld [vmem:[%s3047 + $0x20] sm:$0xff]
                  %3058 = vst [vmem:[%s3048 + $0x20] sm:$0xff] %v3057
                  %v3059 = vld [vmem:[%s3047 + $0x28] sm:$0xff]
                  %3060 = vst [vmem:[%s3048 + $0x28] sm:$0xff] %v3059
                  %v3061 = vld [vmem:[%s3047 + $0x30] sm:$0xff]
                  %3062 = vst [vmem:[%s3048 + $0x30] sm:$0xff] %v3061
                  %v3063 = vld [vmem:[%s3047 + $0x38] sm:$0xff]
                  %3064 = vst [vmem:[%s3048 + $0x38] sm:$0xff] %v3063
                  %v3065 = vld [vmem:[%s3047 + $0x40] sm:$0xff]
                  %3066 = vst [vmem:[%s3048 + $0x40] sm:$0xff] %v3065
                  %v3067 = vld [vmem:[%s3047 + $0x48] sm:$0xff]
                  %3068 = vst [vmem:[%s3048 + $0x48] sm:$0xff] %v3067
                  %v3069 = vld [vmem:[%s3047 + $0x50] sm:$0xff]
                  %3070 = vst [vmem:[%s3048 + $0x50] sm:$0xff] %v3069
                  %v3071 = vld [vmem:[%s3047 + $0x58] sm:$0xff]
                  %3072 = vst [vmem:[%s3048 + $0x58] sm:$0xff] %v3071
                  %v3073 = vld [vmem:[%s3047 + $0x60] sm:$0xff]
                  %3074 = vst [vmem:[%s3048 + $0x60] sm:$0xff] %v3073
                  %v3075 = vld [vmem:[%s3047 + $0x68] sm:$0xff]
                  %3076 = vst [vmem:[%s3048 + $0x68] sm:$0xff] %v3075
                  %v3077 = vld [vmem:[%s3047 + $0x70] sm:$0xff]
                  %3078 = vst [vmem:[%s3048 + $0x70] sm:$0xff] %v3077
                  %v3079 = vld [vmem:[%s3047 + $0x78] sm:$0xff]
                  %3080 = vst [vmem:[%s3048 + $0x78] sm:$0xff] %v3079
                  %v3081 = vld [vmem:[%s3047 + $0x80] sm:$0xff]
                  %3082 = vst [vmem:[%s3048 + $0x80] sm:$0xff] %v3081
                  %v3083 = vld [vmem:[%s3047 + $0x88] sm:$0xff]
                  %3084 = vst [vmem:[%s3048 + $0x88] sm:$0xff] %v3083
                  %v3085 = vld [vmem:[%s3047 + $0x90] sm:$0xff]
                  %3086 = vst [vmem:[%s3048 + $0x90] sm:$0xff] %v3085
                  %v3087 = vld [vmem:[%s3047 + $0x98] sm:$0xff]
                  %3088 = vst [vmem:[%s3048 + $0x98] sm:$0xff] %v3087
                  %v3089 = vld [vmem:[%s3047 + $0xa0] sm:$0xff]
                  %3090 = vst [vmem:[%s3048 + $0xa0] sm:$0xff] %v3089
                  %v3091 = vld [vmem:[%s3047 + $0xa8] sm:$0xff]
                  %3092 = vst [vmem:[%s3048 + $0xa8] sm:$0xff] %v3091
                  %v3093 = vld [vmem:[%s3047 + $0xb0] sm:$0xff]
                  %3094 = vst [vmem:[%s3048 + $0xb0] sm:$0xff] %v3093
                  %v3095 = vld [vmem:[%s3047 + $0xb8] sm:$0xff]
                  %3096 = vst [vmem:[%s3048 + $0xb8] sm:$0xff] %v3095
                  %v3097 = vld [vmem:[%s3047 + $0x68] sm:$0xff]
                  %3098 = vst [vmem:[%s3048 + $0xc8] sm:$0xff] %v3097
                  %v3099 = vld [vmem:[%s3047 + $0x70] sm:$0xff]
                  %3100 = vst [vmem:[%s3048 + $0xd0] sm:$0xff] %v3099
                  %v3101 = vld [vmem:[%s3047 + $0x78] sm:$0xff]
                  %3102 = vst [vmem:[%s3048 + $0xd8] sm:$0xff] %v3101
                  %v3103 = vld [vmem:[%s3047 + $0x80] sm:$0xff]
                  %3104 = vst [vmem:[%s3048 + $0xe0] sm:$0xff] %v3103
                  %v3105 = vld [vmem:[%s3047 + $0x88] sm:$0xff]
                  %3106 = vst [vmem:[%s3048 + $0xe8] sm:$0xff] %v3105
                  %v3107 = vld [vmem:[%s3047 + $0x90] sm:$0xff]
                  %3108 = vst [vmem:[%s3048 + $0xf0] sm:$0xff] %v3107
                  %v3109 = vld [vmem:[%s3047 + $0x98] sm:$0xff]
                  %3110 = vst [vmem:[%s3048 + $0xf8] sm:$0xff] %v3109
                  %v3111 = vld [vmem:[%s3047 + $0xa0] sm:$0xff]
                  %3112 = vst [vmem:[%s3048 + $0x100] sm:$0xff] %v3111
                  %v3113 = vld [vmem:[%s3047 + $0xa8] sm:$0xff]
                  %3114 = vst [vmem:[%s3048 + $0x108] sm:$0xff] %v3113
                  %v3115 = vld [vmem:[%s3047 + $0xb0] sm:$0xff]
                  %3116 = vst [vmem:[%s3048 + $0x110] sm:$0xff] %v3115
                  %v3117 = vld [vmem:[%s3047 + $0xb8] sm:$0xff]
                  %3118 = vst [vmem:[%s3048 + $0x118] sm:$0xff] %v3117
                  %v3119 = vld [vmem:[%s3047 + $0xc0] sm:$0xff]
                  %3120 = vst [vmem:[%s3048 + $0x120] sm:$0xff] %v3119
                  %v3121 = vld [vmem:[%s3047 + $0xc8] sm:$0xff]
                  %3122 = vst [vmem:[%s3048 + $0x128] sm:$0xff] %v3121
                  %v3123 = vld [vmem:[%s3047 + $0xd0] sm:$0xff]
                  %3124 = vst [vmem:[%s3048 + $0x130] sm:$0xff] %v3123
                  %v3125 = vld [vmem:[%s3047 + $0xd8] sm:$0xff]
                  %3126 = vst [vmem:[%s3048 + $0x138] sm:$0xff] %v3125
                  %v3127 = vld [vmem:[%s3047 + $0xe0] sm:$0xff]
                  %3128 = vst [vmem:[%s3048 + $0x140] sm:$0xff] %v3127
                  %v3129 = vld [vmem:[%s3047 + $0xe8] sm:$0xff]
                  %3130 = vst [vmem:[%s3048 + $0x148] sm:$0xff] %v3129
                  %v3131 = vld [vmem:[%s3047 + $0xf0] sm:$0xff]
                  %3132 = vst [vmem:[%s3048 + $0x150] sm:$0xff] %v3131
                  %v3133 = vld [vmem:[%s3047 + $0xf8] sm:$0xff]
                  %3134 = vst [vmem:[%s3048 + $0x158] sm:$0xff] %v3133
                  %v3135 = vld [vmem:[%s3047 + $0x100] sm:$0xff]
                  %3136 = vst [vmem:[%s3048 + $0x160] sm:$0xff] %v3135
                  %v3137 = vld [vmem:[%s3047 + $0x108] sm:$0xff]
                  %3138 = vst [vmem:[%s3048 + $0x168] sm:$0xff] %v3137
                  %v3139 = vld [vmem:[%s3047 + $0x110] sm:$0xff]
                  %3140 = vst [vmem:[%s3048 + $0x170] sm:$0xff] %v3139
                  %v3141 = vld [vmem:[%s3047 + $0x118] sm:$0xff]
                  %3142 = vst [vmem:[%s3048 + $0x178] sm:$0xff] %v3141
                  %v3143 = vld [vmem:[%s3047 + $0x120] sm:$0xff]
                  %3144 = vst [vmem:[%s3048 + $0x180] sm:$0xff] %v3143
                  %v3145 = vld [vmem:[%s3047 + $0xd0] sm:$0xff]
                  %3146 = vst [vmem:[%s3048 + $0x190] sm:$0xff] %v3145
                  %v3147 = vld [vmem:[%s3047 + $0xd8] sm:$0xff]
                  %3148 = vst [vmem:[%s3048 + $0x198] sm:$0xff] %v3147
                  %v3149 = vld [vmem:[%s3047 + $0xe0] sm:$0xff]
                  %3150 = vst [vmem:[%s3048 + $0x1a0] sm:$0xff] %v3149
                  %v3151 = vld [vmem:[%s3047 + $0xe8] sm:$0xff]
                  %3152 = vst [vmem:[%s3048 + $0x1a8] sm:$0xff] %v3151
                  %v3153 = vld [vmem:[%s3047 + $0xf0] sm:$0xff]
                  %3154 = vst [vmem:[%s3048 + $0x1b0] sm:$0xff] %v3153
                  %v3155 = vld [vmem:[%s3047 + $0xf8] sm:$0xff]
                  %3156 = vst [vmem:[%s3048 + $0x1b8] sm:$0xff] %v3155
                  %v3157 = vld [vmem:[%s3047 + $0x100] sm:$0xff]
                  %3158 = vst [vmem:[%s3048 + $0x1c0] sm:$0xff] %v3157
                  %v3159 = vld [vmem:[%s3047 + $0x108] sm:$0xff]
                  %3160 = vst [vmem:[%s3048 + $0x1c8] sm:$0xff] %v3159
                  %v3161 = vld [vmem:[%s3047 + $0x110] sm:$0xff]
                  %3162 = vst [vmem:[%s3048 + $0x1d0] sm:$0xff] %v3161
                  %v3163 = vld [vmem:[%s3047 + $0x118] sm:$0xff]
                  %3164 = vst [vmem:[%s3048 + $0x1d8] sm:$0xff] %v3163
                  %v3165 = vld [vmem:[%s3047 + $0x120] sm:$0xff]
                  %3166 = vst [vmem:[%s3048 + $0x1e0] sm:$0xff] %v3165
                  %v3167 = vld [vmem:[%s3047 + $0x128] sm:$0xff]
                  %3168 = vst [vmem:[%s3048 + $0x1e8] sm:$0xff] %v3167
                  %v3169 = vld [vmem:[%s3047 + $0x130] sm:$0xff]
                  %3170 = vst [vmem:[%s3048 + $0x1f0] sm:$0xff] %v3169
                  %v3171 = vld [vmem:[%s3047 + $0x138] sm:$0xff]
                  %3172 = vst [vmem:[%s3048 + $0x1f8] sm:$0xff] %v3171
                  %v3173 = vld [vmem:[%s3047 + $0x140] sm:$0xff]
                  %3174 = vst [vmem:[%s3048 + $0x200] sm:$0xff] %v3173
                  %v3175 = vld [vmem:[%s3047 + $0x148] sm:$0xff]
                  %3176 = vst [vmem:[%s3048 + $0x208] sm:$0xff] %v3175
                  %v3177 = vld [vmem:[%s3047 + $0x150] sm:$0xff]
                  %3178 = vst [vmem:[%s3048 + $0x210] sm:$0xff] %v3177
                  %v3179 = vld [vmem:[%s3047 + $0x158] sm:$0xff]
                  %3180 = vst [vmem:[%s3048 + $0x218] sm:$0xff] %v3179
                  %v3181 = vld [vmem:[%s3047 + $0x160] sm:$0xff]
                  %3182 = vst [vmem:[%s3048 + $0x220] sm:$0xff] %v3181
                  %v3183 = vld [vmem:[%s3047 + $0x168] sm:$0xff]
                  %3184 = vst [vmem:[%s3048 + $0x228] sm:$0xff] %v3183
                  %v3185 = vld [vmem:[%s3047 + $0x170] sm:$0xff]
                  %3186 = vst [vmem:[%s3048 + $0x230] sm:$0xff] %v3185
                  %v3187 = vld [vmem:[%s3047 + $0x178] sm:$0xff]
                  %3188 = vst [vmem:[%s3048 + $0x238] sm:$0xff] %v3187
                  %v3189 = vld [vmem:[%s3047 + $0x180] sm:$0xff]
                  %3190 = vst [vmem:[%s3048 + $0x240] sm:$0xff] %v3189
                  %v3191 = vld [vmem:[%s3047 + $0x188] sm:$0xff]
                  %3192 = vst [vmem:[%s3048 + $0x248] sm:$0xff] %v3191
                  %s3193 = sadd.s32 1, %s3046
                  %p3194 = scmp.ge.s32.totalorder %s3193, %s3036
                  %s3195 = scalar_select %p3194, 0, %s3193
                  %s3196 = smul.u32 %s3195, 192
                  %s3197 = smul.u32 %s3195, 192
                  %s3198 = scalar_lea.vmem %s2987, %s3196 [#allocation9]
                  %s3199 = scalar_lea.vmem %s3003, %s3197
                $region232: #{fused_forward.1} parent=226 // loop_footer
                  %s3043 = sadd.s32 %s3041, 1
                $region233: #{fused_forward.1} parent=226 // loop_footer_branch
                  %3040 = sbr.rel target = $region229
                $region234: #{fused_forward.1} parent=226 // loop_exit
                  _
                %s3200 = sdiv.u32.pop %s3035, 24
                %s3201 = srem.u32.pop %s3035, 24
                %s3202 = smul.u32 %s3200, 24
                %s3203 = smul.u32 128, %s3202
                %s3204 = sshra.s32 %s3203, 4
                %s3205 = scalar_lea.vmem %s2987, %s3204 [#allocation9]
                %s3206 = smul.u32 128, %s3202
                %s3207 = sshra.s32 %s3206, 4
                %s3208 = scalar_lea.vmem %s3003, %s3207
                // While loop
                $region235: #{fused_forward.1} parent=226 // loop_pre_header
                  _
                $region236: #{fused_forward.1} parent=226 // loop_header
                  %s3212 = sphi 0, %s3214
                  %p3213 = scmp.ge.s32.totalorder %s3212, %s3201
                  %s3217 = sphi 0, %s3228
                  %s3218 = sphi %s3205, %s3231
                  %s3219 = sphi %s3208, %s3232
                $region237: #{fused_forward.1} parent=226 // loop_header_branch
                  %3216 = sbr.rel (%p3213) target = $region241
                $region238: #{fused_forward.1} parent=226 // loop_body
                  %v3220 = vld [vmem:[%s3218] sm:$0xff]
                  %3221 = vst [vmem:[%s3219] sm:$0xff] %v3220
                  %v3222 = vld [vmem:[%s3218 + $0x68] sm:$0xff]
                  %3223 = vst [vmem:[%s3219 + $0xc8] sm:$0xff] %v3222
                  %v3224 = vld [vmem:[%s3218 + $0xd0] sm:$0xff]
                  %3225 = vst [vmem:[%s3219 + $0x190] sm:$0xff] %v3224
                  %s3226 = sadd.s32 1, %s3217
                  %p3227 = scmp.ge.s32.totalorder %s3226, %s3201
                  %s3228 = scalar_select %p3227, 0, %s3226
                  %s3229 = smul.u32 %s3228, 8
                  %s3230 = smul.u32 %s3228, 8
                  %s3231 = scalar_lea.vmem %s3205, %s3229 [#allocation9]
                  %s3232 = scalar_lea.vmem %s3208, %s3230
                $region239: #{fused_forward.1} parent=226 // loop_footer
                  %s3214 = sadd.s32 %s3212, 1
                $region240: #{fused_forward.1} parent=226 // loop_footer_branch
                  %3211 = sbr.rel target = $region236
                $region241: #{fused_forward.1} parent=226 // loop_exit
                  _
              $region227: #{fused_forward.1} parent=211 // pred_fallthru
                _
              %p3233 = pneg %p3031
              // Predicated region
              $region242: #{fused_forward.1} parent=211 // pred_check
                _
              $region243: #{fused_forward.1} parent=211 // pred_check_branch
                %3235 = sbr.rel (%p3031) target = $region245
              $region244: #{fused_forward.1} parent=211 // pred_region
                %s3236 = sand.u32 %s3004, 7
                %s3237 = ssub.s32 %s3004, %s3236
                %s3238 = scalar_lea.vmem %s2987, %s3237 [#allocation9]
                %s3239 = ssub.s32 %s3004, %s3236
                %s3240 = scalar_lea.vmem %s3003, %s3239
                %s3241 = sshrl.u32 %s3004, 3
                %s3242 = sdiv.u32.pop %s3241, 24
                %s3243 = srem.u32.pop %s3241, 24
                // While loop
                $region246: #{fused_forward.1} parent=244 // loop_pre_header
                  _
                $region247: #{fused_forward.1} parent=244 // loop_header
                  %s3247 = sphi 0, %s3249
                  %p3248 = scmp.ge.s32.totalorder %s3247, %s3242
                  %s3252 = sphi 0, %s3401
                  %s3253 = sphi %s2987, %s3404
                  %s3254 = sphi %s3003, %s3405
                $region248: #{fused_forward.1} parent=244 // loop_header_branch
                  %3251 = sbr.rel (%p3248) target = $region252
                $region249: #{fused_forward.1} parent=244 // loop_body
                  %v3255 = vld [vmem:[%s3253] sm:$0xff]
                  %3256 = vst [vmem:[%s3254] sm:$0xff] %v3255
                  %v3257 = vld [vmem:[%s3253 + $0x8] sm:$0xff]
                  %3258 = vst [vmem:[%s3254 + $0x8] sm:$0xff] %v3257
                  %v3259 = vld [vmem:[%s3253 + $0x10] sm:$0xff]
                  %3260 = vst [vmem:[%s3254 + $0x10] sm:$0xff] %v3259
                  %v3261 = vld [vmem:[%s3253 + $0x18] sm:$0xff]
                  %3262 = vst [vmem:[%s3254 + $0x18] sm:$0xff] %v3261
                  %v3263 = vld [vmem:[%s3253 + $0x20] sm:$0xff]
                  %3264 = vst [vmem:[%s3254 + $0x20] sm:$0xff] %v3263
                  %v3265 = vld [vmem:[%s3253 + $0x28] sm:$0xff]
                  %3266 = vst [vmem:[%s3254 + $0x28] sm:$0xff] %v3265
                  %v3267 = vld [vmem:[%s3253 + $0x30] sm:$0xff]
                  %3268 = vst [vmem:[%s3254 + $0x30] sm:$0xff] %v3267
                  %v3269 = vld [vmem:[%s3253 + $0x38] sm:$0xff]
                  %3270 = vst [vmem:[%s3254 + $0x38] sm:$0xff] %v3269
                  %v3271 = vld [vmem:[%s3253 + $0x40] sm:$0xff]
                  %3272 = vst [vmem:[%s3254 + $0x40] sm:$0xff] %v3271
                  %v3273 = vld [vmem:[%s3253 + $0x48] sm:$0xff]
                  %3274 = vst [vmem:[%s3254 + $0x48] sm:$0xff] %v3273
                  %v3275 = vld [vmem:[%s3253 + $0x50] sm:$0xff]
                  %3276 = vst [vmem:[%s3254 + $0x50] sm:$0xff] %v3275
                  %v3277 = vld [vmem:[%s3253 + $0x58] sm:$0xff]
                  %3278 = vst [vmem:[%s3254 + $0x58] sm:$0xff] %v3277
                  %v3279 = vld [vmem:[%s3253 + $0x60] sm:$0xff]
                  %3280 = vst [vmem:[%s3254 + $0x60] sm:$0xff] %v3279
                  %v3281 = vld [vmem:[%s3253 + $0x68] sm:$0xff]
                  %3282 = vst [vmem:[%s3254 + $0x68] sm:$0xff] %v3281
                  %v3283 = vld [vmem:[%s3253 + $0x70] sm:$0xff]
                  %3284 = vst [vmem:[%s3254 + $0x70] sm:$0xff] %v3283
                  %v3285 = vld [vmem:[%s3253 + $0x78] sm:$0xff]
                  %3286 = vst [vmem:[%s3254 + $0x78] sm:$0xff] %v3285
                  %v3287 = vld [vmem:[%s3253 + $0x80] sm:$0xff]
                  %3288 = vst [vmem:[%s3254 + $0x80] sm:$0xff] %v3287
                  %v3289 = vld [vmem:[%s3253 + $0x88] sm:$0xff]
                  %3290 = vst [vmem:[%s3254 + $0x88] sm:$0xff] %v3289
                  %v3291 = vld [vmem:[%s3253 + $0x90] sm:$0xff]
                  %3292 = vst [vmem:[%s3254 + $0x90] sm:$0xff] %v3291
                  %v3293 = vld [vmem:[%s3253 + $0x98] sm:$0xff]
                  %3294 = vst [vmem:[%s3254 + $0x98] sm:$0xff] %v3293
                  %v3295 = vld [vmem:[%s3253 + $0xa0] sm:$0xff]
                  %3296 = vst [vmem:[%s3254 + $0xa0] sm:$0xff] %v3295
                  %v3297 = vld [vmem:[%s3253 + $0xa8] sm:$0xff]
                  %3298 = vst [vmem:[%s3254 + $0xa8] sm:$0xff] %v3297
                  %v3299 = vld [vmem:[%s3253 + $0xb0] sm:$0xff]
                  %3300 = vst [vmem:[%s3254 + $0xb0] sm:$0xff] %v3299
                  %v3301 = vld [vmem:[%s3253 + $0xb8] sm:$0xff]
                  %3302 = vst [vmem:[%s3254 + $0xb8] sm:$0xff] %v3301
                  %v3303 = vld [vmem:[%s3253 + $0x68] sm:$0xff]
                  %3304 = vst [vmem:[%s3254 + $0xc8] sm:$0xff] %v3303
                  %v3305 = vld [vmem:[%s3253 + $0x70] sm:$0xff]
                  %3306 = vst [vmem:[%s3254 + $0xd0] sm:$0xff] %v3305
                  %v3307 = vld [vmem:[%s3253 + $0x78] sm:$0xff]
                  %3308 = vst [vmem:[%s3254 + $0xd8] sm:$0xff] %v3307
                  %v3309 = vld [vmem:[%s3253 + $0x80] sm:$0xff]
                  %3310 = vst [vmem:[%s3254 + $0xe0] sm:$0xff] %v3309
                  %v3311 = vld [vmem:[%s3253 + $0x88] sm:$0xff]
                  %3312 = vst [vmem:[%s3254 + $0xe8] sm:$0xff] %v3311
                  %v3313 = vld [vmem:[%s3253 + $0x90] sm:$0xff]
                  %3314 = vst [vmem:[%s3254 + $0xf0] sm:$0xff] %v3313
                  %v3315 = vld [vmem:[%s3253 + $0x98] sm:$0xff]
                  %3316 = vst [vmem:[%s3254 + $0xf8] sm:$0xff] %v3315
                  %v3317 = vld [vmem:[%s3253 + $0xa0] sm:$0xff]
                  %3318 = vst [vmem:[%s3254 + $0x100] sm:$0xff] %v3317
                  %v3319 = vld [vmem:[%s3253 + $0xa8] sm:$0xff]
                  %3320 = vst [vmem:[%s3254 + $0x108] sm:$0xff] %v3319
                  %v3321 = vld [vmem:[%s3253 + $0xb0] sm:$0xff]
                  %3322 = vst [vmem:[%s3254 + $0x110] sm:$0xff] %v3321
                  %v3323 = vld [vmem:[%s3253 + $0xb8] sm:$0xff]
                  %3324 = vst [vmem:[%s3254 + $0x118] sm:$0xff] %v3323
                  %v3325 = vld [vmem:[%s3253 + $0xc0] sm:$0xff]
                  %3326 = vst [vmem:[%s3254 + $0x120] sm:$0xff] %v3325
                  %v3327 = vld [vmem:[%s3253 + $0xc8] sm:$0xff]
                  %3328 = vst [vmem:[%s3254 + $0x128] sm:$0xff] %v3327
                  %v3329 = vld [vmem:[%s3253 + $0xd0] sm:$0xff]
                  %3330 = vst [vmem:[%s3254 + $0x130] sm:$0xff] %v3329
                  %v3331 = vld [vmem:[%s3253 + $0xd8] sm:$0xff]
                  %3332 = vst [vmem:[%s3254 + $0x138] sm:$0xff] %v3331
                  %v3333 = vld [vmem:[%s3253 + $0xe0] sm:$0xff]
                  %3334 = vst [vmem:[%s3254 + $0x140] sm:$0xff] %v3333
                  %v3335 = vld [vmem:[%s3253 + $0xe8] sm:$0xff]
                  %3336 = vst [vmem:[%s3254 + $0x148] sm:$0xff] %v3335
                  %v3337 = vld [vmem:[%s3253 + $0xf0] sm:$0xff]
                  %3338 = vst [vmem:[%s3254 + $0x150] sm:$0xff] %v3337
                  %v3339 = vld [vmem:[%s3253 + $0xf8] sm:$0xff]
                  %3340 = vst [vmem:[%s3254 + $0x158] sm:$0xff] %v3339
                  %v3341 = vld [vmem:[%s3253 + $0x100] sm:$0xff]
                  %3342 = vst [vmem:[%s3254 + $0x160] sm:$0xff] %v3341
                  %v3343 = vld [vmem:[%s3253 + $0x108] sm:$0xff]
                  %3344 = vst [vmem:[%s3254 + $0x168] sm:$0xff] %v3343
                  %v3345 = vld [vmem:[%s3253 + $0x110] sm:$0xff]
                  %3346 = vst [vmem:[%s3254 + $0x170] sm:$0xff] %v3345
                  %v3347 = vld [vmem:[%s3253 + $0x118] sm:$0xff]
                  %3348 = vst [vmem:[%s3254 + $0x178] sm:$0xff] %v3347
                  %v3349 = vld [vmem:[%s3253 + $0x120] sm:$0xff]
                  %3350 = vst [vmem:[%s3254 + $0x180] sm:$0xff] %v3349
                  %v3351 = vld [vmem:[%s3253 + $0xd0] sm:$0xff]
                  %3352 = vst [vmem:[%s3254 + $0x190] sm:$0xff] %v3351
                  %v3353 = vld [vmem:[%s3253 + $0xd8] sm:$0xff]
                  %3354 = vst [vmem:[%s3254 + $0x198] sm:$0xff] %v3353
                  %v3355 = vld [vmem:[%s3253 + $0xe0] sm:$0xff]
                  %3356 = vst [vmem:[%s3254 + $0x1a0] sm:$0xff] %v3355
                  %v3357 = vld [vmem:[%s3253 + $0xe8] sm:$0xff]
                  %3358 = vst [vmem:[%s3254 + $0x1a8] sm:$0xff] %v3357
                  %v3359 = vld [vmem:[%s3253 + $0xf0] sm:$0xff]
                  %3360 = vst [vmem:[%s3254 + $0x1b0] sm:$0xff] %v3359
                  %v3361 = vld [vmem:[%s3253 + $0xf8] sm:$0xff]
                  %3362 = vst [vmem:[%s3254 + $0x1b8] sm:$0xff] %v3361
                  %v3363 = vld [vmem:[%s3253 + $0x100] sm:$0xff]
                  %3364 = vst [vmem:[%s3254 + $0x1c0] sm:$0xff] %v3363
                  %v3365 = vld [vmem:[%s3253 + $0x108] sm:$0xff]
                  %3366 = vst [vmem:[%s3254 + $0x1c8] sm:$0xff] %v3365
                  %v3367 = vld [vmem:[%s3253 + $0x110] sm:$0xff]
                  %3368 = vst [vmem:[%s3254 + $0x1d0] sm:$0xff] %v3367
                  %v3369 = vld [vmem:[%s3253 + $0x118] sm:$0xff]
                  %3370 = vst [vmem:[%s3254 + $0x1d8] sm:$0xff] %v3369
                  %v3371 = vld [vmem:[%s3253 + $0x120] sm:$0xff]
                  %3372 = vst [vmem:[%s3254 + $0x1e0] sm:$0xff] %v3371
                  %v3373 = vld [vmem:[%s3253 + $0x128] sm:$0xff]
                  %3374 = vst [vmem:[%s3254 + $0x1e8] sm:$0xff] %v3373
                  %v3375 = vld [vmem:[%s3253 + $0x130] sm:$0xff]
                  %3376 = vst [vmem:[%s3254 + $0x1f0] sm:$0xff] %v3375
                  %v3377 = vld [vmem:[%s3253 + $0x138] sm:$0xff]
                  %3378 = vst [vmem:[%s3254 + $0x1f8] sm:$0xff] %v3377
                  %v3379 = vld [vmem:[%s3253 + $0x140] sm:$0xff]
                  %3380 = vst [vmem:[%s3254 + $0x200] sm:$0xff] %v3379
                  %v3381 = vld [vmem:[%s3253 + $0x148] sm:$0xff]
                  %3382 = vst [vmem:[%s3254 + $0x208] sm:$0xff] %v3381
                  %v3383 = vld [vmem:[%s3253 + $0x150] sm:$0xff]
                  %3384 = vst [vmem:[%s3254 + $0x210] sm:$0xff] %v3383
                  %v3385 = vld [vmem:[%s3253 + $0x158] sm:$0xff]
                  %3386 = vst [vmem:[%s3254 + $0x218] sm:$0xff] %v3385
                  %v3387 = vld [vmem:[%s3253 + $0x160] sm:$0xff]
                  %3388 = vst [vmem:[%s3254 + $0x220] sm:$0xff] %v3387
                  %v3389 = vld [vmem:[%s3253 + $0x168] sm:$0xff]
                  %3390 = vst [vmem:[%s3254 + $0x228] sm:$0xff] %v3389
                  %v3391 = vld [vmem:[%s3253 + $0x170] sm:$0xff]
                  %3392 = vst [vmem:[%s3254 + $0x230] sm:$0xff] %v3391
                  %v3393 = vld [vmem:[%s3253 + $0x178] sm:$0xff]
                  %3394 = vst [vmem:[%s3254 + $0x238] sm:$0xff] %v3393
                  %v3395 = vld [vmem:[%s3253 + $0x180] sm:$0xff]
                  %3396 = vst [vmem:[%s3254 + $0x240] sm:$0xff] %v3395
                  %v3397 = vld [vmem:[%s3253 + $0x188] sm:$0xff]
                  %3398 = vst [vmem:[%s3254 + $0x248] sm:$0xff] %v3397
                  %s3399 = sadd.s32 1, %s3252
                  %p3400 = scmp.ge.s32.totalorder %s3399, %s3242
                  %s3401 = scalar_select %p3400, 0, %s3399
                  %s3402 = smul.u32 %s3401, 192
                  %s3403 = smul.u32 %s3401, 192
                  %s3404 = scalar_lea.vmem %s2987, %s3402 [#allocation9]
                  %s3405 = scalar_lea.vmem %s3003, %s3403
                $region250: #{fused_forward.1} parent=244 // loop_footer
                  %s3249 = sadd.s32 %s3247, 1
                $region251: #{fused_forward.1} parent=244 // loop_footer_branch
                  %3246 = sbr.rel target = $region247
                $region252: #{fused_forward.1} parent=244 // loop_exit
                  _
                %s3406 = sdiv.u32.pop %s3241, 24
                %s3407 = srem.u32.pop %s3241, 24
                %s3408 = smul.u32 %s3406, 24
                %s3409 = smul.u32 128, %s3408
                %s3410 = sshra.s32 %s3409, 4
                %s3411 = scalar_lea.vmem %s2987, %s3410 [#allocation9]
                %s3412 = smul.u32 128, %s3408
                %s3413 = sshra.s32 %s3412, 4
                %s3414 = scalar_lea.vmem %s3003, %s3413
                // While loop
                $region253: #{fused_forward.1} parent=244 // loop_pre_header
                  _
                $region254: #{fused_forward.1} parent=244 // loop_header
                  %s3418 = sphi 0, %s3420
                  %p3419 = scmp.ge.s32.totalorder %s3418, %s3407
                  %s3423 = sphi 0, %s3434
                  %s3424 = sphi %s3411, %s3437
                  %s3425 = sphi %s3414, %s3438
                $region255: #{fused_forward.1} parent=244 // loop_header_branch
                  %3422 = sbr.rel (%p3419) target = $region259
                $region256: #{fused_forward.1} parent=244 // loop_body
                  %v3426 = vld [vmem:[%s3424] sm:$0xff]
                  %3427 = vst [vmem:[%s3425] sm:$0xff] %v3426
                  %v3428 = vld [vmem:[%s3424 + $0x68] sm:$0xff]
                  %3429 = vst [vmem:[%s3425 + $0xc8] sm:$0xff] %v3428
                  %v3430 = vld [vmem:[%s3424 + $0xd0] sm:$0xff]
                  %3431 = vst [vmem:[%s3425 + $0x190] sm:$0xff] %v3430
                  %s3432 = sadd.s32 1, %s3423
                  %p3433 = scmp.ge.s32.totalorder %s3432, %s3407
                  %s3434 = scalar_select %p3433, 0, %s3432
                  %s3435 = smul.u32 %s3434, 8
                  %s3436 = smul.u32 %s3434, 8
                  %s3437 = scalar_lea.vmem %s3411, %s3435 [#allocation9]
                  %s3438 = scalar_lea.vmem %s3414, %s3436
                $region257: #{fused_forward.1} parent=244 // loop_footer
                  %s3420 = sadd.s32 %s3418, 1
                $region258: #{fused_forward.1} parent=244 // loop_footer_branch
                  %3417 = sbr.rel target = $region254
                $region259: #{fused_forward.1} parent=244 // loop_exit
                  _
                %s3439 = sshllo.u32 0, %s3236
                loop: start=0, step=1, limit=1
                $region260: #{fused_forward.1} parent=244 // loop_pre_header
                  _
                $region261: #{fused_forward.1} parent=244 // loop_header
                  %s3441 = sphi 0, %s3445
                  %p3442 = scmp.ge.s32.totalorder %s3441, 1
                  %s3446 = sphi %s3238, %s3238
                  %s3447 = sphi %s3240, %s3240
                $region262: #{fused_forward.1} parent=244 // loop_header_branch
                  %3444 = sbr.rel (%p3442) target = $region266
                $region263: #{fused_forward.1} parent=244 // loop_body
                  %v3448 = vld [vmem:[%s3446] sm:%s3439]
                  %3449 = vst [vmem:[%s3447] sm:%s3439] %v3448
                  %v3450 = vld [vmem:[%s3446 + $0x68] sm:%s3439]
                  %3451 = vst [vmem:[%s3447 + $0xc8] sm:%s3439] %v3450
                  %v3452 = vld [vmem:[%s3446 + $0xd0] sm:%s3439]
                  %3453 = vst [vmem:[%s3447 + $0x190] sm:%s3439] %v3452
                $region264: #{fused_forward.1} parent=244 // loop_footer
                  %s3445 = sadd.s32 1, %s3441
                $region265: #{fused_forward.1} parent=244 // loop_footer_branch
                  %3440 = sbr.rel target = $region261
                $region266: #{fused_forward.1} parent=244 // loop_exit
                  _
              $region245: #{fused_forward.1} parent=211 // pred_fallthru
                _
            $region212: #{fused_forward.1} parent=207 // pred_fallthru
              _
            // Predicated region
            $region213: #{fused_forward.1} parent=207 // pred_check
              %p3012 = pneg %p3008
            $region214: #{fused_forward.1} parent=207 // pred_check_branch
              %3014 = sbr.rel (%p3012) target = $region216
            $region215: #{fused_forward.1} parent=207 // pred_region
              %s3015 = sshllo.u32 0, %s3004
              loop: start=0, step=1, limit=1
              $region217: #{fused_forward.1} parent=215 // loop_pre_header
                _
              $region218: #{fused_forward.1} parent=215 // loop_header
                %s3017 = sphi 0, %s3021
                %p3018 = scmp.ge.s32.totalorder %s3017, 1
                %s3022 = sphi %s2987, %s2987
                %s3023 = sphi %s3003, %s3003
              $region219: #{fused_forward.1} parent=215 // loop_header_branch
                %3020 = sbr.rel (%p3018) target = $region223
              $region220: #{fused_forward.1} parent=215 // loop_body
                %v3024 = vld [vmem:[%s3022] sm:%s3015]
                %3025 = vst [vmem:[%s3023] sm:%s3015] %v3024
                %v3026 = vld [vmem:[%s3022 + $0x68] sm:%s3015]
                %3027 = vst [vmem:[%s3023 + $0xc8] sm:%s3015] %v3026
                %v3028 = vld [vmem:[%s3022 + $0xd0] sm:%s3015]
                %3029 = vst [vmem:[%s3023 + $0x190] sm:%s3015] %v3028
              $region221: #{fused_forward.1} parent=215 // loop_footer
                %s3021 = sadd.s32 1, %s3017
              $region222: #{fused_forward.1} parent=215 // loop_footer_branch
                %3016 = sbr.rel target = $region218
              $region223: #{fused_forward.1} parent=215 // loop_exit
                _
            $region216: #{fused_forward.1} parent=207 // pred_fallthru
              _
          $region208: #{fused_forward.1} parent=203 // pred_fallthru
            _
          %3454 = vnop
        $region204: #{fused_forward.1} parent=167 // pred_fallthru
          _
      $region168: #{fused_forward.1} parent=5 // pred_fallthru
        _
      %p3455 = scmp.le.s32.totalorder 2, %s12
      // Predicated region
      $region267: #{fused_forward.1} parent=5 // pred_check
        %p3456 = pneg %p3455
      $region268: #{fused_forward.1} parent=5 // pred_check_branch
        %3458 = sbr.rel (%p3456) target = $region270
      $region269: #{fused_forward.1} parent=5 // pred_region
        %s3459 = ssub.s32 %s12, 2
        // Predicated region
        $region271: #{fused_forward.1} parent=269 // pred_check
          %p3460 = pneg %p229
        $region272: #{fused_forward.1} parent=269 // pred_check_branch
          %3462 = sbr.rel (%p3460) target = $region274
        $region273: #{fused_forward.1} parent=269 // pred_region
          %s3463 = sand.u32 %s214, 1
          %s3464 = sand.u32 %s214, 1
          %s3465 = smul.addr %s3464, 312
          %s3466 = scalar_lea.vmem [#allocation9], %s3465
        $region274: #{fused_forward.1} parent=269 // pred_fallthru
          _
      $region270: #{fused_forward.1} parent=5 // pred_fallthru
        _
    $region6: #{fused_forward.1} parent=1 // loop_footer
      %s16 = sadd.s32 1, %s12
    $region7: #{fused_forward.1} parent=1 // loop_footer_branch
      %11 = sbr.rel target = $region3
    $region8: #{fused_forward.1} parent=1 // loop_exit
      _

</llo_original>
